<compile_context>
chip_gen: v5e
topology: v5e:2x2
jax: 0.10.0
libtpu: 0.0.40
codegen_flags: <defaults>
</compile_context>

<pallas_src>
import functools
import math

import numpy as np
import jax
import jax.numpy as jnp
from jax import lax
from jax.experimental import pallas as pl
from jax.experimental.pallas import tpu as pltpu


# ---------------------------------------------------------------------------
# Pallas kernel: one (image, row-tile) step of the fused 3-branch conv.
# ---------------------------------------------------------------------------
def _dyres_conv_kernel(x_ref, w_ref, s_ref, o_ref, sum_ref, sq_ref, acc_ref, *,
                       toh, ow, stride, kh_n, kw_n):
    # x_ref   : (1, Hp, Wp, C)    bf16  padded input image n (whole image)
    # w_ref   : (KH*KW, C, NOC)   bf16  fused branch-major weights (resident)
    # s_ref   : (1, C, NOC)       f32   per-image attention scale
    # o_ref   : (1, TOH*OW, NOC)  bf16  fused conv output rows of this tile
    # sum_ref : (1, 1, 1, NOC)    f32   per-(image, tile) channel sums (BN)
    # sq_ref  : (1, 1, 1, NOC)    f32   per-(image, tile) channel sum-of-squares
    # acc_ref : (TOH*OW, NOC)     f32   accumulator scratch
    c = x_ref.shape[3]

    acc_ref[...] = jnp.zeros_like(acc_ref)
    scale = s_ref[0]                                          # (C, NOC) f32

    if stride == 1:
        ti = pl.program_id(1)
        row_base = pl.multiple_of(ti * toh, toh)

        def kh_body(kh, carry):
            r0 = row_base + kh
            for kw in range(kw_n):
                t = kh * kw_n + kw
                # Attention-scaled weight tap: f32 multiply, bf16 for the MXU.
                ws = (w_ref[t] * scale).astype(jnp.bfloat16)          # (C, NOC)
                win = x_ref[0, pl.ds(r0, toh), kw:kw + ow, :]         # (TOH,OW,C)
                acc_ref[...] += jnp.dot(win.reshape(toh * ow, c), ws,
                                        preferred_element_type=jnp.float32)
            return carry

        lax.fori_loop(0, kh_n, kh_body, 0, unroll=True)
    else:
        # stride > 1 => row tiling disabled (nt == 1); fully static windows.
        # TODO(synk): use pl.ds(..., stride=) once row tiling is wanted here.
        xv = x_ref[0]                                                 # (Hp,Wp,C)
        for kh in range(kh_n):
            for kw in range(kw_n):
                t = kh * kw_n + kw
                ws = (w_ref[t] * scale).astype(jnp.bfloat16)
                win = xv[kh:kh + (toh - 1) * stride + 1:stride,
                         kw:kw + (ow - 1) * stride + 1:stride, :]
                acc_ref[...] += jnp.dot(win.reshape(toh * ow, c), ws,
                                        preferred_element_type=jnp.float32)

    acc = acc_ref[...]
    o_ref[0] = acc.astype(jnp.bfloat16)
    # BN partial statistics computed while the f32 accumulator is still in VMEM.
    sum_ref[0, 0] = jnp.sum(acc, axis=0, keepdims=True)
    sq_ref[0, 0] = jnp.sum(acc * acc, axis=0, keepdims=True)


def _fused_branch_conv_pallas(x_nchw, att, w_stack, *, stride, padding):
    """x_nchw: (B,C,H,W); att: (3,B,C); w_stack: (3,OC,C,KH,KW)
       -> (y bf16 (B,OH*OW,3*OC), chan-sums f32, chan-sumsq f32, OH, OW)."""
    B, C, H, W = x_nchw.shape
    R, OC, _, KH, KW = w_stack.shape
    NOC = R * OC
    Hp, Wp = H + 2 * padding, W + 2 * padding
    OH = (Hp - KH) // stride + 1
    OW = (Wp - KW) // stride + 1

    # TODO(synk): handle the conv halo fully in-kernel (pl.ANY x + manual DMA +
    # in-VMEM zero border) to drop this producer pass; pad/transpose/cast are a
    # single expression so XLA fuses them into one HBM pass.
    xp = jnp.transpose(
        jnp.pad(x_nchw, ((0, 0), (0, 0), (padding, padding), (padding, padding))),
        (0, 2, 3, 1)).astype(jnp.bfloat16)                            # (B,Hp,Wp,C)

    # Fused branch-major weight, shipped in bf16 (halves resident VMEM / DMA).
    wk = jnp.transpose(w_stack, (3, 4, 2, 0, 1)).reshape(KH * KW, C, NOC)
    wk = wk.astype(jnp.bfloat16)

    # Per-image attention scale aligned with the fused weight layout:
    # scale[n, c, r*OC + oc] = att[r, n, c].
    sc = jnp.transpose(att, (1, 2, 0))                                # (B, C, R)
    sc = jnp.broadcast_to(sc[:, :, :, None], (B, C, R, OC)).reshape(B, C, NOC)
    sc = sc.astype(jnp.float32)

    # ---- generation-aware VMEM budget (don't request all of v7x's 64 MiB) --
    try:
        cap = int(pltpu.get_tpu_info().vmem_capacity_bytes)
    except Exception:
        cap = 64 << 20                         # conservative: v7x per-TC size
    limit_cap = (cap * 4) // 5                 # ~20% headroom for compiler scratch

    def _step_bytes(toh_):
        return (2 * Hp * Wp * C * 2            # x block (bf16, double-buffered)
                + 2 * KH * KW * C * NOC * 2    # fused weight (bf16)
                + 2 * C * NOC * 4              # attention scale
                + 2 * toh_ * OW * NOC * 2      # output tile (bf16)
                + 4 * NOC * 4 * 2              # BN partial-sum tiles
                + toh_ * OW * NOC * 4)         # f32 accumulator scratch

    # ---- row tiling: bound per-step output/accumulator footprint and give the
    # grid more than B work units for megacore / v7x's two TensorCores.
    if stride != 1:
        nt = 1
    else:
        budget = (limit_cap * 3) // 4
        cands = [d for d in range(1, OH + 1)
                 if OH % d == 0 and (d == 1 or ((OH // d) * OW) % 8 == 0)]
        fitting = [d for d in cands if _step_bytes(OH // d) <= budget]
        if not fitting:
            nt = max(cands)
        else:
            pref = [d for d in fitting if B * d >= 4]
            nt = min(pref) if pref else min(fitting)
    toh = OH // nt

    vmem_limit = int(min(max(2 * _step_bytes(toh), 32 << 20), limit_cap))

    kernel = functools.partial(_dyres_conv_kernel, toh=toh, ow=OW, stride=stride,
                               kh_n=KH, kw_n=KW)
    out_shape = (
        jax.ShapeDtypeStruct((B, OH * OW, NOC), jnp.bfloat16),
        jax.ShapeDtypeStruct((B, nt, 1, NOC), jnp.float32),
        jax.ShapeDtypeStruct((B, nt, 1, NOC), jnp.float32),
    )
    y, psum, psq = pl.pallas_call(
        kernel,
        out_shape=out_shape,
        grid_spec=pltpu.PrefetchScalarGridSpec(
            num_scalar_prefetch=0,
            grid=(B, nt),
            in_specs=[
                pl.BlockSpec((1, Hp, Wp, C), lambda n, t: (n, 0, 0, 0)),
                pl.BlockSpec((KH * KW, C, NOC), lambda n, t: (0, 0, 0)),
                pl.BlockSpec((1, C, NOC), lambda n, t: (n, 0, 0)),
            ],
            out_specs=(
                pl.BlockSpec((1, toh * OW, NOC), lambda n, t: (n, t, 0)),
                pl.BlockSpec((1, 1, 1, NOC), lambda n, t: (n, t, 0, 0)),
                pl.BlockSpec((1, 1, 1, NOC), lambda n, t: (n, t, 0, 0)),
            ),
            scratch_shapes=[pltpu.VMEM((toh * OW, NOC), jnp.float32)],
        ),
        compiler_params=pltpu.CompilerParams(
            dimension_semantics=("parallel", "parallel"),
            vmem_limit_bytes=vmem_limit,
        ),
    )(xp, wk, sc)
    return y, psum, psq, OH, OW


# ---------------------------------------------------------------------------
# Plain-JAX glue for the tiny attention branch (exact PyTorch semantics).
# ---------------------------------------------------------------------------
def _adaptive_pool_matrix(in_size, out_size):
    P = np.zeros((out_size, in_size), np.float32)
    for i in range(out_size):
        s = (i * in_size) // out_size
        e = int(math.ceil((i + 1) * in_size / out_size))
        P[i, s:e] = 1.0 / (e - s)
    return P


def _cubic_w(t, a=-0.75):
    t = abs(float(t))
    if t <= 1.0:
        return (a + 2.0) * t ** 3 - (a + 3.0) * t ** 2 + 1.0
    if t < 2.0:
        return a * t ** 3 - 5.0 * a * t ** 2 + 8.0 * a * t - 4.0 * a
    return 0.0


def _bicubic_resize_matrix(in_size, out_size):
    """PyTorch F.interpolate(mode='bicubic', align_corners=False), a=-0.75."""
    M = np.zeros((out_size, in_size), np.float64)
    scale = in_size / out_size
    for o in range(out_size):
        src = (o + 0.5) * scale - 0.5
        f = int(np.floor(src))
        t = src - f
        coeffs = [_cubic_w(t + 1.0), _cubic_w(t), _cubic_w(1.0 - t), _cubic_w(2.0 - t)]
        for k in range(4):
            idx = min(max(f - 1 + k, 0), in_size - 1)
            M[o, idx] += coeffs[k]
    return M.astype(np.float32)


def _conv_nchw(x, w, groups=1):
    return lax.conv_general_dilated(
        x, w, window_strides=(1, 1), padding='VALID',
        dimension_numbers=('NCHW', 'OIHW', 'NCHW'),
        feature_group_count=groups)


# ---------------------------------------------------------------------------
# Parameters (deterministic, uniform "kaiming-ish" init; BN gamma=1, beta=0).
# ---------------------------------------------------------------------------
def init_params(key, in_channels, out_channels, kernel_size, reduction=16):
    sq = max(in_channels // reduction, reduction)
    ks = jax.random.split(key, 7)

    def u(k, shape, fan_in):
        b = 1.0 / math.sqrt(fan_in)
        return jax.random.uniform(k, shape, jnp.float32, -b, b)

    kk = kernel_size
    return dict(
        ds_w1=u(ks[0], (sq, in_channels, 1, 1), in_channels),
        ds_w2=u(ks[1], (sq, 1, 3, 3), 9),
        ds_w3=u(ks[2], (sq, 1, 3, 3), 9),
        ds_w4=u(ks[3], (in_channels, sq, 1, 1), sq),
        conv_w=jnp.stack([
            u(ks[4], (out_channels, in_channels, kk, kk), in_channels * kk * kk),
            u(ks[5], (out_channels, in_channels, kk, kk), in_channels * kk * kk),
            u(ks[6], (out_channels, in_channels, kk, kk), in_channels * kk * kk),
        ]),
        bn_gamma=jnp.ones((3, out_channels), jnp.float32),
        bn_beta=jnp.zeros((3, out_channels), jnp.float32),
    )


# ---------------------------------------------------------------------------
# Forward pass (matches DyResConv.forward, mode='A', groups=1, bias=False).
# ---------------------------------------------------------------------------
def dyres_conv_forward(x, params, *, stride=1, padding=0, groups=1, mode='A'):
    assert mode == 'A'   # TODO(synk): mode 'B' squeeze branch not implemented
    assert groups == 1   # TODO(synk): grouped one/two/three_conv not implemented
    b, c, h, w = x.shape
    oc = params['conv_w'].shape[1]
    noc = 3 * oc

    # ---- attention branch (tiny; plain-JAX glue) --------------------------
    # Fused adaptive pools: a single reduction pass over x feeds gap1/gap3/gap5.
    P1h, P1w = _adaptive_pool_matrix(h, 1), _adaptive_pool_matrix(w, 1)
    P3h, P3w = _adaptive_pool_matrix(h, 3), _adaptive_pool_matrix(w, 3)
    P5h, P5w = _adaptive_pool_matrix(h, 5), _adaptive_pool_matrix(w, 5)
    Pw_all = jnp.asarray(np.concatenate([P1w, P3w, P5w], axis=0))     # (9, W)
    tmp = jnp.einsum('nchw,pw->nchp', x, Pw_all)                      # (b,c,h,9)
    a1 = jnp.einsum('oh,nchp->ncop', jnp.asarray(P1h), tmp[..., 0:1])  # (b,c,1,1)
    a3 = jnp.einsum('oh,nchp->ncop', jnp.asarray(P3h), tmp[..., 1:4])  # (b,c,3,3)
    a5 = jnp.einsum('oh,nchp->ncop', jnp.asarray(P5h), tmp[..., 4:9])  # (b,c,5,5)
    M = jnp.asarray(_bicubic_resize_matrix(3, 5))
    a3 = jnp.einsum('oi,ncij,pj->ncop', M, a3, M)       # bicubic 3->5 (a=-0.75)
    a1 = jnp.broadcast_to(a1, (b, c, 5, 5))
    attn = jnp.concatenate([a1, a3, a5], axis=0)        # (3b,c,5,5)

    sq = params['ds_w1'].shape[0]
    attn = jax.nn.relu(_conv_nchw(attn, params['ds_w1']))             # (3b,sq,5,5)
    attn = jax.nn.relu(_conv_nchw(attn, params['ds_w2'], groups=sq))  # (3b,sq,3,3)
    attn = jax.nn.relu(_conv_nchw(attn, params['ds_w3'], groups=sq))  # (3b,sq,1,1)
    attn = _conv_nchw(attn, params['ds_w4'])                          # (3b,c,1,1)
    attn = jax.nn.sigmoid(attn).reshape(3, b, c)

    # ---- hot path: fused 3-branch conv with weight-side attention (Pallas) -
    y, psum, psq, OH, OW = _fused_branch_conv_pallas(
        x, attn, params['conv_w'], stride=stride, padding=padding)

    # ---- BatchNorm (PyTorch training-mode batch statistics, eps=1e-5) -----
    # Channel sums / sums-of-squares come from the kernel's f32 accumulator,
    # so the bf16 slab is only read once more (normalize + branch sum).
    eps = 1e-5
    cnt = float(b * OH * OW)
    tot = jnp.sum(psum, axis=(0, 1, 2))                 # (3*OC,)
    tot2 = jnp.sum(psq, axis=(0, 1, 2))
    mean = tot / cnt
    var = jnp.maximum(tot2 / cnt - mean * mean, 0.0)
    gamma = params['bn_gamma'].reshape(noc)             # branch-major == NOC order
    beta = params['bn_beta'].reshape(noc)
    scl = gamma * lax.rsqrt(var + eps)
    shift = beta - mean * scl

    yn = y.astype(jnp.float32) * scl + shift            # (b, OH*OW, 3*OC)
    out = yn.reshape(b, OH, OW, 3, oc).sum(axis=3)      # y1 + y2 + y3
    return jnp.transpose(out, (0, 3, 1, 2))             # back to NCHW


if __name__ == "__main__":
    B, C, H, W = 2, 4, 16, 16
    OC, K, STRIDE, PAD = 8, 3, 1, 1

    key = jax.random.PRNGKey(0)
    kx, kp = jax.random.split(key)
    x = jax.random.normal(kx, (B, C, H, W), jnp.float32)
    params = init_params(kp, C, OC, K)

    fwd = jax.jit(functools.partial(dyres_conv_forward, stride=STRIDE, padding=PAD))
    y = fwd(x, params)
    jax.block_until_ready(y)
    assert y.shape == (B, OC, H, W), y.shape
    assert bool(jnp.all(jnp.isfinite(y)))
    print("KERNEL_OK")
</pallas_src>

<mosaic_0001>
module attributes {stable_mosaic.version = 11 : i64} {
  func.func @_dyres_conv_kernel(%arg0: i32, %arg1: i32, %arg2: memref<1x18x18x4xbf16, #tpu.memory_space<vmem>>, %arg3: memref<9x4x24xbf16, #tpu.memory_space<vmem>>, %arg4: memref<1x4x24xf32, #tpu.memory_space<vmem>>, %arg5: memref<1x128x24xbf16, #tpu.memory_space<vmem>>, %arg6: memref<1x1x1x24xf32, #tpu.memory_space<vmem>>, %arg7: memref<1x1x1x24xf32, #tpu.memory_space<vmem>>, %arg8: memref<128x24xf32, #tpu.memory_space<vmem>>) attributes {dimension_semantics = [#tpu.dimension_semantics<parallel>, #tpu.dimension_semantics<parallel>], iteration_bounds = array<i64: 2, 2>, scalar_prefetch = 0 : i64, scratch_operands = 1 : i64, tpu.core_type = #tpu.core_type<tc>, window_params = [{transform_indices = @transform_0, window_bounds = array<i64: 1, 18, 18, 4>}, {pipeline_mode = #tpu.pipeline_mode<synchronous>, transform_indices = @transform_1, window_bounds = array<i64: 9, 4, 24>}, {transform_indices = @transform_2, window_bounds = array<i64: 1, 4, 24>}, {transform_indices = @transform_3, window_bounds = array<i64: 1, 128, 24>}, {transform_indices = @transform_4, window_bounds = array<i64: 1, 1, 1, 24>}, {transform_indices = @transform_5, window_bounds = array<i64: 1, 1, 1, 24>}]} {
    %cst = arith.constant 0.000000e+00 : f32
    %0 = vector.broadcast %cst : f32 to vector<128x24xf32>
    %c0 = arith.constant 0 : index
    %c0_0 = arith.constant 0 : index
    %1 = vector.load %arg8[%c0, %c0_0] : memref<128x24xf32, #tpu.memory_space<vmem>>, vector<128x24xf32>
    tpu.vector_store %arg8[%c0, %c0_0], %0 {strides = array<i32>} : memref<128x24xf32, #tpu.memory_space<vmem>>, vector<128x24xf32>,
    %c0_1 = arith.constant 0 : index
    %c0_2 = arith.constant 0 : index
    %c0_3 = arith.constant 0 : index
    %2 = vector.load %arg4[%c0_1, %c0_2, %c0_3] : memref<1x4x24xf32, #tpu.memory_space<vmem>>, vector<1x4x24xf32>
    %3 = vector.shape_cast %2 : vector<1x4x24xf32> to vector<4x24xf32>
    %c8_i32 = arith.constant 8 : i32
    %4 = arith.muli %arg1, %c8_i32 : i32
    %5 = tpu.assume_multiple %4, 8 : i32
    %c0_i32 = arith.constant 0 : i32
    %6 = arith.addi %5, %c0_i32 : i32
    %c3_i32 = arith.constant 3 : i32
    %7 = arith.muli %c0_i32, %c3_i32 : i32
    %c0_i32_4 = arith.constant 0 : i32
    %8 = arith.addi %7, %c0_i32_4 : i32
    %9 = arith.index_cast %8 : i32 to index
    %c0_5 = arith.constant 0 : index
    %c0_6 = arith.constant 0 : index
    %10 = vector.load %arg3[%9, %c0_5, %c0_6] : memref<9x4x24xbf16, #tpu.memory_space<vmem>>, vector<1x4x24xbf16>
    %11 = vector.shape_cast %10 : vector<1x4x24xbf16> to vector<4x24xbf16>
    %12 = arith.extf %11 : vector<4x24xbf16> to vector<4x24xf32>
    %13 = arith.mulf %12, %3 : vector<4x24xf32>
    %14 = arith.truncf %13 : vector<4x24xf32> to vector<4x24xbf16>
    %c0_7 = arith.constant 0 : index
    %15 = arith.index_cast %6 : i32 to index
    %c0_8 = arith.constant 0 : index
    %c0_9 = arith.constant 0 : index
    %16 = vector.load %arg2[%c0_7, %15, %c0_8, %c0_9] : memref<1x18x18x4xbf16, #tpu.memory_space<vmem>>, vector<1x8x16x4xbf16>
    %17 = vector.shape_cast %16 : vector<1x8x16x4xbf16> to vector<8x16x4xbf16>
    %c0_10 = arith.constant 0 : index
    %c0_11 = arith.constant 0 : index
    %18 = vector.load %arg8[%c0_10, %c0_11] : memref<128x24xf32, #tpu.memory_space<vmem>>, vector<128x24xf32>
    %19 = vector.shape_cast %17 : vector<8x16x4xbf16> to vector<128x4xbf16>
    %cst_12 = arith.constant dense<0.000000e+00> : vector<128x24xf32>
    %20 = tpu.matmul %19, %14, %cst_12 {dimension_numbers = #tpu.dot_dimension_numbers<[1], [0], [0], [1], [0, 0, 1, 1], [], []>} : vector<128x4xbf16>, vector<4x24xbf16>, vector<128x24xf32> -> vector<128x24xf32>
    %21 = arith.addf %18, %20 : vector<128x24xf32>
    %c0_13 = arith.constant 0 : index
    %c0_14 = arith.constant 0 : index
    %22 = vector.load %arg8[%c0_13, %c0_14] : memref<128x24xf32, #tpu.memory_space<vmem>>, vector<128x24xf32>
    tpu.vector_store %arg8[%c0_13, %c0_14], %21 {strides = array<i32>} : memref<128x24xf32, #tpu.memory_space<vmem>>, vector<128x24xf32>,
    %c3_i32_15 = arith.constant 3 : i32
    %23 = arith.muli %c0_i32, %c3_i32_15 : i32
    %c1_i32 = arith.constant 1 : i32
    %24 = arith.addi %23, %c1_i32 : i32
    %25 = arith.index_cast %24 : i32 to index
    %c0_16 = arith.constant 0 : index
    %c0_17 = arith.constant 0 : index
    %26 = vector.load %arg3[%25, %c0_16, %c0_17] : memref<9x4x24xbf16, #tpu.memory_space<vmem>>, vector<1x4x24xbf16>
    %27 = vector.shape_cast %26 : vector<1x4x24xbf16> to vector<4x24xbf16>
    %28 = arith.extf %27 : vector<4x24xbf16> to vector<4x24xf32>
    %29 = arith.mulf %28, %3 : vector<4x24xf32>
    %30 = arith.truncf %29 : vector<4x24xf32> to vector<4x24xbf16>
    %c0_18 = arith.constant 0 : index
    %31 = arith.index_cast %6 : i32 to index
    %c1 = arith.constant 1 : index
    %c0_19 = arith.constant 0 : index
    %32 = vector.load %arg2[%c0_18, %31, %c1, %c0_19] : memref<1x18x18x4xbf16, #tpu.memory_space<vmem>>, vector<1x8x16x4xbf16>
    %33 = vector.shape_cast %32 : vector<1x8x16x4xbf16> to vector<8x16x4xbf16>
    %c0_20 = arith.constant 0 : index
    %c0_21 = arith.constant 0 : index
    %34 = vector.load %arg8[%c0_20, %c0_21] : memref<128x24xf32, #tpu.memory_space<vmem>>, vector<128x24xf32>
    %35 = vector.shape_cast %33 : vector<8x16x4xbf16> to vector<128x4xbf16>
    %cst_22 = arith.constant dense<0.000000e+00> : vector<128x24xf32>
    %36 = tpu.matmul %35, %30, %cst_22 {dimension_numbers = #tpu.dot_dimension_numbers<[1], [0], [0], [1], [0, 0, 1, 1], [], []>} : vector<128x4xbf16>, vector<4x24xbf16>, vector<128x24xf32> -> vector<128x24xf32>
    %37 = arith.addf %34, %36 : vector<128x24xf32>
    %c0_23 = arith.constant 0 : index
    %c0_24 = arith.constant 0 : index
    %38 = vector.load %arg8[%c0_23, %c0_24] : memref<128x24xf32, #tpu.memory_space<vmem>>, vector<128x24xf32>
    tpu.vector_store %arg8[%c0_23, %c0_24], %37 {strides = array<i32>} : memref<128x24xf32, #tpu.memory_space<vmem>>, vector<128x24xf32>,
    %c3_i32_25 = arith.constant 3 : i32
    %39 = arith.muli %c0_i32, %c3_i32_25 : i32
    %c2_i32 = arith.constant 2 : i32
    %40 = arith.addi %39, %c2_i32 : i32
    %41 = arith.index_cast %40 : i32 to index
    %c0_26 = arith.constant 0 : index
    %c0_27 = arith.constant 0 : index
    %42 = vector.load %arg3[%41, %c0_26, %c0_27] : memref<9x4x24xbf16, #tpu.memory_space<vmem>>, vector<1x4x24xbf16>
    %43 = vector.shape_cast %42 : vector<1x4x24xbf16> to vector<4x24xbf16>
    %44 = arith.extf %43 : vector<4x24xbf16> to vector<4x24xf32>
    %45 = arith.mulf %44, %3 : vector<4x24xf32>
    %46 = arith.truncf %45 : vector<4x24xf32> to vector<4x24xbf16>
    %c0_28 = arith.constant 0 : index
    %47 = arith.index_cast %6 : i32 to index
    %c2 = arith.constant 2 : index
    %c0_29 = arith.constant 0 : index
    %48 = vector.load %arg2[%c0_28, %47, %c2, %c0_29] : memref<1x18x18x4xbf16, #tpu.memory_space<vmem>>, vector<1x8x16x4xbf16>
    %49 = vector.shape_cast %48 : vector<1x8x16x4xbf16> to vector<8x16x4xbf16>
    %c0_30 = arith.constant 0 : index
    %c0_31 = arith.constant 0 : index
    %50 = vector.load %arg8[%c0_30, %c0_31] : memref<128x24xf32, #tpu.memory_space<vmem>>, vector<128x24xf32>
    %51 = vector.shape_cast %49 : vector<8x16x4xbf16> to vector<128x4xbf16>
    %cst_32 = arith.constant dense<0.000000e+00> : vector<128x24xf32>
    %52 = tpu.matmul %51, %46, %cst_32 {dimension_numbers = #tpu.dot_dimension_numbers<[1], [0], [0], [1], [0, 0, 1, 1], [], []>} : vector<128x4xbf16>, vector<4x24xbf16>, vector<128x24xf32> -> vector<128x24xf32>
    %53 = arith.addf %50, %52 : vector<128x24xf32>
    %c0_33 = arith.constant 0 : index
    %c0_34 = arith.constant 0 : index
    %54 = vector.load %arg8[%c0_33, %c0_34] : memref<128x24xf32, #tpu.memory_space<vmem>>, vector<128x24xf32>
    tpu.vector_store %arg8[%c0_33, %c0_34], %53 {strides = array<i32>} : memref<128x24xf32, #tpu.memory_space<vmem>>, vector<128x24xf32>,
    %c1_i32_35 = arith.constant 1 : i32
    %55 = arith.addi %5, %c1_i32_35 : i32
    %c3_i32_36 = arith.constant 3 : i32
    %56 = arith.muli %c1_i32_35, %c3_i32_36 : i32
    %c0_i32_37 = arith.constant 0 : i32
    %57 = arith.addi %56, %c0_i32_37 : i32
    %58 = arith.index_cast %57 : i32 to index
    %c0_38 = arith.constant 0 : index
    %c0_39 = arith.constant 0 : index
    %59 = vector.load %arg3[%58, %c0_38, %c0_39] : memref<9x4x24xbf16, #tpu.memory_space<vmem>>, vector<1x4x24xbf16>
    %60 = vector.shape_cast %59 : vector<1x4x24xbf16> to vector<4x24xbf16>
    %61 = arith.extf %60 : vector<4x24xbf16> to vector<4x24xf32>
    %62 = arith.mulf %61, %3 : vector<4x24xf32>
    %63 = arith.truncf %62 : vector<4x24xf32> to vector<4x24xbf16>
    %c0_40 = arith.constant 0 : index
    %64 = arith.index_cast %55 : i32 to index
    %c0_41 = arith.constant 0 : index
    %c0_42 = arith.constant 0 : index
    %65 = vector.load %arg2[%c0_40, %64, %c0_41, %c0_42] : memref<1x18x18x4xbf16, #tpu.memory_space<vmem>>, vector<1x8x16x4xbf16>
    %66 = vector.shape_cast %65 : vector<1x8x16x4xbf16> to vector<8x16x4xbf16>
    %c0_43 = arith.constant 0 : index
    %c0_44 = arith.constant 0 : index
    %67 = vector.load %arg8[%c0_43, %c0_44] : memref<128x24xf32, #tpu.memory_space<vmem>>, vector<128x24xf32>
    %68 = vector.shape_cast %66 : vector<8x16x4xbf16> to vector<128x4xbf16>
    %cst_45 = arith.constant dense<0.000000e+00> : vector<128x24xf32>
    %69 = tpu.matmul %68, %63, %cst_45 {dimension_numbers = #tpu.dot_dimension_numbers<[1], [0], [0], [1], [0, 0, 1, 1], [], []>} : vector<128x4xbf16>, vector<4x24xbf16>, vector<128x24xf32> -> vector<128x24xf32>
    %70 = arith.addf %67, %69 : vector<128x24xf32>
    %c0_46 = arith.constant 0 : index
    %c0_47 = arith.constant 0 : index
    %71 = vector.load %arg8[%c0_46, %c0_47] : memref<128x24xf32, #tpu.memory_space<vmem>>, vector<128x24xf32>
    tpu.vector_store %arg8[%c0_46, %c0_47], %70 {strides = array<i32>} : memref<128x24xf32, #tpu.memory_space<vmem>>, vector<128x24xf32>,
    %c3_i32_48 = arith.constant 3 : i32
    %72 = arith.muli %c1_i32_35, %c3_i32_48 : i32
    %c1_i32_49 = arith.constant 1 : i32
    %73 = arith.addi %72, %c1_i32_49 : i32
    %74 = arith.index_cast %73 : i32 to index
    %c0_50 = arith.constant 0 : index
    %c0_51 = arith.constant 0 : index
    %75 = vector.load %arg3[%74, %c0_50, %c0_51] : memref<9x4x24xbf16, #tpu.memory_space<vmem>>, vector<1x4x24xbf16>
    %76 = vector.shape_cast %75 : vector<1x4x24xbf16> to vector<4x24xbf16>
    %77 = arith.extf %76 : vector<4x24xbf16> to vector<4x24xf32>
    %78 = arith.mulf %77, %3 : vector<4x24xf32>
    %79 = arith.truncf %78 : vector<4x24xf32> to vector<4x24xbf16>
    %c0_52 = arith.constant 0 : index
    %80 = arith.index_cast %55 : i32 to index
    %c1_53 = arith.constant 1 : index
    %c0_54 = arith.constant 0 : index
    %81 = vector.load %arg2[%c0_52, %80, %c1_53, %c0_54] : memref<1x18x18x4xbf16, #tpu.memory_space<vmem>>, vector<1x8x16x4xbf16>
    %82 = vector.shape_cast %81 : vector<1x8x16x4xbf16> to vector<8x16x4xbf16>
    %c0_55 = arith.constant 0 : index
    %c0_56 = arith.constant 0 : index
    %83 = vector.load %arg8[%c0_55, %c0_56] : memref<128x24xf32, #tpu.memory_space<vmem>>, vector<128x24xf32>
    %84 = vector.shape_cast %82 : vector<8x16x4xbf16> to vector<128x4xbf16>
    %cst_57 = arith.constant dense<0.000000e+00> : vector<128x24xf32>
    %85 = tpu.matmul %84, %79, %cst_57 {dimension_numbers = #tpu.dot_dimension_numbers<[1], [0], [0], [1], [0, 0, 1, 1], [], []>} : vector<128x4xbf16>, vector<4x24xbf16>, vector<128x24xf32> -> vector<128x24xf32>
    %86 = arith.addf %83, %85 : vector<128x24xf32>
    %c0_58 = arith.constant 0 : index
    %c0_59 = arith.constant 0 : index
    %87 = vector.load %arg8[%c0_58, %c0_59] : memref<128x24xf32, #tpu.memory_space<vmem>>, vector<128x24xf32>
    tpu.vector_store %arg8[%c0_58, %c0_59], %86 {strides = array<i32>} : memref<128x24xf32, #tpu.memory_space<vmem>>, vector<128x24xf32>,
    %c3_i32_60 = arith.constant 3 : i32
    %88 = arith.muli %c1_i32_35, %c3_i32_60 : i32
    %c2_i32_61 = arith.constant 2 : i32
    %89 = arith.addi %88, %c2_i32_61 : i32
    %90 = arith.index_cast %89 : i32 to index
    %c0_62 = arith.constant 0 : index
    %c0_63 = arith.constant 0 : index
    %91 = vector.load %arg3[%90, %c0_62, %c0_63] : memref<9x4x24xbf16, #tpu.memory_space<vmem>>, vector<1x4x24xbf16>
    %92 = vector.shape_cast %91 : vector<1x4x24xbf16> to vector<4x24xbf16>
    %93 = arith.extf %92 : vector<4x24xbf16> to vector<4x24xf32>
    %94 = arith.mulf %93, %3 : vector<4x24xf32>
    %95 = arith.truncf %94 : vector<4x24xf32> to vector<4x24xbf16>
    %c0_64 = arith.constant 0 : index
    %96 = arith.index_cast %55 : i32 to index
    %c2_65 = arith.constant 2 : index
    %c0_66 = arith.constant 0 : index
    %97 = vector.load %arg2[%c0_64, %96, %c2_65, %c0_66] : memref<1x18x18x4xbf16, #tpu.memory_space<vmem>>, vector<1x8x16x4xbf16>
    %98 = vector.shape_cast %97 : vector<1x8x16x4xbf16> to vector<8x16x4xbf16>
    %c0_67 = arith.constant 0 : index
    %c0_68 = arith.constant 0 : index
    %99 = vector.load %arg8[%c0_67, %c0_68] : memref<128x24xf32, #tpu.memory_space<vmem>>, vector<128x24xf32>
    %100 = vector.shape_cast %98 : vector<8x16x4xbf16> to vector<128x4xbf16>
    %cst_69 = arith.constant dense<0.000000e+00> : vector<128x24xf32>
    %101 = tpu.matmul %100, %95, %cst_69 {dimension_numbers = #tpu.dot_dimension_numbers<[1], [0], [0], [1], [0, 0, 1, 1], [], []>} : vector<128x4xbf16>, vector<4x24xbf16>, vector<128x24xf32> -> vector<128x24xf32>
    %102 = arith.addf %99, %101 : vector<128x24xf32>
    %c0_70 = arith.constant 0 : index
    %c0_71 = arith.constant 0 : index
    %103 = vector.load %arg8[%c0_70, %c0_71] : memref<128x24xf32, #tpu.memory_space<vmem>>, vector<128x24xf32>
    tpu.vector_store %arg8[%c0_70, %c0_71], %102 {strides = array<i32>} : memref<128x24xf32, #tpu.memory_space<vmem>>, vector<128x24xf32>,
    %c2_i32_72 = arith.constant 2 : i32
    %104 = arith.addi %5, %c2_i32_72 : i32
    %c3_i32_73 = arith.constant 3 : i32
    %105 = arith.muli %c2_i32_72, %c3_i32_73 : i32
    %c0_i32_74 = arith.constant 0 : i32
    %106 = arith.addi %105, %c0_i32_74 : i32
    %107 = arith.index_cast %106 : i32 to index
    %c0_75 = arith.constant 0 : index
    %c0_76 = arith.constant 0 : index
    %108 = vector.load %arg3[%107, %c0_75, %c0_76] : memref<9x4x24xbf16, #tpu.memory_space<vmem>>, vector<1x4x24xbf16>
    %109 = vector.shape_cast %108 : vector<1x4x24xbf16> to vector<4x24xbf16>
    %110 = arith.extf %109 : vector<4x24xbf16> to vector<4x24xf32>
    %111 = arith.mulf %110, %3 : vector<4x24xf32>
    %112 = arith.truncf %111 : vector<4x24xf32> to vector<4x24xbf16>
    %c0_77 = arith.constant 0 : index
    %113 = arith.index_cast %104 : i32 to index
    %c0_78 = arith.constant 0 : index
    %c0_79 = arith.constant 0 : index
    %114 = vector.load %arg2[%c0_77, %113, %c0_78, %c0_79] : memref<1x18x18x4xbf16, #tpu.memory_space<vmem>>, vector<1x8x16x4xbf16>
    %115 = vector.shape_cast %114 : vector<1x8x16x4xbf16> to vector<8x16x4xbf16>
    %c0_80 = arith.constant 0 : index
    %c0_81 = arith.constant 0 : index
    %116 = vector.load %arg8[%c0_80, %c0_81] : memref<128x24xf32, #tpu.memory_space<vmem>>, vector<128x24xf32>
    %117 = vector.shape_cast %115 : vector<8x16x4xbf16> to vector<128x4xbf16>
    %cst_82 = arith.constant dense<0.000000e+00> : vector<128x24xf32>
    %118 = tpu.matmul %117, %112, %cst_82 {dimension_numbers = #tpu.dot_dimension_numbers<[1], [0], [0], [1], [0, 0, 1, 1], [], []>} : vector<128x4xbf16>, vector<4x24xbf16>, vector<128x24xf32> -> vector<128x24xf32>
    %119 = arith.addf %116, %118 : vector<128x24xf32>
    %c0_83 = arith.constant 0 : index
    %c0_84 = arith.constant 0 : index
    %120 = vector.load %arg8[%c0_83, %c0_84] : memref<128x24xf32, #tpu.memory_space<vmem>>, vector<128x24xf32>
    tpu.vector_store %arg8[%c0_83, %c0_84], %119 {strides = array<i32>} : memref<128x24xf32, #tpu.memory_space<vmem>>, vector<128x24xf32>,
    %c3_i32_85 = arith.constant 3 : i32
    %121 = arith.muli %c2_i32_72, %c3_i32_85 : i32
    %c1_i32_86 = arith.constant 1 : i32
    %122 = arith.addi %121, %c1_i32_86 : i32
    %123 = arith.index_cast %122 : i32 to index
    %c0_87 = arith.constant 0 : index
    %c0_88 = arith.constant 0 : index
    %124 = vector.load %arg3[%123, %c0_87, %c0_88] : memref<9x4x24xbf16, #tpu.memory_space<vmem>>, vector<1x4x24xbf16>
    %125 = vector.shape_cast %124 : vector<1x4x24xbf16> to vector<4x24xbf16>
    %126 = arith.extf %125 : vector<4x24xbf16> to vector<4x24xf32>
    %127 = arith.mulf %126, %3 : vector<4x24xf32>
    %128 = arith.truncf %127 : vector<4x24xf32> to vector<4x24xbf16>
    %c0_89 = arith.constant 0 : index
    %129 = arith.index_cast %104 : i32 to index
    %c1_90 = arith.constant 1 : index
    %c0_91 = arith.constant 0 : index
    %130 = vector.load %arg2[%c0_89, %129, %c1_90, %c0_91] : memref<1x18x18x4xbf16, #tpu.memory_space<vmem>>, vector<1x8x16x4xbf16>
    %131 = vector.shape_cast %130 : vector<1x8x16x4xbf16> to vector<8x16x4xbf16>
    %c0_92 = arith.constant 0 : index
    %c0_93 = arith.constant 0 : index
    %132 = vector.load %arg8[%c0_92, %c0_93] : memref<128x24xf32, #tpu.memory_space<vmem>>, vector<128x24xf32>
    %133 = vector.shape_cast %131 : vector<8x16x4xbf16> to vector<128x4xbf16>
    %cst_94 = arith.constant dense<0.000000e+00> : vector<128x24xf32>
    %134 = tpu.matmul %133, %128, %cst_94 {dimension_numbers = #tpu.dot_dimension_numbers<[1], [0], [0], [1], [0, 0, 1, 1], [], []>} : vector<128x4xbf16>, vector<4x24xbf16>, vector<128x24xf32> -> vector<128x24xf32>
    %135 = arith.addf %132, %134 : vector<128x24xf32>
    %c0_95 = arith.constant 0 : index
    %c0_96 = arith.constant 0 : index
    %136 = vector.load %arg8[%c0_95, %c0_96] : memref<128x24xf32, #tpu.memory_space<vmem>>, vector<128x24xf32>
    tpu.vector_store %arg8[%c0_95, %c0_96], %135 {strides = array<i32>} : memref<128x24xf32, #tpu.memory_space<vmem>>, vector<128x24xf32>,
    %c3_i32_97 = arith.constant 3 : i32
    %137 = arith.muli %c2_i32_72, %c3_i32_97 : i32
    %c2_i32_98 = arith.constant 2 : i32
    %138 = arith.addi %137, %c2_i32_98 : i32
    %139 = arith.index_cast %138 : i32 to index
    %c0_99 = arith.constant 0 : index
    %c0_100 = arith.constant 0 : index
    %140 = vector.load %arg3[%139, %c0_99, %c0_100] : memref<9x4x24xbf16, #tpu.memory_space<vmem>>, vector<1x4x24xbf16>
    %141 = vector.shape_cast %140 : vector<1x4x24xbf16> to vector<4x24xbf16>
    %142 = arith.extf %141 : vector<4x24xbf16> to vector<4x24xf32>
    %143 = arith.mulf %142, %3 : vector<4x24xf32>
    %144 = arith.truncf %143 : vector<4x24xf32> to vector<4x24xbf16>
    %c0_101 = arith.constant 0 : index
    %145 = arith.index_cast %104 : i32 to index
    %c2_102 = arith.constant 2 : index
    %c0_103 = arith.constant 0 : index
    %146 = vector.load %arg2[%c0_101, %145, %c2_102, %c0_103] : memref<1x18x18x4xbf16, #tpu.memory_space<vmem>>, vector<1x8x16x4xbf16>
    %147 = vector.shape_cast %146 : vector<1x8x16x4xbf16> to vector<8x16x4xbf16>
    %c0_104 = arith.constant 0 : index
    %c0_105 = arith.constant 0 : index
    %148 = vector.load %arg8[%c0_104, %c0_105] : memref<128x24xf32, #tpu.memory_space<vmem>>, vector<128x24xf32>
    %149 = vector.shape_cast %147 : vector<8x16x4xbf16> to vector<128x4xbf16>
    %cst_106 = arith.constant dense<0.000000e+00> : vector<128x24xf32>
    %150 = tpu.matmul %149, %144, %cst_106 {dimension_numbers = #tpu.dot_dimension_numbers<[1], [0], [0], [1], [0, 0, 1, 1], [], []>} : vector<128x4xbf16>, vector<4x24xbf16>, vector<128x24xf32> -> vector<128x24xf32>
    %151 = arith.addf %148, %150 : vector<128x24xf32>
    %c0_107 = arith.constant 0 : index
    %c0_108 = arith.constant 0 : index
    %152 = vector.load %arg8[%c0_107, %c0_108] : memref<128x24xf32, #tpu.memory_space<vmem>>, vector<128x24xf32>
    tpu.vector_store %arg8[%c0_107, %c0_108], %151 {strides = array<i32>} : memref<128x24xf32, #tpu.memory_space<vmem>>, vector<128x24xf32>,
    %c3_i32_109 = arith.constant 3 : i32
    %c0_110 = arith.constant 0 : index
    %c0_111 = arith.constant 0 : index
    %153 = vector.load %arg8[%c0_110, %c0_111] : memref<128x24xf32, #tpu.memory_space<vmem>>, vector<128x24xf32>
    %154 = arith.truncf %153 : vector<128x24xf32> to vector<128x24xbf16>
    %c0_112 = arith.constant 0 : index
    %c0_113 = arith.constant 0 : index
    %c0_114 = arith.constant 0 : index
    %155 = vector.load %arg5[%c0_112, %c0_113, %c0_114] : memref<1x128x24xbf16, #tpu.memory_space<vmem>>, vector<1x128x24xbf16>
    %156 = vector.shape_cast %155 : vector<1x128x24xbf16> to vector<128x24xbf16>
    %157 = vector.shape_cast %154 : vector<128x24xbf16> to vector<1x128x24xbf16>
    tpu.vector_store %arg5[%c0_112, %c0_113, %c0_114], %157 {strides = array<i32>} : memref<1x128x24xbf16, #tpu.memory_space<vmem>>, vector<1x128x24xbf16>,
    %cst_115 = arith.constant dense<0.000000e+00> : vector<24xf32>
    %158 = vector.multi_reduction <add>, %153, %cst_115 [0] : vector<128x24xf32> to vector<24xf32>
    %159 = vector.shape_cast %158 : vector<24xf32> to vector<1x24xf32>
    %c0_116 = arith.constant 0 : index
    %c0_117 = arith.constant 0 : index
    %c0_118 = arith.constant 0 : index
    %c0_119 = arith.constant 0 : index
    %160 = vector.load %arg6[%c0_116, %c0_117, %c0_118, %c0_119] : memref<1x1x1x24xf32, #tpu.memory_space<vmem>>, vector<1x1x1x24xf32>
    %161 = vector.shape_cast %160 : vector<1x1x1x24xf32> to vector<1x24xf32>
    %162 = vector.shape_cast %159 : vector<1x24xf32> to vector<1x1x1x24xf32>
    tpu.vector_store %arg6[%c0_116, %c0_117, %c0_118, %c0_119], %162 {strides = array<i32>} : memref<1x1x1x24xf32, #tpu.memory_space<vmem>>, vector<1x1x1x24xf32>,
    %163 = arith.mulf %153, %153 : vector<128x24xf32>
    %cst_120 = arith.constant dense<0.000000e+00> : vector<24xf32>
    %164 = vector.multi_reduction <add>, %163, %cst_120 [0] : vector<128x24xf32> to vector<24xf32>
    %165 = vector.shape_cast %164 : vector<24xf32> to vector<1x24xf32>
    %c0_121 = arith.constant 0 : index
    %c0_122 = arith.constant 0 : index
    %c0_123 = arith.constant 0 : index
    %c0_124 = arith.constant 0 : index
    %166 = vector.load %arg7[%c0_121, %c0_122, %c0_123, %c0_124] : memref<1x1x1x24xf32, #tpu.memory_space<vmem>>, vector<1x1x1x24xf32>
    %167 = vector.shape_cast %166 : vector<1x1x1x24xf32> to vector<1x24xf32>
    %168 = vector.shape_cast %165 : vector<1x24xf32> to vector<1x1x1x24xf32>
    tpu.vector_store %arg7[%c0_121, %c0_122, %c0_123, %c0_124], %168 {strides = array<i32>} : memref<1x1x1x24xf32, #tpu.memory_space<vmem>>, vector<1x1x1x24xf32>,
    return
  }
  func.func @transform_0(%arg0: i32, %arg1: i32) -> (i32, i32, i32, i32) {
    %c0_i32 = arith.constant 0 : i32
    %c0_i32_0 = arith.constant 0 : i32
    %c0_i32_1 = arith.constant 0 : i32
    %c0_i32_2 = arith.constant 0 : i32
    return %arg0, %c0_i32, %c0_i32_0, %c0_i32_1 : i32, i32, i32, i32
  }
  func.func @transform_1(%arg0: i32, %arg1: i32) -> (i32, i32, i32) {
    %c0_i32 = arith.constant 0 : i32
    %c0_i32_0 = arith.constant 0 : i32
    %c0_i32_1 = arith.constant 0 : i32
    %c0_i32_2 = arith.constant 0 : i32
    return %c0_i32, %c0_i32_0, %c0_i32_1 : i32, i32, i32
  }
  func.func @transform_2(%arg0: i32, %arg1: i32) -> (i32, i32, i32) {
    %c0_i32 = arith.constant 0 : i32
    %c0_i32_0 = arith.constant 0 : i32
    %c0_i32_1 = arith.constant 0 : i32
    return %arg0, %c0_i32, %c0_i32_0 : i32, i32, i32
  }
  func.func @transform_3(%arg0: i32, %arg1: i32) -> (i32, i32, i32) {
    %c0_i32 = arith.constant 0 : i32
    %c0_i32_0 = arith.constant 0 : i32
    return %arg0, %arg1, %c0_i32 : i32, i32, i32
  }
  func.func @transform_4(%arg0: i32, %arg1: i32) -> (i32, i32, i32, i32) {
    %c0_i32 = arith.constant 0 : i32
    %c0_i32_0 = arith.constant 0 : i32
    %c0_i32_1 = arith.constant 0 : i32
    return %arg0, %arg1, %c0_i32, %c0_i32_0 : i32, i32, i32, i32
  }
  func.func @transform_5(%arg0: i32, %arg1: i32) -> (i32, i32, i32, i32) {
    %c0_i32 = arith.constant 0 : i32
    %c0_i32_0 = arith.constant 0 : i32
    %c0_i32_1 = arith.constant 0 : i32
    return %arg0, %arg1, %c0_i32, %c0_i32_0 : i32, i32, i32, i32
  }
}

</mosaic_0001>

<llo_original>
// kernel: dyres_conv_forward.1
$region0: #{dyres_conv_forward.1}
  #allocation0 [shape = 'u32[]', space=smem, size = 0x4, offset = 0x4, fixed_abs, tag = 'smem constant byte address 0x4 - core index']
  #allocation1 [shape = 'u32[72,128]{1,0:T(1,128)}', space=vmem, size = 0x9000, scoped, tag = 'internal scratch']
  #allocation2 [shape = 'f32[128,24]{1,0:T(8,128)}', space=vmem, size = 0x10000, scoped, tag = 'scratch operand']
  %s0 = inlined_call_operand.vmem [shape: bf16[2,18,18,4], index: 0, kind: input, shape index: {}]
  %s1 = inlined_call_operand.vmem [shape: bf16[9,4,24], index: 1, kind: input, shape index: {}]
  %s2 = inlined_call_operand.vmem [shape: f32[2,4,24], index: 2, kind: input, shape index: {}]
  %s3 = inlined_call_operand.vmem [shape: bf16[2,256,24], index: 3, kind: output, shape index: {0}]
  %s4 = inlined_call_operand.vmem [shape: f32[2,2,1,24], index: 4, kind: output, shape index: {1}]
  %s5 = inlined_call_operand.vmem [shape: f32[2,2,1,24], index: 5, kind: output, shape index: {2}]
  %6 = xla_tuple %s3, %s4, %s5
  %s7 = sld [smem:[#allocation0]]
  $region61: #{dyres_conv_forward.1} parent=0
    _
  %s9 = ssub.s32 1, %s7
  %s10 = scalar_select 0, %s9, %s7
  loop: start=0, step=1, limit=6
  $region2: #{dyres_conv_forward.1} parent=0 // loop_pre_header
    _
  $region3: #{dyres_conv_forward.1} parent=0 // loop_header
    %s12 = sphi 0, %s16
    %p13 = scmp.ge.s32.totalorder %s12, 6
    %s19 = sphi 0, %s31
    %s20 = sphi 0, %s27
    %s21 = sphi 0, %s19
    %s22 = sphi 0, %s20
    %s23 = sphi 0, %s21
    %s24 = sphi 0, %s22
    %s34 = sphi 0, %s36
    %s37 = sphi 0, %s34
    %s38 = sphi 0, %s37
    %s54 = sphi 0, %s38
    %s58 = sphi 0, %s58
    %s60 = sphi 0, %s58
    %s61 = sphi 0, %s60
    %s75 = sphi 0, %s61
    %s81 = sphi 0, %s83
    %s84 = sphi 0, %s81
    %s85 = sphi 0, %s84
    %s101 = sphi 0, %s85
    %s109 = sphi 0, %s111
    %s112 = sphi 0, %s109
    %s113 = sphi 0, %s112
    %s129 = sphi 0, %s113
    %s137 = sphi 0, %s139
    %s140 = sphi 0, %s137
    %s141 = sphi 0, %s140
    %s157 = sphi 0, %s141
    %s165 = sphi 0, %s167
    %s168 = sphi 0, %s165
    %s169 = sphi 0, %s168
    %s185 = sphi 0, %s169
  $region4: #{dyres_conv_forward.1} parent=0 // loop_header_branch
    %15 = sbr.rel (%p13) target = $region8
  $region5: #{dyres_conv_forward.1} parent=0 // loop_body
    %s17 = ssub.s32 %s12, 1
    %s18 = ssub.s32 %s12, 2
    %s25 = sadd.s32 1, %s20
    %p26 = scmp.ge.s32.totalorder %s25, 2
    %s27 = scalar_select %p26, 0, %s25
    %s28 = sadd.s32 1, %s19
    %s29 = scalar_select %p26, %s28, %s19
    %p30 = scmp.ge.s32.totalorder %s29, 2
    %s31 = scalar_select %p30, 0, %s29
    %s32 = ssub.s32 %s19, %s31
    %p33 = scmp.eq.s32.totalorder %s32, 0
    %s35 = sadd.s32 %s34, 1
    %s36 = scalar_select %p33, %s34, %s35
    %p39 = pneg %p33
    %p40 = scmp.eq.s32.totalorder %s12, 3
    %p41 = por %p39, %p40
    %p42 = scmp.ne.s32.totalorder %s34, %s37
    %p43 = scmp.eq.s32.totalorder %s12, 0
    %p44 = por %p42, %p43
    %p45 = scmp.ne.s32.totalorder %s34, %s37
    %p46 = scmp.eq.s32.totalorder %s17, 3
    %p47 = por %p45, %p46
    %p48 = scmp.ne.s32.totalorder %s37, %s38
    %p49 = scmp.eq.s32.totalorder %s17, 0
    %p50 = por %p48, %p49
    %p51 = scmp.ne.s32.totalorder %s37, %s38
    %p52 = scmp.eq.s32.totalorder %s18, 3
    %p53 = por %p51, %p52
    %p55 = scmp.ne.s32.totalorder %s38, %s54
    %p56 = scmp.eq.s32.totalorder %s18, 0
    %p57 = por %p55, %p56
    %s59 = sadd.s32 %s58, 1
    %p62 = scmp.eq.s32.totalorder %s12, 3
    %p63 = scmp.ne.s32.totalorder %s58, %s60
    %p64 = scmp.eq.s32.totalorder %s12, 0
    %p65 = por %p63, %p64
    %p66 = scmp.ne.s32.totalorder %s58, %s60
    %p67 = scmp.eq.s32.totalorder %s17, 3
    %p68 = por %p66, %p67
    %p69 = scmp.ne.s32.totalorder %s60, %s61
    %p70 = scmp.eq.s32.totalorder %s17, 0
    %p71 = por %p69, %p70
    %p72 = scmp.ne.s32.totalorder %s60, %s61
    %p73 = scmp.eq.s32.totalorder %s18, 3
    %p74 = por %p72, %p73
    %p76 = scmp.ne.s32.totalorder %s61, %s75
    %p77 = scmp.eq.s32.totalorder %s18, 0
    %p78 = por %p76, %p77
    %s79 = ssub.s32 %s19, %s31
    %p80 = scmp.eq.s32.totalorder %s79, 0
    %s82 = sadd.s32 %s81, 1
    %s83 = scalar_select %p80, %s81, %s82
    %p86 = pneg %p80
    %p87 = scmp.eq.s32.totalorder %s12, 3
    %p88 = por %p86, %p87
    %p89 = scmp.ne.s32.totalorder %s81, %s84
    %p90 = scmp.eq.s32.totalorder %s12, 0
    %p91 = por %p89, %p90
    %p92 = scmp.ne.s32.totalorder %s81, %s84
    %p93 = scmp.eq.s32.totalorder %s17, 3
    %p94 = por %p92, %p93
    %p95 = scmp.ne.s32.totalorder %s84, %s85
    %p96 = scmp.eq.s32.totalorder %s17, 0
    %p97 = por %p95, %p96
    %p98 = scmp.ne.s32.totalorder %s84, %s85
    %p99 = scmp.eq.s32.totalorder %s18, 3
    %p100 = por %p98, %p99
    %p102 = scmp.ne.s32.totalorder %s85, %s101
    %p103 = scmp.eq.s32.totalorder %s18, 0
    %p104 = por %p102, %p103
    %s105 = ssub.s32 %s19, %s31
    %s106 = ssub.s32 %s20, %s27
    %s107 = sor.u32 %s105, %s106
    %p108 = scmp.eq.s32.totalorder %s107, 0
    %s110 = sadd.s32 %s109, 1
    %s111 = scalar_select %p108, %s109, %s110
    %p114 = pneg %p108
    %p115 = scmp.eq.s32.totalorder %s12, 3
    %p116 = por %p114, %p115
    %p117 = scmp.ne.s32.totalorder %s109, %s112
    %p118 = scmp.eq.s32.totalorder %s12, 0
    %p119 = por %p117, %p118
    %p120 = scmp.ne.s32.totalorder %s109, %s112
    %p121 = scmp.eq.s32.totalorder %s17, 3
    %p122 = por %p120, %p121
    %p123 = scmp.ne.s32.totalorder %s112, %s113
    %p124 = scmp.eq.s32.totalorder %s17, 0
    %p125 = por %p123, %p124
    %p126 = scmp.ne.s32.totalorder %s112, %s113
    %p127 = scmp.eq.s32.totalorder %s18, 3
    %p128 = por %p126, %p127
    %p130 = scmp.ne.s32.totalorder %s113, %s129
    %p131 = scmp.eq.s32.totalorder %s18, 0
    %p132 = por %p130, %p131
    %s133 = ssub.s32 %s19, %s31
    %s134 = ssub.s32 %s20, %s27
    %s135 = sor.u32 %s133, %s134
    %p136 = scmp.eq.s32.totalorder %s135, 0
    %s138 = sadd.s32 %s137, 1
    %s139 = scalar_select %p136, %s137, %s138
    %p142 = pneg %p136
    %p143 = scmp.eq.s32.totalorder %s12, 3
    %p144 = por %p142, %p143
    %p145 = scmp.ne.s32.totalorder %s137, %s140
    %p146 = scmp.eq.s32.totalorder %s12, 0
    %p147 = por %p145, %p146
    %p148 = scmp.ne.s32.totalorder %s137, %s140
    %p149 = scmp.eq.s32.totalorder %s17, 3
    %p150 = por %p148, %p149
    %p151 = scmp.ne.s32.totalorder %s140, %s141
    %p152 = scmp.eq.s32.totalorder %s17, 0
    %p153 = por %p151, %p152
    %p154 = scmp.ne.s32.totalorder %s140, %s141
    %p155 = scmp.eq.s32.totalorder %s18, 3
    %p156 = por %p154, %p155
    %p158 = scmp.ne.s32.totalorder %s141, %s157
    %p159 = scmp.eq.s32.totalorder %s18, 0
    %p160 = por %p158, %p159
    %s161 = ssub.s32 %s19, %s31
    %s162 = ssub.s32 %s20, %s27
    %s163 = sor.u32 %s161, %s162
    %p164 = scmp.eq.s32.totalorder %s163, 0
    %s166 = sadd.s32 %s165, 1
    %s167 = scalar_select %p164, %s165, %s166
    %p170 = pneg %p164
    %p171 = scmp.eq.s32.totalorder %s12, 3
    %p172 = por %p170, %p171
    %p173 = scmp.ne.s32.totalorder %s165, %s168
    %p174 = scmp.eq.s32.totalorder %s12, 0
    %p175 = por %p173, %p174
    %p176 = scmp.ne.s32.totalorder %s165, %s168
    %p177 = scmp.eq.s32.totalorder %s17, 3
    %p178 = por %p176, %p177
    %p179 = scmp.ne.s32.totalorder %s168, %s169
    %p180 = scmp.eq.s32.totalorder %s17, 0
    %p181 = por %p179, %p180
    %p182 = scmp.ne.s32.totalorder %s168, %s169
    %p183 = scmp.eq.s32.totalorder %s18, 3
    %p184 = por %p182, %p183
    %p186 = scmp.ne.s32.totalorder %s169, %s185
    %p187 = scmp.eq.s32.totalorder %s18, 0
    %p188 = por %p186, %p187
    %p189 = scmp.le.s32.totalorder 1, %s12
    %p190 = scmp.lt.s32.totalorder %s12, 5
    %p191 = pnand %p189, %p190
    %p192 = pneg %p191
    // Predicated region
    $region9: #{dyres_conv_forward.1} parent=5 // pred_check
      _
    $region10: #{dyres_conv_forward.1} parent=5 // pred_check_branch
      %194 = sbr.rel (%p191) target = $region12
    $region11: #{dyres_conv_forward.1} parent=5 // pred_region
      %s195 = ssub.s32 %s12, 1
      // Predicated region
      $region13: #{dyres_conv_forward.1} parent=11 // pred_check
        %p196 = pneg %p71
      $region14: #{dyres_conv_forward.1} parent=11 // pred_check_branch
        %198 = sbr.rel (%p196) target = $region16
      $region15: #{dyres_conv_forward.1} parent=11 // pred_region
        _
      $region16: #{dyres_conv_forward.1} parent=11 // pred_fallthru
        _
    $region12: #{dyres_conv_forward.1} parent=5 // pred_fallthru
      _
    %p199 = scmp.lt.s32.totalorder %s12, 4
    // Predicated region
    $region17: #{dyres_conv_forward.1} parent=5 // pred_check
      %p200 = pneg %p199
    $region18: #{dyres_conv_forward.1} parent=5 // pred_check_branch
      %202 = sbr.rel (%p200) target = $region20
    $region19: #{dyres_conv_forward.1} parent=5 // pred_region
      // Predicated region
      $region21: #{dyres_conv_forward.1} parent=19 // pred_check
        %p203 = pneg %p44
      $region22: #{dyres_conv_forward.1} parent=19 // pred_check_branch
        %205 = sbr.rel (%p203) target = $region24
      $region23: #{dyres_conv_forward.1} parent=19 // pred_region
        %p206 = scmp.lt.s32.totalorder %s19, 1
        %s207 = scalar_select %p206, %s19, 1
        %s208 = smul.addr %s207, 54
        %s209 = smul.addr %s208, 4
        %s210 = scalar_lea.vmem %s0, %s209
      $region24: #{dyres_conv_forward.1} parent=19 // pred_fallthru
        _
      // Predicated region
      $region25: #{dyres_conv_forward.1} parent=19 // pred_check
        %p211 = pneg %p91
      $region26: #{dyres_conv_forward.1} parent=19 // pred_check_branch
        %213 = sbr.rel (%p211) target = $region28
      $region27: #{dyres_conv_forward.1} parent=19 // pred_region
        %p214 = scmp.lt.s32.totalorder %s19, 1
        %s215 = scalar_select %p214, %s19, 1
        %s216 = smul.addr %s215, 4
        %s217 = scalar_lea.vmem %s2, %s216
      $region28: #{dyres_conv_forward.1} parent=19 // pred_fallthru
        _
    $region20: #{dyres_conv_forward.1} parent=5 // pred_fallthru
      _
    %p218 = scmp.le.s32.totalorder 1, %s12
    %p219 = scmp.lt.s32.totalorder %s12, 5
    %p220 = pnand %p218, %p219
    %p221 = pneg %p220
    // Predicated region
    $region29: #{dyres_conv_forward.1} parent=5 // pred_check
      _
    $region30: #{dyres_conv_forward.1} parent=5 // pred_check_branch
      %223 = sbr.rel (%p220) target = $region32
    $region31: #{dyres_conv_forward.1} parent=5 // pred_region
      %s224 = ssub.s32 %s12, 1
      %p225 = scmp.lt.s32.totalorder %s21, 1
      %s226 = scalar_select %p225, %s21, 1
      %s227 = smul.addr %s226, 54
      %s228 = smul.addr %s227, 4
      %s229 = scalar_lea.vmem %s0, %s228
      %p230 = pneg %p50
      %p231 = pneg %p47
      %p232 = pneg %p71
      %p233 = pneg %p68
      %p234 = scmp.lt.s32.totalorder %s21, 1
      %s235 = scalar_select %p234, %s21, 1
      %s236 = smul.addr %s235, 4
      %s237 = scalar_lea.vmem %s2, %s236
      %p238 = pneg %p97
      %p239 = pneg %p94
      %p240 = pneg %p125
      %p241 = pneg %p122
      %s242 = smul.u32 16, %s22
      %p243 = scmp.lt.s32.totalorder %s21, 1
      %s244 = scalar_select %p243, %s21, 1
      %p245 = scmp.lt.s32.totalorder %s242, 31
      %s246 = scalar_select %p245, %s242, 31
      %s247 = smul.addr %s244, 32
      %s248 = sadd.s32 %s246, %s247
      %s249 = smul.addr %s248, 4
      %s250 = scalar_lea.vmem %s3, %s249
      %p251 = pneg %p153
      %p252 = pneg %p150
      %p253 = scmp.lt.s32.totalorder %s21, 1
      %s254 = scalar_select %p253, %s21, 1
      %p255 = scmp.lt.s32.totalorder %s22, 1
      %s256 = scalar_select %p255, %s22, 1
      %s257 = smul.addr %s254, 2
      %s258 = sadd.s32 %s256, %s257
      %s259 = scalar_lea.vmem %s4, %s258
      %p260 = pneg %p181
      %p261 = pneg %p178
      %p262 = scmp.lt.s32.totalorder %s21, 1
      %s263 = scalar_select %p262, %s21, 1
      %p264 = scmp.lt.s32.totalorder %s22, 1
      %s265 = scalar_select %p264, %s22, 1
      %s266 = smul.addr %s263, 2
      %s267 = sadd.s32 %s265, %s266
      %s268 = scalar_lea.vmem %s5, %s267
      %p269 = scmp.lt.s32.totalorder %s21, 1
      %s270 = scalar_select %p269, %s21, 1
      %s271 = smul.addr %s270, 54
      %s272 = smul.addr %s271, 4
      %s273 = scalar_lea.vmem %s0, %s272
      %p274 = scmp.lt.s32.totalorder %s21, 1
      %s275 = scalar_select %p274, %s21, 1
      %s276 = smul.addr %s275, 4
      %s277 = scalar_lea.vmem %s2, %s276
      %s278 = smul.u32 16, %s22
      %p279 = scmp.lt.s32.totalorder %s21, 1
      %s280 = scalar_select %p279, %s21, 1
      %p281 = scmp.lt.s32.totalorder %s278, 31
      %s282 = scalar_select %p281, %s278, 31
      %s283 = smul.addr %s280, 32
      %s284 = sadd.s32 %s282, %s283
      %s285 = smul.addr %s284, 4
      %s286 = scalar_lea.vmem %s3, %s285
      %s287 = smul.u32 16, %s22
      %p288 = scmp.lt.s32.totalorder %s21, 1
      %s289 = scalar_select %p288, %s21, 1
      %p290 = scmp.lt.s32.totalorder %s22, 1
      %s291 = scalar_select %p290, %s22, 1
      %s292 = smul.addr %s289, 2
      %s293 = sadd.s32 %s291, %s292
      %s294 = scalar_lea.vmem %s4, %s293
      %p295 = scmp.lt.s32.totalorder %s21, 1
      %s296 = scalar_select %p295, %s21, 1
      %p297 = scmp.lt.s32.totalorder %s22, 1
      %s298 = scalar_select %p297, %s22, 1
      %s299 = smul.addr %s296, 2
      %s300 = sadd.s32 %s298, %s299
      %s301 = scalar_lea.vmem %s5, %s300
      %vm303 = vcmask 195584
      %304 = vst.msk [vmem:[#allocation2] sm:$0xff] %vm303, 0.0
      %305 = vst.msk [vmem:[#allocation2 + $0x8] sm:$0xff] %vm303, 0.0
      %306 = vst.msk [vmem:[#allocation2 + $0x10] sm:$0xff] %vm303, 0.0
      %307 = vst.msk [vmem:[#allocation2 + $0x18] sm:$0xff] %vm303, 0.0
      %308 = vst.msk [vmem:[#allocation2 + $0x20] sm:$0xff] %vm303, 0.0
      %309 = vst.msk [vmem:[#allocation2 + $0x28] sm:$0xff] %vm303, 0.0
      %310 = vst.msk [vmem:[#allocation2 + $0x30] sm:$0xff] %vm303, 0.0
      %311 = vst.msk [vmem:[#allocation2 + $0x38] sm:$0xff] %vm303, 0.0
      %312 = vst.msk [vmem:[#allocation2 + $0x40] sm:$0xff] %vm303, 0.0
      %313 = vst.msk [vmem:[#allocation2 + $0x48] sm:$0xff] %vm303, 0.0
      %314 = vst.msk [vmem:[#allocation2 + $0x50] sm:$0xff] %vm303, 0.0
      %315 = vst.msk [vmem:[#allocation2 + $0x58] sm:$0xff] %vm303, 0.0
      %316 = vst.msk [vmem:[#allocation2 + $0x60] sm:$0xff] %vm303, 0.0
      %317 = vst.msk [vmem:[#allocation2 + $0x68] sm:$0xff] %vm303, 0.0
      %318 = vst.msk [vmem:[#allocation2 + $0x70] sm:$0xff] %vm303, 0.0
      %319 = vst.msk [vmem:[#allocation2 + $0x78] sm:$0xff] %vm303, 0.0
      %v320 = vld [vmem:[%s277] sm:$0xf]
      %s321 = smul.u32 %s22, 8
      %v322 = vld [vmem:[%s1] sm:$0x3]
      %v323 = vunpack.c.l.bf16 %v322
      %v324 = vmul.f32 %v323, %v320
      %v325 = vpack.c.bf16 %v324, %v324
      %s326 = smul.u32 %s321, 3
      %s327 = smul.addr %s326, 4
      %s328 = scalar_lea.vmem %s273, %s327
      %v329 = vld [vmem:[%s328] sm:$0xf]
      %v330 = vld [vmem:[%s328 + $0x4] sm:$0xf]
      %v331 = vld [vmem:[%s328 + $0xc] sm:$0xf]
      %v332 = vld [vmem:[%s328 + $0x10] sm:$0xf]
      %v333 = vld [vmem:[%s328 + $0x18] sm:$0xf]
      %v334 = vld [vmem:[%s328 + $0x1c] sm:$0xf]
      %v335 = vld [vmem:[%s328 + $0x24] sm:$0xf]
      %v336 = vld [vmem:[%s328 + $0x28] sm:$0xf]
      %v337 = vld [vmem:[%s328 + $0x30] sm:$0xf]
      %v338 = vld [vmem:[%s328 + $0x34] sm:$0xf]
      %v339 = vld [vmem:[%s328 + $0x3c] sm:$0xf]
      %v340 = vld [vmem:[%s328 + $0x40] sm:$0xf]
      %v341 = vld [vmem:[%s328 + $0x48] sm:$0xf]
      %v342 = vld [vmem:[%s328 + $0x4c] sm:$0xf]
      %v343 = vld [vmem:[%s328 + $0x54] sm:$0xf]
      %v344 = vld [vmem:[%s328 + $0x58] sm:$0xf]
      %v345 = vld [vmem:[#allocation2] sm:$0xff]
      %v346 = vld [vmem:[#allocation2 + $0x8] sm:$0xff]
      %v347 = vld [vmem:[#allocation2 + $0x10] sm:$0xff]
      %v348 = vld [vmem:[#allocation2 + $0x18] sm:$0xff]
      %v349 = vld [vmem:[#allocation2 + $0x20] sm:$0xff]
      %v350 = vld [vmem:[#allocation2 + $0x28] sm:$0xff]
      %v351 = vld [vmem:[#allocation2 + $0x30] sm:$0xff]
      %v352 = vld [vmem:[#allocation2 + $0x38] sm:$0xff]
      %v353 = vld [vmem:[#allocation2 + $0x40] sm:$0xff]
      %v354 = vld [vmem:[#allocation2 + $0x48] sm:$0xff]
      %v355 = vld [vmem:[#allocation2 + $0x50] sm:$0xff]
      %v356 = vld [vmem:[#allocation2 + $0x58] sm:$0xff]
      %v357 = vld [vmem:[#allocation2 + $0x60] sm:$0xff]
      %v358 = vld [vmem:[#allocation2 + $0x68] sm:$0xff]
      %v359 = vld [vmem:[#allocation2 + $0x70] sm:$0xff]
      %v360 = vld [vmem:[#allocation2 + $0x78] sm:$0xff]
      %v377 = vunpack.c.l.b16 %v329
      %v378 = vunpack.c.l.b16 %v330
      %v379 = vunpack.c.l.b16 %v331
      %v380 = vunpack.c.l.b16 %v332
      %v381 = vunpack.c.l.b16 %v333
      %v382 = vunpack.c.l.b16 %v334
      %v383 = vunpack.c.l.b16 %v335
      %v384 = vunpack.c.l.b16 %v336
      %v385 = vunpack.c.l.b16 %v337
      %v386 = vunpack.c.l.b16 %v338
      %v387 = vunpack.c.l.b16 %v339
      %v388 = vunpack.c.l.b16 %v340
      %v389 = vunpack.c.l.b16 %v341
      %v390 = vunpack.c.l.b16 %v342
      %v391 = vunpack.c.l.b16 %v343
      %v392 = vunpack.c.l.b16 %v344
      %v393 = vpack.c.b16 %v378, %v377
      %v394 = vpack.c.b16 %v380, %v379
      %v395 = vpack.c.b16 %v382, %v381
      %v396 = vpack.c.b16 %v384, %v383
      %v397 = vpack.c.b16 %v386, %v385
      %v398 = vpack.c.b16 %v388, %v387
      %v399 = vpack.c.b16 %v390, %v389
      %v400 = vpack.c.b16 %v392, %v391
      %vm401 = vcmask 31744
      %v403 = vsel %vm401, %v393, 0
      %v406 = vsel %vm401, %v394, 0
      %v409 = vsel %vm401, %v395, 0
      %v412 = vsel %vm401, %v396, 0
      %v415 = vsel %vm401, %v397, 0
      %v418 = vsel %vm401, %v398, 0
      %v421 = vsel %vm401, %v399, 0
      %v424 = vsel %vm401, %v400, 0
      %vm426 = vcmask 1041408
      %v428 = vsel %vm426, %v325, 0
      %430 = vmatpush.bf16.msra.mxu0 0
      %431 = vmatpush.bf16.msra.mxu0 0
      %432 = vmatpush.bf16.msra.mxu0 0
      %433 = vmatpush.bf16.msra.mxu0 0
      %434 = vmatpush.bf16.msra.mxu0 0
      %435 = vmatpush.bf16.msra.mxu0 0
      %436 = vmatpush.bf16.msra.mxu0 0
      %437 = vmatpush.bf16.msra.mxu0 %v428
      %438 = vmatmul.bf16.gmra.mxu0 %v403
      %v439 = vpop.f32.mrf.mxu0
      %v440 = vadd.f32 0.0, %v439
      %v441 = vpop.f32.mrf.mxu0
      %v442 = vadd.f32 0.0, %v441
      %443 = vmatmul.bf16.gmra.mxu0 %v406
      %v444 = vpop.f32.mrf.mxu0
      %v445 = vadd.f32 0.0, %v444
      %v446 = vpop.f32.mrf.mxu0
      %v447 = vadd.f32 0.0, %v446
      %448 = vmatmul.bf16.gmra.mxu0 %v409
      %v449 = vpop.f32.mrf.mxu0
      %v450 = vadd.f32 0.0, %v449
      %v451 = vpop.f32.mrf.mxu0
      %v452 = vadd.f32 0.0, %v451
      %453 = vmatmul.bf16.gmra.mxu0 %v412
      %v454 = vpop.f32.mrf.mxu0
      %v455 = vadd.f32 0.0, %v454
      %v456 = vpop.f32.mrf.mxu0
      %v457 = vadd.f32 0.0, %v456
      %458 = vmatmul.bf16.gmra.mxu0 %v415
      %v459 = vpop.f32.mrf.mxu0
      %v460 = vadd.f32 0.0, %v459
      %v461 = vpop.f32.mrf.mxu0
      %v462 = vadd.f32 0.0, %v461
      %463 = vmatmul.bf16.gmra.mxu0 %v418
      %v464 = vpop.f32.mrf.mxu0
      %v465 = vadd.f32 0.0, %v464
      %v466 = vpop.f32.mrf.mxu0
      %v467 = vadd.f32 0.0, %v466
      %468 = vmatmul.bf16.gmra.mxu0 %v421
      %v469 = vpop.f32.mrf.mxu0
      %v470 = vadd.f32 0.0, %v469
      %v471 = vpop.f32.mrf.mxu0
      %v472 = vadd.f32 0.0, %v471
      %473 = vmatmul.bf16.gmra.mxu0 %v424
      %v474 = vpop.f32.mrf.mxu0
      %v475 = vadd.f32 0.0, %v474
      %v476 = vpop.f32.mrf.mxu0
      %v477 = vadd.f32 0.0, %v476
      %478 = vdwg.mxu0
      %v479 = vadd.f32 %v345, %v440
      %v480 = vadd.f32 %v346, %v442
      %v481 = vadd.f32 %v347, %v445
      %v482 = vadd.f32 %v348, %v447
      %v483 = vadd.f32 %v349, %v450
      %v484 = vadd.f32 %v350, %v452
      %v485 = vadd.f32 %v351, %v455
      %v486 = vadd.f32 %v352, %v457
      %v487 = vadd.f32 %v353, %v460
      %v488 = vadd.f32 %v354, %v462
      %v489 = vadd.f32 %v355, %v465
      %v490 = vadd.f32 %v356, %v467
      %v491 = vadd.f32 %v357, %v470
      %v492 = vadd.f32 %v358, %v472
      %v493 = vadd.f32 %v359, %v475
      %v494 = vadd.f32 %v360, %v477
      %495 = vst.msk [vmem:[#allocation2] sm:$0xff] %vm303, %v479
      %496 = vst.msk [vmem:[#allocation2 + $0x8] sm:$0xff] %vm303, %v480
      %497 = vst.msk [vmem:[#allocation2 + $0x10] sm:$0xff] %vm303, %v481
      %498 = vst.msk [vmem:[#allocation2 + $0x18] sm:$0xff] %vm303, %v482
      %499 = vst.msk [vmem:[#allocation2 + $0x20] sm:$0xff] %vm303, %v483
      %500 = vst.msk [vmem:[#allocation2 + $0x28] sm:$0xff] %vm303, %v484
      %501 = vst.msk [vmem:[#allocation2 + $0x30] sm:$0xff] %vm303, %v485
      %502 = vst.msk [vmem:[#allocation2 + $0x38] sm:$0xff] %vm303, %v486
      %503 = vst.msk [vmem:[#allocation2 + $0x40] sm:$0xff] %vm303, %v487
      %504 = vst.msk [vmem:[#allocation2 + $0x48] sm:$0xff] %vm303, %v488
      %505 = vst.msk [vmem:[#allocation2 + $0x50] sm:$0xff] %vm303, %v489
      %506 = vst.msk [vmem:[#allocation2 + $0x58] sm:$0xff] %vm303, %v490
      %507 = vst.msk [vmem:[#allocation2 + $0x60] sm:$0xff] %vm303, %v491
      %508 = vst.msk [vmem:[#allocation2 + $0x68] sm:$0xff] %vm303, %v492
      %509 = vst.msk [vmem:[#allocation2 + $0x70] sm:$0xff] %vm303, %v493
      %510 = vst.msk [vmem:[#allocation2 + $0x78] sm:$0xff] %vm303, %v494
      %s511 = scalar_lea.vmem %s1, 2
      %v512 = vld [vmem:[%s511] sm:$0x3]
      %v513 = vunpack.c.l.bf16 %v512
      %v514 = vmul.f32 %v513, %v320
      %v515 = vpack.c.bf16 %v514, %v514
      %v516 = vld [vmem:[%s328] sm:$0xf]
      %v517 = vld [vmem:[%s328 + $0x4] sm:$0xf]
      %v518 = vld [vmem:[%s328 + $0x8] sm:$0x1]
      %v519 = vld [vmem:[%s328 + $0xc] sm:$0xf]
      %v520 = vld [vmem:[%s328 + $0x10] sm:$0xf]
      %v521 = vld [vmem:[%s328 + $0x14] sm:$0x1]
      %v522 = vld [vmem:[%s328 + $0x18] sm:$0xf]
      %v523 = vld [vmem:[%s328 + $0x1c] sm:$0xf]
      %v524 = vld [vmem:[%s328 + $0x20] sm:$0x1]
      %v525 = vld [vmem:[%s328 + $0x24] sm:$0xf]
      %v526 = vld [vmem:[%s328 + $0x28] sm:$0xf]
      %v527 = vld [vmem:[%s328 + $0x2c] sm:$0x1]
      %v528 = vld [vmem:[%s328 + $0x30] sm:$0xf]
      %v529 = vld [vmem:[%s328 + $0x34] sm:$0xf]
      %v530 = vld [vmem:[%s328 + $0x38] sm:$0x1]
      %v531 = vld [vmem:[%s328 + $0x3c] sm:$0xf]
      %v532 = vld [vmem:[%s328 + $0x40] sm:$0xf]
      %v533 = vld [vmem:[%s328 + $0x44] sm:$0x1]
      %v534 = vld [vmem:[%s328 + $0x48] sm:$0xf]
      %v535 = vld [vmem:[%s328 + $0x4c] sm:$0xf]
      %v536 = vld [vmem:[%s328 + $0x50] sm:$0x1]
      %v537 = vld [vmem:[%s328 + $0x54] sm:$0xf]
      %v538 = vld [vmem:[%s328 + $0x58] sm:$0xf]
      %v539 = vld [vmem:[%s328 + $0x5c] sm:$0x1]
      %v540 = vld [vmem:[#allocation2] sm:$0xff]
      %v541 = vld [vmem:[#allocation2 + $0x8] sm:$0xff]
      %v542 = vld [vmem:[#allocation2 + $0x10] sm:$0xff]
      %v543 = vld [vmem:[#allocation2 + $0x18] sm:$0xff]
      %v544 = vld [vmem:[#allocation2 + $0x20] sm:$0xff]
      %v545 = vld [vmem:[#allocation2 + $0x28] sm:$0xff]
      %v546 = vld [vmem:[#allocation2 + $0x30] sm:$0xff]
      %v547 = vld [vmem:[#allocation2 + $0x38] sm:$0xff]
      %v548 = vld [vmem:[#allocation2 + $0x40] sm:$0xff]
      %v549 = vld [vmem:[#allocation2 + $0x48] sm:$0xff]
      %v550 = vld [vmem:[#allocation2 + $0x50] sm:$0xff]
      %v551 = vld [vmem:[#allocation2 + $0x58] sm:$0xff]
      %v552 = vld [vmem:[#allocation2 + $0x60] sm:$0xff]
      %v553 = vld [vmem:[#allocation2 + $0x68] sm:$0xff]
      %v554 = vld [vmem:[#allocation2 + $0x70] sm:$0xff]
      %v555 = vld [vmem:[#allocation2 + $0x78] sm:$0xff]
      %vm556 = vsmask.f32 3328
      %vm557 = vsmask.f32 7440
      %vm558 = vmor %vm556, %vm557
      %v560 = vshrl.u32 %v516, 16
      %v562 = vrot.slane %v560, 4
      %v563 = vshll.u32 %v516, 16
      %v565 = vrot.slane %v563, 5
      %v566 = vor.u32 %v562, %v565
      %v567 = vrot.slane %v566, 4
      %v569 = vshll.u32 %v517, 16
      %v571 = vrot.slane %v569, 5
      %v572 = vsel %vm558, %v567, %v571
      %v573 = vshrl.u32 %v517, 16
      %v575 = vrot.slane %v573, 4
      %v576 = vor.u32 %v575, %v571
      %v577 = vrot.slane %v576, 4
      %v579 = vshll.u32 %v518, 16
      %v581 = vrot.slane %v579, 5
      %v582 = vsel %vm558, %v577, %v581
      %v584 = vshrl.u32 %v519, 16
      %v586 = vrot.slane %v584, 4
      %v587 = vshll.u32 %v519, 16
      %v589 = vrot.slane %v587, 5
      %v590 = vor.u32 %v586, %v589
      %v591 = vrot.slane %v590, 4
      %v593 = vshll.u32 %v520, 16
      %v595 = vrot.slane %v593, 5
      %v596 = vsel %vm558, %v591, %v595
      %v597 = vshrl.u32 %v520, 16
      %v599 = vrot.slane %v597, 4
      %v600 = vor.u32 %v599, %v595
      %v601 = vrot.slane %v600, 4
      %v603 = vshll.u32 %v521, 16
      %v605 = vrot.slane %v603, 5
      %v606 = vsel %vm558, %v601, %v605
      %v608 = vshrl.u32 %v522, 16
      %v610 = vrot.slane %v608, 4
      %v611 = vshll.u32 %v522, 16
      %v613 = vrot.slane %v611, 5
      %v614 = vor.u32 %v610, %v613
      %v615 = vrot.slane %v614, 4
      %v617 = vshll.u32 %v523, 16
      %v619 = vrot.slane %v617, 5
      %v620 = vsel %vm558, %v615, %v619
      %v621 = vshrl.u32 %v523, 16
      %v623 = vrot.slane %v621, 4
      %v624 = vor.u32 %v623, %v619
      %v625 = vrot.slane %v624, 4
      %v627 = vshll.u32 %v524, 16
      %v629 = vrot.slane %v627, 5
      %v630 = vsel %vm558, %v625, %v629
      %v632 = vshrl.u32 %v525, 16
      %v634 = vrot.slane %v632, 4
      %v635 = vshll.u32 %v525, 16
      %v637 = vrot.slane %v635, 5
      %v638 = vor.u32 %v634, %v637
      %v639 = vrot.slane %v638, 4
      %v641 = vshll.u32 %v526, 16
      %v643 = vrot.slane %v641, 5
      %v644 = vsel %vm558, %v639, %v643
      %v645 = vshrl.u32 %v526, 16
      %v647 = vrot.slane %v645, 4
      %v648 = vor.u32 %v647, %v643
      %v649 = vrot.slane %v648, 4
      %v651 = vshll.u32 %v527, 16
      %v653 = vrot.slane %v651, 5
      %v654 = vsel %vm558, %v649, %v653
      %v656 = vshrl.u32 %v528, 16
      %v658 = vrot.slane %v656, 4
      %v659 = vshll.u32 %v528, 16
      %v661 = vrot.slane %v659, 5
      %v662 = vor.u32 %v658, %v661
      %v663 = vrot.slane %v662, 4
      %v665 = vshll.u32 %v529, 16
      %v667 = vrot.slane %v665, 5
      %v668 = vsel %vm558, %v663, %v667
      %v669 = vshrl.u32 %v529, 16
      %v671 = vrot.slane %v669, 4
      %v672 = vor.u32 %v671, %v667
      %v673 = vrot.slane %v672, 4
      %v675 = vshll.u32 %v530, 16
      %v677 = vrot.slane %v675, 5
      %v678 = vsel %vm558, %v673, %v677
      %v680 = vshrl.u32 %v531, 16
      %v682 = vrot.slane %v680, 4
      %v683 = vshll.u32 %v531, 16
      %v685 = vrot.slane %v683, 5
      %v686 = vor.u32 %v682, %v685
      %v687 = vrot.slane %v686, 4
      %v689 = vshll.u32 %v532, 16
      %v691 = vrot.slane %v689, 5
      %v692 = vsel %vm558, %v687, %v691
      %v693 = vshrl.u32 %v532, 16
      %v695 = vrot.slane %v693, 4
      %v696 = vor.u32 %v695, %v691
      %v697 = vrot.slane %v696, 4
      %v699 = vshll.u32 %v533, 16
      %v701 = vrot.slane %v699, 5
      %v702 = vsel %vm558, %v697, %v701
      %v704 = vshrl.u32 %v534, 16
      %v706 = vrot.slane %v704, 4
      %v707 = vshll.u32 %v534, 16
      %v709 = vrot.slane %v707, 5
      %v710 = vor.u32 %v706, %v709
      %v711 = vrot.slane %v710, 4
      %v713 = vshll.u32 %v535, 16
      %v715 = vrot.slane %v713, 5
      %v716 = vsel %vm558, %v711, %v715
      %v717 = vshrl.u32 %v535, 16
      %v719 = vrot.slane %v717, 4
      %v720 = vor.u32 %v719, %v715
      %v721 = vrot.slane %v720, 4
      %v723 = vshll.u32 %v536, 16
      %v725 = vrot.slane %v723, 5
      %v726 = vsel %vm558, %v721, %v725
      %v728 = vshrl.u32 %v537, 16
      %v730 = vrot.slane %v728, 4
      %v731 = vshll.u32 %v537, 16
      %v733 = vrot.slane %v731, 5
      %v734 = vor.u32 %v730, %v733
      %v735 = vrot.slane %v734, 4
      %v737 = vshll.u32 %v538, 16
      %v739 = vrot.slane %v737, 5
      %v740 = vsel %vm558, %v735, %v739
      %v741 = vshrl.u32 %v538, 16
      %v743 = vrot.slane %v741, 4
      %v744 = vor.u32 %v743, %v739
      %v745 = vrot.slane %v744, 4
      %v747 = vshll.u32 %v539, 16
      %v749 = vrot.slane %v747, 5
      %v750 = vsel %vm558, %v745, %v749
      %v751 = vunpack.c.l.b16 %v572
      %v752 = vunpack.c.l.b16 %v582
      %v753 = vunpack.c.l.b16 %v596
      %v754 = vunpack.c.l.b16 %v606
      %v755 = vunpack.c.l.b16 %v620
      %v756 = vunpack.c.l.b16 %v630
      %v757 = vunpack.c.l.b16 %v644
      %v758 = vunpack.c.l.b16 %v654
      %v759 = vunpack.c.l.b16 %v668
      %v760 = vunpack.c.l.b16 %v678
      %v761 = vunpack.c.l.b16 %v692
      %v762 = vunpack.c.l.b16 %v702
      %v763 = vunpack.c.l.b16 %v716
      %v764 = vunpack.c.l.b16 %v726
      %v765 = vunpack.c.l.b16 %v740
      %v766 = vunpack.c.l.b16 %v750
      %v767 = vpack.c.b16 %v752, %v751
      %v768 = vpack.c.b16 %v754, %v753
      %v769 = vpack.c.b16 %v756, %v755
      %v770 = vpack.c.b16 %v758, %v757
      %v771 = vpack.c.b16 %v760, %v759
      %v772 = vpack.c.b16 %v762, %v761
      %v773 = vpack.c.b16 %v764, %v763
      %v774 = vpack.c.b16 %v766, %v765
      %v776 = vsel %vm401, %v767, 0
      %v779 = vsel %vm401, %v768, 0
      %v782 = vsel %vm401, %v769, 0
      %v785 = vsel %vm401, %v770, 0
      %v788 = vsel %vm401, %v771, 0
      %v791 = vsel %vm401, %v772, 0
      %v794 = vsel %vm401, %v773, 0
      %v797 = vsel %vm401, %v774, 0
      %v800 = vsel %vm426, %v515, 0
      %802 = vmatpush.bf16.msra.mxu0 0
      %803 = vmatpush.bf16.msra.mxu0 0
      %804 = vmatpush.bf16.msra.mxu0 0
      %805 = vmatpush.bf16.msra.mxu0 0
      %806 = vmatpush.bf16.msra.mxu0 0
      %807 = vmatpush.bf16.msra.mxu0 0
      %808 = vmatpush.bf16.msra.mxu0 0
      %809 = vmatpush.bf16.msra.mxu0 %v800
      %810 = vmatmul.bf16.gmra.mxu0 %v776
      %v811 = vpop.f32.mrf.mxu0
      %v812 = vadd.f32 0.0, %v811
      %v813 = vpop.f32.mrf.mxu0
      %v814 = vadd.f32 0.0, %v813
      %815 = vmatmul.bf16.gmra.mxu0 %v779
      %v816 = vpop.f32.mrf.mxu0
      %v817 = vadd.f32 0.0, %v816
      %v818 = vpop.f32.mrf.mxu0
      %v819 = vadd.f32 0.0, %v818
      %820 = vmatmul.bf16.gmra.mxu0 %v782
      %v821 = vpop.f32.mrf.mxu0
      %v822 = vadd.f32 0.0, %v821
      %v823 = vpop.f32.mrf.mxu0
      %v824 = vadd.f32 0.0, %v823
      %825 = vmatmul.bf16.gmra.mxu0 %v785
      %v826 = vpop.f32.mrf.mxu0
      %v827 = vadd.f32 0.0, %v826
      %v828 = vpop.f32.mrf.mxu0
      %v829 = vadd.f32 0.0, %v828
      %830 = vmatmul.bf16.gmra.mxu0 %v788
      %v831 = vpop.f32.mrf.mxu0
      %v832 = vadd.f32 0.0, %v831
      %v833 = vpop.f32.mrf.mxu0
      %v834 = vadd.f32 0.0, %v833
      %835 = vmatmul.bf16.gmra.mxu0 %v791
      %v836 = vpop.f32.mrf.mxu0
      %v837 = vadd.f32 0.0, %v836
      %v838 = vpop.f32.mrf.mxu0
      %v839 = vadd.f32 0.0, %v838
      %840 = vmatmul.bf16.gmra.mxu0 %v794
      %v841 = vpop.f32.mrf.mxu0
      %v842 = vadd.f32 0.0, %v841
      %v843 = vpop.f32.mrf.mxu0
      %v844 = vadd.f32 0.0, %v843
      %845 = vmatmul.bf16.gmra.mxu0 %v797
      %v846 = vpop.f32.mrf.mxu0
      %v847 = vadd.f32 0.0, %v846
      %v848 = vpop.f32.mrf.mxu0
      %v849 = vadd.f32 0.0, %v848
      %850 = vdwg.mxu0
      %v851 = vadd.f32 %v540, %v812
      %v852 = vadd.f32 %v541, %v814
      %v853 = vadd.f32 %v542, %v817
      %v854 = vadd.f32 %v543, %v819
      %v855 = vadd.f32 %v544, %v822
      %v856 = vadd.f32 %v545, %v824
      %v857 = vadd.f32 %v546, %v827
      %v858 = vadd.f32 %v547, %v829
      %v859 = vadd.f32 %v548, %v832
      %v860 = vadd.f32 %v549, %v834
      %v861 = vadd.f32 %v550, %v837
      %v862 = vadd.f32 %v551, %v839
      %v863 = vadd.f32 %v552, %v842
      %v864 = vadd.f32 %v553, %v844
      %v865 = vadd.f32 %v554, %v847
      %v866 = vadd.f32 %v555, %v849
      %867 = vst.msk [vmem:[#allocation2] sm:$0xff] %vm303, %v851
      %868 = vst.msk [vmem:[#allocation2 + $0x8] sm:$0xff] %vm303, %v852
      %869 = vst.msk [vmem:[#allocation2 + $0x10] sm:$0xff] %vm303, %v853
      %870 = vst.msk [vmem:[#allocation2 + $0x18] sm:$0xff] %vm303, %v854
      %871 = vst.msk [vmem:[#allocation2 + $0x20] sm:$0xff] %vm303, %v855
      %872 = vst.msk [vmem:[#allocation2 + $0x28] sm:$0xff] %vm303, %v856
      %873 = vst.msk [vmem:[#allocation2 + $0x30] sm:$0xff] %vm303, %v857
      %874 = vst.msk [vmem:[#allocation2 + $0x38] sm:$0xff] %vm303, %v858
      %875 = vst.msk [vmem:[#allocation2 + $0x40] sm:$0xff] %vm303, %v859
      %876 = vst.msk [vmem:[#allocation2 + $0x48] sm:$0xff] %vm303, %v860
      %877 = vst.msk [vmem:[#allocation2 + $0x50] sm:$0xff] %vm303, %v861
      %878 = vst.msk [vmem:[#allocation2 + $0x58] sm:$0xff] %vm303, %v862
      %879 = vst.msk [vmem:[#allocation2 + $0x60] sm:$0xff] %vm303, %v863
      %880 = vst.msk [vmem:[#allocation2 + $0x68] sm:$0xff] %vm303, %v864
      %881 = vst.msk [vmem:[#allocation2 + $0x70] sm:$0xff] %vm303, %v865
      %882 = vst.msk [vmem:[#allocation2 + $0x78] sm:$0xff] %vm303, %v866
      %s883 = scalar_lea.vmem %s1, 4
      %v884 = vld [vmem:[%s883] sm:$0x3]
      %v885 = vunpack.c.l.bf16 %v884
      %v886 = vmul.f32 %v885, %v320
      %v887 = vpack.c.bf16 %v886, %v886
      %v888 = vld [vmem:[%s328] sm:$0xe]
      %v889 = vld [vmem:[%s328 + $0x4] sm:$0xf]
      %v890 = vld [vmem:[%s328 + $0x8] sm:$0x1]
      %v891 = vld [vmem:[%s328 + $0xc] sm:$0xe]
      %v892 = vld [vmem:[%s328 + $0x10] sm:$0xf]
      %v893 = vld [vmem:[%s328 + $0x14] sm:$0x1]
      %v894 = vld [vmem:[%s328 + $0x18] sm:$0xe]
      %v895 = vld [vmem:[%s328 + $0x1c] sm:$0xf]
      %v896 = vld [vmem:[%s328 + $0x20] sm:$0x1]
      %v897 = vld [vmem:[%s328 + $0x24] sm:$0xe]
      %v898 = vld [vmem:[%s328 + $0x28] sm:$0xf]
      %v899 = vld [vmem:[%s328 + $0x2c] sm:$0x1]
      %v900 = vld [vmem:[%s328 + $0x30] sm:$0xe]
      %v901 = vld [vmem:[%s328 + $0x34] sm:$0xf]
      %v902 = vld [vmem:[%s328 + $0x38] sm:$0x1]
      %v903 = vld [vmem:[%s328 + $0x3c] sm:$0xe]
      %v904 = vld [vmem:[%s328 + $0x40] sm:$0xf]
      %v905 = vld [vmem:[%s328 + $0x44] sm:$0x1]
      %v906 = vld [vmem:[%s328 + $0x48] sm:$0xe]
      %v907 = vld [vmem:[%s328 + $0x4c] sm:$0xf]
      %v908 = vld [vmem:[%s328 + $0x50] sm:$0x1]
      %v909 = vld [vmem:[%s328 + $0x54] sm:$0xe]
      %v910 = vld [vmem:[%s328 + $0x58] sm:$0xf]
      %v911 = vld [vmem:[%s328 + $0x5c] sm:$0x1]
      %v912 = vld [vmem:[#allocation2] sm:$0xff]
      %v913 = vld [vmem:[#allocation2 + $0x8] sm:$0xff]
      %v914 = vld [vmem:[#allocation2 + $0x10] sm:$0xff]
      %v915 = vld [vmem:[#allocation2 + $0x18] sm:$0xff]
      %v916 = vld [vmem:[#allocation2 + $0x20] sm:$0xff]
      %v917 = vld [vmem:[#allocation2 + $0x28] sm:$0xff]
      %v918 = vld [vmem:[#allocation2 + $0x30] sm:$0xff]
      %v919 = vld [vmem:[#allocation2 + $0x38] sm:$0xff]
      %v920 = vld [vmem:[#allocation2 + $0x40] sm:$0xff]
      %v921 = vld [vmem:[#allocation2 + $0x48] sm:$0xff]
      %v922 = vld [vmem:[#allocation2 + $0x50] sm:$0xff]
      %v923 = vld [vmem:[#allocation2 + $0x58] sm:$0xff]
      %v924 = vld [vmem:[#allocation2 + $0x60] sm:$0xff]
      %v925 = vld [vmem:[#allocation2 + $0x68] sm:$0xff]
      %v926 = vld [vmem:[#allocation2 + $0x70] sm:$0xff]
      %v927 = vld [vmem:[#allocation2 + $0x78] sm:$0xff]
      %vm952 = vcmask 1042432
      %vm953 = vcmask 1046532
      %vm954 = vmor %vm952, %vm953
      %v955 = vrot.slane %v888, 5
      %v956 = vrot.slane %v955, 4
      %v957 = vrot.slane %v889, 5
      %v958 = vsel %vm954, %v956, %v957
      %v959 = vrot.slane %v957, 4
      %v960 = vrot.slane %v890, 5
      %v961 = vsel %vm954, %v959, %v960
      %v962 = vrot.slane %v891, 5
      %v963 = vrot.slane %v962, 4
      %v964 = vrot.slane %v892, 5
      %v965 = vsel %vm954, %v963, %v964
      %v966 = vrot.slane %v964, 4
      %v967 = vrot.slane %v893, 5
      %v968 = vsel %vm954, %v966, %v967
      %v969 = vrot.slane %v894, 5
      %v970 = vrot.slane %v969, 4
      %v971 = vrot.slane %v895, 5
      %v972 = vsel %vm954, %v970, %v971
      %v973 = vrot.slane %v971, 4
      %v974 = vrot.slane %v896, 5
      %v975 = vsel %vm954, %v973, %v974
      %v976 = vrot.slane %v897, 5
      %v977 = vrot.slane %v976, 4
      %v978 = vrot.slane %v898, 5
      %v979 = vsel %vm954, %v977, %v978
      %v980 = vrot.slane %v978, 4
      %v981 = vrot.slane %v899, 5
      %v982 = vsel %vm954, %v980, %v981
      %v983 = vrot.slane %v900, 5
      %v984 = vrot.slane %v983, 4
      %v985 = vrot.slane %v901, 5
      %v986 = vsel %vm954, %v984, %v985
      %v987 = vrot.slane %v985, 4
      %v988 = vrot.slane %v902, 5
      %v989 = vsel %vm954, %v987, %v988
      %v990 = vrot.slane %v903, 5
      %v991 = vrot.slane %v990, 4
      %v992 = vrot.slane %v904, 5
      %v993 = vsel %vm954, %v991, %v992
      %v994 = vrot.slane %v992, 4
      %v995 = vrot.slane %v905, 5
      %v996 = vsel %vm954, %v994, %v995
      %v997 = vrot.slane %v906, 5
      %v998 = vrot.slane %v997, 4
      %v999 = vrot.slane %v907, 5
      %v1000 = vsel %vm954, %v998, %v999
      %v1001 = vrot.slane %v999, 4
      %v1002 = vrot.slane %v908, 5
      %v1003 = vsel %vm954, %v1001, %v1002
      %v1004 = vrot.slane %v909, 5
      %v1005 = vrot.slane %v1004, 4
      %v1006 = vrot.slane %v910, 5
      %v1007 = vsel %vm954, %v1005, %v1006
      %v1008 = vrot.slane %v1006, 4
      %v1009 = vrot.slane %v911, 5
      %v1010 = vsel %vm954, %v1008, %v1009
      %v1011 = vunpack.c.l.b16 %v958
      %v1012 = vunpack.c.l.b16 %v961
      %v1013 = vunpack.c.l.b16 %v965
      %v1014 = vunpack.c.l.b16 %v968
      %v1015 = vunpack.c.l.b16 %v972
      %v1016 = vunpack.c.l.b16 %v975
      %v1017 = vunpack.c.l.b16 %v979
      %v1018 = vunpack.c.l.b16 %v982
      %v1019 = vunpack.c.l.b16 %v986
      %v1020 = vunpack.c.l.b16 %v989
      %v1021 = vunpack.c.l.b16 %v993
      %v1022 = vunpack.c.l.b16 %v996
      %v1023 = vunpack.c.l.b16 %v1000
      %v1024 = vunpack.c.l.b16 %v1003
      %v1025 = vunpack.c.l.b16 %v1007
      %v1026 = vunpack.c.l.b16 %v1010
      %v1027 = vpack.c.b16 %v1012, %v1011
      %v1028 = vpack.c.b16 %v1014, %v1013
      %v1029 = vpack.c.b16 %v1016, %v1015
      %v1030 = vpack.c.b16 %v1018, %v1017
      %v1031 = vpack.c.b16 %v1020, %v1019
      %v1032 = vpack.c.b16 %v1022, %v1021
      %v1033 = vpack.c.b16 %v1024, %v1023
      %v1034 = vpack.c.b16 %v1026, %v1025
      %v1036 = vsel %vm401, %v1027, 0
      %v1039 = vsel %vm401, %v1028, 0
      %v1042 = vsel %vm401, %v1029, 0
      %v1045 = vsel %vm401, %v1030, 0
      %v1048 = vsel %vm401, %v1031, 0
      %v1051 = vsel %vm401, %v1032, 0
      %v1054 = vsel %vm401, %v1033, 0
      %v1057 = vsel %vm401, %v1034, 0
      %v1060 = vsel %vm426, %v887, 0
      %1062 = vmatpush.bf16.msra.mxu0 0
      %1063 = vmatpush.bf16.msra.mxu0 0
      %1064 = vmatpush.bf16.msra.mxu0 0
      %1065 = vmatpush.bf16.msra.mxu0 0
      %1066 = vmatpush.bf16.msra.mxu0 0
      %1067 = vmatpush.bf16.msra.mxu0 0
      %1068 = vmatpush.bf16.msra.mxu0 0
      %1069 = vmatpush.bf16.msra.mxu0 %v1060
      %1070 = vmatmul.bf16.gmra.mxu0 %v1036
      %v1071 = vpop.f32.mrf.mxu0
      %v1072 = vadd.f32 0.0, %v1071
      %v1073 = vpop.f32.mrf.mxu0
      %v1074 = vadd.f32 0.0, %v1073
      %1075 = vmatmul.bf16.gmra.mxu0 %v1039
      %v1076 = vpop.f32.mrf.mxu0
      %v1077 = vadd.f32 0.0, %v1076
      %v1078 = vpop.f32.mrf.mxu0
      %v1079 = vadd.f32 0.0, %v1078
      %1080 = vmatmul.bf16.gmra.mxu0 %v1042
      %v1081 = vpop.f32.mrf.mxu0
      %v1082 = vadd.f32 0.0, %v1081
      %v1083 = vpop.f32.mrf.mxu0
      %v1084 = vadd.f32 0.0, %v1083
      %1085 = vmatmul.bf16.gmra.mxu0 %v1045
      %v1086 = vpop.f32.mrf.mxu0
      %v1087 = vadd.f32 0.0, %v1086
      %v1088 = vpop.f32.mrf.mxu0
      %v1089 = vadd.f32 0.0, %v1088
      %1090 = vmatmul.bf16.gmra.mxu0 %v1048
      %v1091 = vpop.f32.mrf.mxu0
      %v1092 = vadd.f32 0.0, %v1091
      %v1093 = vpop.f32.mrf.mxu0
      %v1094 = vadd.f32 0.0, %v1093
      %1095 = vmatmul.bf16.gmra.mxu0 %v1051
      %v1096 = vpop.f32.mrf.mxu0
      %v1097 = vadd.f32 0.0, %v1096
      %v1098 = vpop.f32.mrf.mxu0
      %v1099 = vadd.f32 0.0, %v1098
      %1100 = vmatmul.bf16.gmra.mxu0 %v1054
      %v1101 = vpop.f32.mrf.mxu0
      %v1102 = vadd.f32 0.0, %v1101
      %v1103 = vpop.f32.mrf.mxu0
      %v1104 = vadd.f32 0.0, %v1103
      %1105 = vmatmul.bf16.gmra.mxu0 %v1057
      %v1106 = vpop.f32.mrf.mxu0
      %v1107 = vadd.f32 0.0, %v1106
      %v1108 = vpop.f32.mrf.mxu0
      %v1109 = vadd.f32 0.0, %v1108
      %1110 = vdwg.mxu0
      %v1111 = vadd.f32 %v912, %v1072
      %v1112 = vadd.f32 %v913, %v1074
      %v1113 = vadd.f32 %v914, %v1077
      %v1114 = vadd.f32 %v915, %v1079
      %v1115 = vadd.f32 %v916, %v1082
      %v1116 = vadd.f32 %v917, %v1084
      %v1117 = vadd.f32 %v918, %v1087
      %v1118 = vadd.f32 %v919, %v1089
      %v1119 = vadd.f32 %v920, %v1092
      %v1120 = vadd.f32 %v921, %v1094
      %v1121 = vadd.f32 %v922, %v1097
      %v1122 = vadd.f32 %v923, %v1099
      %v1123 = vadd.f32 %v924, %v1102
      %v1124 = vadd.f32 %v925, %v1104
      %v1125 = vadd.f32 %v926, %v1107
      %v1126 = vadd.f32 %v927, %v1109
      %1127 = vst.msk [vmem:[#allocation2] sm:$0xff] %vm303, %v1111
      %1128 = vst.msk [vmem:[#allocation2 + $0x8] sm:$0xff] %vm303, %v1112
      %1129 = vst.msk [vmem:[#allocation2 + $0x10] sm:$0xff] %vm303, %v1113
      %1130 = vst.msk [vmem:[#allocation2 + $0x18] sm:$0xff] %vm303, %v1114
      %1131 = vst.msk [vmem:[#allocation2 + $0x20] sm:$0xff] %vm303, %v1115
      %1132 = vst.msk [vmem:[#allocation2 + $0x28] sm:$0xff] %vm303, %v1116
      %1133 = vst.msk [vmem:[#allocation2 + $0x30] sm:$0xff] %vm303, %v1117
      %1134 = vst.msk [vmem:[#allocation2 + $0x38] sm:$0xff] %vm303, %v1118
      %1135 = vst.msk [vmem:[#allocation2 + $0x40] sm:$0xff] %vm303, %v1119
      %1136 = vst.msk [vmem:[#allocation2 + $0x48] sm:$0xff] %vm303, %v1120
      %1137 = vst.msk [vmem:[#allocation2 + $0x50] sm:$0xff] %vm303, %v1121
      %1138 = vst.msk [vmem:[#allocation2 + $0x58] sm:$0xff] %vm303, %v1122
      %1139 = vst.msk [vmem:[#allocation2 + $0x60] sm:$0xff] %vm303, %v1123
      %1140 = vst.msk [vmem:[#allocation2 + $0x68] sm:$0xff] %vm303, %v1124
      %1141 = vst.msk [vmem:[#allocation2 + $0x70] sm:$0xff] %vm303, %v1125
      %1142 = vst.msk [vmem:[#allocation2 + $0x78] sm:$0xff] %vm303, %v1126
      %s1143 = sadd.s32 %s321, 1
      %s1144 = scalar_lea.vmem %s1, 6
      %v1145 = vld [vmem:[%s1144] sm:$0x3]
      %v1146 = vunpack.c.l.bf16 %v1145
      %v1147 = vmul.f32 %v1146, %v320
      %v1148 = vpack.c.bf16 %v1147, %v1147
      %s1149 = smul.u32 %s1143, 3
      %s1150 = smul.addr %s1149, 4
      %s1151 = scalar_lea.vmem %s273, %s1150
      %v1152 = vld [vmem:[%s1151] sm:$0xf]
      %v1153 = vld [vmem:[%s1151 + $0x4] sm:$0xf]
      %v1154 = vld [vmem:[%s1151 + $0xc] sm:$0xf]
      %v1155 = vld [vmem:[%s1151 + $0x10] sm:$0xf]
      %v1156 = vld [vmem:[%s1151 + $0x18] sm:$0xf]
      %v1157 = vld [vmem:[%s1151 + $0x1c] sm:$0xf]
      %v1158 = vld [vmem:[%s1151 + $0x24] sm:$0xf]
      %v1159 = vld [vmem:[%s1151 + $0x28] sm:$0xf]
      %v1160 = vld [vmem:[%s1151 + $0x30] sm:$0xf]
      %v1161 = vld [vmem:[%s1151 + $0x34] sm:$0xf]
      %v1162 = vld [vmem:[%s1151 + $0x3c] sm:$0xf]
      %v1163 = vld [vmem:[%s1151 + $0x40] sm:$0xf]
      %v1164 = vld [vmem:[%s1151 + $0x48] sm:$0xf]
      %v1165 = vld [vmem:[%s1151 + $0x4c] sm:$0xf]
      %v1166 = vld [vmem:[%s1151 + $0x54] sm:$0xf]
      %v1167 = vld [vmem:[%s1151 + $0x58] sm:$0xf]
      %v1168 = vld [vmem:[#allocation2] sm:$0xff]
      %v1169 = vld [vmem:[#allocation2 + $0x8] sm:$0xff]
      %v1170 = vld [vmem:[#allocation2 + $0x10] sm:$0xff]
      %v1171 = vld [vmem:[#allocation2 + $0x18] sm:$0xff]
      %v1172 = vld [vmem:[#allocation2 + $0x20] sm:$0xff]
      %v1173 = vld [vmem:[#allocation2 + $0x28] sm:$0xff]
      %v1174 = vld [vmem:[#allocation2 + $0x30] sm:$0xff]
      %v1175 = vld [vmem:[#allocation2 + $0x38] sm:$0xff]
      %v1176 = vld [vmem:[#allocation2 + $0x40] sm:$0xff]
      %v1177 = vld [vmem:[#allocation2 + $0x48] sm:$0xff]
      %v1178 = vld [vmem:[#allocation2 + $0x50] sm:$0xff]
      %v1179 = vld [vmem:[#allocation2 + $0x58] sm:$0xff]
      %v1180 = vld [vmem:[#allocation2 + $0x60] sm:$0xff]
      %v1181 = vld [vmem:[#allocation2 + $0x68] sm:$0xff]
      %v1182 = vld [vmem:[#allocation2 + $0x70] sm:$0xff]
      %v1183 = vld [vmem:[#allocation2 + $0x78] sm:$0xff]
      %v1200 = vunpack.c.l.b16 %v1152
      %v1201 = vunpack.c.l.b16 %v1153
      %v1202 = vunpack.c.l.b16 %v1154
      %v1203 = vunpack.c.l.b16 %v1155
      %v1204 = vunpack.c.l.b16 %v1156
      %v1205 = vunpack.c.l.b16 %v1157
      %v1206 = vunpack.c.l.b16 %v1158
      %v1207 = vunpack.c.l.b16 %v1159
      %v1208 = vunpack.c.l.b16 %v1160
      %v1209 = vunpack.c.l.b16 %v1161
      %v1210 = vunpack.c.l.b16 %v1162
      %v1211 = vunpack.c.l.b16 %v1163
      %v1212 = vunpack.c.l.b16 %v1164
      %v1213 = vunpack.c.l.b16 %v1165
      %v1214 = vunpack.c.l.b16 %v1166
      %v1215 = vunpack.c.l.b16 %v1167
      %v1216 = vpack.c.b16 %v1201, %v1200
      %v1217 = vpack.c.b16 %v1203, %v1202
      %v1218 = vpack.c.b16 %v1205, %v1204
      %v1219 = vpack.c.b16 %v1207, %v1206
      %v1220 = vpack.c.b16 %v1209, %v1208
      %v1221 = vpack.c.b16 %v1211, %v1210
      %v1222 = vpack.c.b16 %v1213, %v1212
      %v1223 = vpack.c.b16 %v1215, %v1214
      %v1225 = vsel %vm401, %v1216, 0
      %v1228 = vsel %vm401, %v1217, 0
      %v1231 = vsel %vm401, %v1218, 0
      %v1234 = vsel %vm401, %v1219, 0
      %v1237 = vsel %vm401, %v1220, 0
      %v1240 = vsel %vm401, %v1221, 0
      %v1243 = vsel %vm401, %v1222, 0
      %v1246 = vsel %vm401, %v1223, 0
      %v1249 = vsel %vm426, %v1148, 0
      %1251 = vmatpush.bf16.msra.mxu0 0
      %1252 = vmatpush.bf16.msra.mxu0 0
      %1253 = vmatpush.bf16.msra.mxu0 0
      %1254 = vmatpush.bf16.msra.mxu0 0
      %1255 = vmatpush.bf16.msra.mxu0 0
      %1256 = vmatpush.bf16.msra.mxu0 0
      %1257 = vmatpush.bf16.msra.mxu0 0
      %1258 = vmatpush.bf16.msra.mxu0 %v1249
      %1259 = vmatmul.bf16.gmra.mxu0 %v1225
      %v1260 = vpop.f32.mrf.mxu0
      %v1261 = vadd.f32 0.0, %v1260
      %v1262 = vpop.f32.mrf.mxu0
      %v1263 = vadd.f32 0.0, %v1262
      %1264 = vmatmul.bf16.gmra.mxu0 %v1228
      %v1265 = vpop.f32.mrf.mxu0
      %v1266 = vadd.f32 0.0, %v1265
      %v1267 = vpop.f32.mrf.mxu0
      %v1268 = vadd.f32 0.0, %v1267
      %1269 = vmatmul.bf16.gmra.mxu0 %v1231
      %v1270 = vpop.f32.mrf.mxu0
      %v1271 = vadd.f32 0.0, %v1270
      %v1272 = vpop.f32.mrf.mxu0
      %v1273 = vadd.f32 0.0, %v1272
      %1274 = vmatmul.bf16.gmra.mxu0 %v1234
      %v1275 = vpop.f32.mrf.mxu0
      %v1276 = vadd.f32 0.0, %v1275
      %v1277 = vpop.f32.mrf.mxu0
      %v1278 = vadd.f32 0.0, %v1277
      %1279 = vmatmul.bf16.gmra.mxu0 %v1237
      %v1280 = vpop.f32.mrf.mxu0
      %v1281 = vadd.f32 0.0, %v1280
      %v1282 = vpop.f32.mrf.mxu0
      %v1283 = vadd.f32 0.0, %v1282
      %1284 = vmatmul.bf16.gmra.mxu0 %v1240
      %v1285 = vpop.f32.mrf.mxu0
      %v1286 = vadd.f32 0.0, %v1285
      %v1287 = vpop.f32.mrf.mxu0
      %v1288 = vadd.f32 0.0, %v1287
      %1289 = vmatmul.bf16.gmra.mxu0 %v1243
      %v1290 = vpop.f32.mrf.mxu0
      %v1291 = vadd.f32 0.0, %v1290
      %v1292 = vpop.f32.mrf.mxu0
      %v1293 = vadd.f32 0.0, %v1292
      %1294 = vmatmul.bf16.gmra.mxu0 %v1246
      %v1295 = vpop.f32.mrf.mxu0
      %v1296 = vadd.f32 0.0, %v1295
      %v1297 = vpop.f32.mrf.mxu0
      %v1298 = vadd.f32 0.0, %v1297
      %1299 = vdwg.mxu0
      %v1300 = vadd.f32 %v1168, %v1261
      %v1301 = vadd.f32 %v1169, %v1263
      %v1302 = vadd.f32 %v1170, %v1266
      %v1303 = vadd.f32 %v1171, %v1268
      %v1304 = vadd.f32 %v1172, %v1271
      %v1305 = vadd.f32 %v1173, %v1273
      %v1306 = vadd.f32 %v1174, %v1276
      %v1307 = vadd.f32 %v1175, %v1278
      %v1308 = vadd.f32 %v1176, %v1281
      %v1309 = vadd.f32 %v1177, %v1283
      %v1310 = vadd.f32 %v1178, %v1286
      %v1311 = vadd.f32 %v1179, %v1288
      %v1312 = vadd.f32 %v1180, %v1291
      %v1313 = vadd.f32 %v1181, %v1293
      %v1314 = vadd.f32 %v1182, %v1296
      %v1315 = vadd.f32 %v1183, %v1298
      %1316 = vst.msk [vmem:[#allocation2] sm:$0xff] %vm303, %v1300
      %1317 = vst.msk [vmem:[#allocation2 + $0x8] sm:$0xff] %vm303, %v1301
      %1318 = vst.msk [vmem:[#allocation2 + $0x10] sm:$0xff] %vm303, %v1302
      %1319 = vst.msk [vmem:[#allocation2 + $0x18] sm:$0xff] %vm303, %v1303
      %1320 = vst.msk [vmem:[#allocation2 + $0x20] sm:$0xff] %vm303, %v1304
      %1321 = vst.msk [vmem:[#allocation2 + $0x28] sm:$0xff] %vm303, %v1305
      %1322 = vst.msk [vmem:[#allocation2 + $0x30] sm:$0xff] %vm303, %v1306
      %1323 = vst.msk [vmem:[#allocation2 + $0x38] sm:$0xff] %vm303, %v1307
      %1324 = vst.msk [vmem:[#allocation2 + $0x40] sm:$0xff] %vm303, %v1308
      %1325 = vst.msk [vmem:[#allocation2 + $0x48] sm:$0xff] %vm303, %v1309
      %1326 = vst.msk [vmem:[#allocation2 + $0x50] sm:$0xff] %vm303, %v1310
      %1327 = vst.msk [vmem:[#allocation2 + $0x58] sm:$0xff] %vm303, %v1311
      %1328 = vst.msk [vmem:[#allocation2 + $0x60] sm:$0xff] %vm303, %v1312
      %1329 = vst.msk [vmem:[#allocation2 + $0x68] sm:$0xff] %vm303, %v1313
      %1330 = vst.msk [vmem:[#allocation2 + $0x70] sm:$0xff] %vm303, %v1314
      %1331 = vst.msk [vmem:[#allocation2 + $0x78] sm:$0xff] %vm303, %v1315
      %s1332 = scalar_lea.vmem %s1, 8
      %v1333 = vld [vmem:[%s1332] sm:$0x3]
      %v1334 = vunpack.c.l.bf16 %v1333
      %v1335 = vmul.f32 %v1334, %v320
      %v1336 = vpack.c.bf16 %v1335, %v1335
      %v1337 = vld [vmem:[%s1151] sm:$0xf]
      %v1338 = vld [vmem:[%s1151 + $0x4] sm:$0xf]
      %v1339 = vld [vmem:[%s1151 + $0x8] sm:$0x1]
      %v1340 = vld [vmem:[%s1151 + $0xc] sm:$0xf]
      %v1341 = vld [vmem:[%s1151 + $0x10] sm:$0xf]
      %v1342 = vld [vmem:[%s1151 + $0x14] sm:$0x1]
      %v1343 = vld [vmem:[%s1151 + $0x18] sm:$0xf]
      %v1344 = vld [vmem:[%s1151 + $0x1c] sm:$0xf]
      %v1345 = vld [vmem:[%s1151 + $0x20] sm:$0x1]
      %v1346 = vld [vmem:[%s1151 + $0x24] sm:$0xf]
      %v1347 = vld [vmem:[%s1151 + $0x28] sm:$0xf]
      %v1348 = vld [vmem:[%s1151 + $0x2c] sm:$0x1]
      %v1349 = vld [vmem:[%s1151 + $0x30] sm:$0xf]
      %v1350 = vld [vmem:[%s1151 + $0x34] sm:$0xf]
      %v1351 = vld [vmem:[%s1151 + $0x38] sm:$0x1]
      %v1352 = vld [vmem:[%s1151 + $0x3c] sm:$0xf]
      %v1353 = vld [vmem:[%s1151 + $0x40] sm:$0xf]
      %v1354 = vld [vmem:[%s1151 + $0x44] sm:$0x1]
      %v1355 = vld [vmem:[%s1151 + $0x48] sm:$0xf]
      %v1356 = vld [vmem:[%s1151 + $0x4c] sm:$0xf]
      %v1357 = vld [vmem:[%s1151 + $0x50] sm:$0x1]
      %v1358 = vld [vmem:[%s1151 + $0x54] sm:$0xf]
      %v1359 = vld [vmem:[%s1151 + $0x58] sm:$0xf]
      %v1360 = vld [vmem:[%s1151 + $0x5c] sm:$0x1]
      %v1361 = vld [vmem:[#allocation2] sm:$0xff]
      %v1362 = vld [vmem:[#allocation2 + $0x8] sm:$0xff]
      %v1363 = vld [vmem:[#allocation2 + $0x10] sm:$0xff]
      %v1364 = vld [vmem:[#allocation2 + $0x18] sm:$0xff]
      %v1365 = vld [vmem:[#allocation2 + $0x20] sm:$0xff]
      %v1366 = vld [vmem:[#allocation2 + $0x28] sm:$0xff]
      %v1367 = vld [vmem:[#allocation2 + $0x30] sm:$0xff]
      %v1368 = vld [vmem:[#allocation2 + $0x38] sm:$0xff]
      %v1369 = vld [vmem:[#allocation2 + $0x40] sm:$0xff]
      %v1370 = vld [vmem:[#allocation2 + $0x48] sm:$0xff]
      %v1371 = vld [vmem:[#allocation2 + $0x50] sm:$0xff]
      %v1372 = vld [vmem:[#allocation2 + $0x58] sm:$0xff]
      %v1373 = vld [vmem:[#allocation2 + $0x60] sm:$0xff]
      %v1374 = vld [vmem:[#allocation2 + $0x68] sm:$0xff]
      %v1375 = vld [vmem:[#allocation2 + $0x70] sm:$0xff]
      %v1376 = vld [vmem:[#allocation2 + $0x78] sm:$0xff]
      %v1378 = vshrl.u32 %v1337, 16
      %v1380 = vrot.slane %v1378, 4
      %v1381 = vshll.u32 %v1337, 16
      %v1383 = vrot.slane %v1381, 5
      %v1384 = vor.u32 %v1380, %v1383
      %v1385 = vrot.slane %v1384, 4
      %v1387 = vshll.u32 %v1338, 16
      %v1389 = vrot.slane %v1387, 5
      %v1390 = vsel %vm558, %v1385, %v1389
      %v1391 = vshrl.u32 %v1338, 16
      %v1393 = vrot.slane %v1391, 4
      %v1394 = vor.u32 %v1393, %v1389
      %v1395 = vrot.slane %v1394, 4
      %v1397 = vshll.u32 %v1339, 16
      %v1399 = vrot.slane %v1397, 5
      %v1400 = vsel %vm558, %v1395, %v1399
      %v1402 = vshrl.u32 %v1340, 16
      %v1404 = vrot.slane %v1402, 4
      %v1405 = vshll.u32 %v1340, 16
      %v1407 = vrot.slane %v1405, 5
      %v1408 = vor.u32 %v1404, %v1407
      %v1409 = vrot.slane %v1408, 4
      %v1411 = vshll.u32 %v1341, 16
      %v1413 = vrot.slane %v1411, 5
      %v1414 = vsel %vm558, %v1409, %v1413
      %v1415 = vshrl.u32 %v1341, 16
      %v1417 = vrot.slane %v1415, 4
      %v1418 = vor.u32 %v1417, %v1413
      %v1419 = vrot.slane %v1418, 4
      %v1421 = vshll.u32 %v1342, 16
      %v1423 = vrot.slane %v1421, 5
      %v1424 = vsel %vm558, %v1419, %v1423
      %v1426 = vshrl.u32 %v1343, 16
      %v1428 = vrot.slane %v1426, 4
      %v1429 = vshll.u32 %v1343, 16
      %v1431 = vrot.slane %v1429, 5
      %v1432 = vor.u32 %v1428, %v1431
      %v1433 = vrot.slane %v1432, 4
      %v1435 = vshll.u32 %v1344, 16
      %v1437 = vrot.slane %v1435, 5
      %v1438 = vsel %vm558, %v1433, %v1437
      %v1439 = vshrl.u32 %v1344, 16
      %v1441 = vrot.slane %v1439, 4
      %v1442 = vor.u32 %v1441, %v1437
      %v1443 = vrot.slane %v1442, 4
      %v1445 = vshll.u32 %v1345, 16
      %v1447 = vrot.slane %v1445, 5
      %v1448 = vsel %vm558, %v1443, %v1447
      %v1450 = vshrl.u32 %v1346, 16
      %v1452 = vrot.slane %v1450, 4
      %v1453 = vshll.u32 %v1346, 16
      %v1455 = vrot.slane %v1453, 5
      %v1456 = vor.u32 %v1452, %v1455
      %v1457 = vrot.slane %v1456, 4
      %v1459 = vshll.u32 %v1347, 16
      %v1461 = vrot.slane %v1459, 5
      %v1462 = vsel %vm558, %v1457, %v1461
      %v1463 = vshrl.u32 %v1347, 16
      %v1465 = vrot.slane %v1463, 4
      %v1466 = vor.u32 %v1465, %v1461
      %v1467 = vrot.slane %v1466, 4
      %v1469 = vshll.u32 %v1348, 16
      %v1471 = vrot.slane %v1469, 5
      %v1472 = vsel %vm558, %v1467, %v1471
      %v1474 = vshrl.u32 %v1349, 16
      %v1476 = vrot.slane %v1474, 4
      %v1477 = vshll.u32 %v1349, 16
      %v1479 = vrot.slane %v1477, 5
      %v1480 = vor.u32 %v1476, %v1479
      %v1481 = vrot.slane %v1480, 4
      %v1483 = vshll.u32 %v1350, 16
      %v1485 = vrot.slane %v1483, 5
      %v1486 = vsel %vm558, %v1481, %v1485
      %v1487 = vshrl.u32 %v1350, 16
      %v1489 = vrot.slane %v1487, 4
      %v1490 = vor.u32 %v1489, %v1485
      %v1491 = vrot.slane %v1490, 4
      %v1493 = vshll.u32 %v1351, 16
      %v1495 = vrot.slane %v1493, 5
      %v1496 = vsel %vm558, %v1491, %v1495
      %v1498 = vshrl.u32 %v1352, 16
      %v1500 = vrot.slane %v1498, 4
      %v1501 = vshll.u32 %v1352, 16
      %v1503 = vrot.slane %v1501, 5
      %v1504 = vor.u32 %v1500, %v1503
      %v1505 = vrot.slane %v1504, 4
      %v1507 = vshll.u32 %v1353, 16
      %v1509 = vrot.slane %v1507, 5
      %v1510 = vsel %vm558, %v1505, %v1509
      %v1511 = vshrl.u32 %v1353, 16
      %v1513 = vrot.slane %v1511, 4
      %v1514 = vor.u32 %v1513, %v1509
      %v1515 = vrot.slane %v1514, 4
      %v1517 = vshll.u32 %v1354, 16
      %v1519 = vrot.slane %v1517, 5
      %v1520 = vsel %vm558, %v1515, %v1519
      %v1522 = vshrl.u32 %v1355, 16
      %v1524 = vrot.slane %v1522, 4
      %v1525 = vshll.u32 %v1355, 16
      %v1527 = vrot.slane %v1525, 5
      %v1528 = vor.u32 %v1524, %v1527
      %v1529 = vrot.slane %v1528, 4
      %v1531 = vshll.u32 %v1356, 16
      %v1533 = vrot.slane %v1531, 5
      %v1534 = vsel %vm558, %v1529, %v1533
      %v1535 = vshrl.u32 %v1356, 16
      %v1537 = vrot.slane %v1535, 4
      %v1538 = vor.u32 %v1537, %v1533
      %v1539 = vrot.slane %v1538, 4
      %v1541 = vshll.u32 %v1357, 16
      %v1543 = vrot.slane %v1541, 5
      %v1544 = vsel %vm558, %v1539, %v1543
      %v1546 = vshrl.u32 %v1358, 16
      %v1548 = vrot.slane %v1546, 4
      %v1549 = vshll.u32 %v1358, 16
      %v1551 = vrot.slane %v1549, 5
      %v1552 = vor.u32 %v1548, %v1551
      %v1553 = vrot.slane %v1552, 4
      %v1555 = vshll.u32 %v1359, 16
      %v1557 = vrot.slane %v1555, 5
      %v1558 = vsel %vm558, %v1553, %v1557
      %v1559 = vshrl.u32 %v1359, 16
      %v1561 = vrot.slane %v1559, 4
      %v1562 = vor.u32 %v1561, %v1557
      %v1563 = vrot.slane %v1562, 4
      %v1565 = vshll.u32 %v1360, 16
      %v1567 = vrot.slane %v1565, 5
      %v1568 = vsel %vm558, %v1563, %v1567
      %v1569 = vunpack.c.l.b16 %v1390
      %v1570 = vunpack.c.l.b16 %v1400
      %v1571 = vunpack.c.l.b16 %v1414
      %v1572 = vunpack.c.l.b16 %v1424
      %v1573 = vunpack.c.l.b16 %v1438
      %v1574 = vunpack.c.l.b16 %v1448
      %v1575 = vunpack.c.l.b16 %v1462
      %v1576 = vunpack.c.l.b16 %v1472
      %v1577 = vunpack.c.l.b16 %v1486
      %v1578 = vunpack.c.l.b16 %v1496
      %v1579 = vunpack.c.l.b16 %v1510
      %v1580 = vunpack.c.l.b16 %v1520
      %v1581 = vunpack.c.l.b16 %v1534
      %v1582 = vunpack.c.l.b16 %v1544
      %v1583 = vunpack.c.l.b16 %v1558
      %v1584 = vunpack.c.l.b16 %v1568
      %v1585 = vpack.c.b16 %v1570, %v1569
      %v1586 = vpack.c.b16 %v1572, %v1571
      %v1587 = vpack.c.b16 %v1574, %v1573
      %v1588 = vpack.c.b16 %v1576, %v1575
      %v1589 = vpack.c.b16 %v1578, %v1577
      %v1590 = vpack.c.b16 %v1580, %v1579
      %v1591 = vpack.c.b16 %v1582, %v1581
      %v1592 = vpack.c.b16 %v1584, %v1583
      %v1594 = vsel %vm401, %v1585, 0
      %v1597 = vsel %vm401, %v1586, 0
      %v1600 = vsel %vm401, %v1587, 0
      %v1603 = vsel %vm401, %v1588, 0
      %v1606 = vsel %vm401, %v1589, 0
      %v1609 = vsel %vm401, %v1590, 0
      %v1612 = vsel %vm401, %v1591, 0
      %v1615 = vsel %vm401, %v1592, 0
      %v1618 = vsel %vm426, %v1336, 0
      %1620 = vmatpush.bf16.msra.mxu0 0
      %1621 = vmatpush.bf16.msra.mxu0 0
      %1622 = vmatpush.bf16.msra.mxu0 0
      %1623 = vmatpush.bf16.msra.mxu0 0
      %1624 = vmatpush.bf16.msra.mxu0 0
      %1625 = vmatpush.bf16.msra.mxu0 0
      %1626 = vmatpush.bf16.msra.mxu0 0
      %1627 = vmatpush.bf16.msra.mxu0 %v1618
      %1628 = vmatmul.bf16.gmra.mxu0 %v1594
      %v1629 = vpop.f32.mrf.mxu0
      %v1630 = vadd.f32 0.0, %v1629
      %v1631 = vpop.f32.mrf.mxu0
      %v1632 = vadd.f32 0.0, %v1631
      %1633 = vmatmul.bf16.gmra.mxu0 %v1597
      %v1634 = vpop.f32.mrf.mxu0
      %v1635 = vadd.f32 0.0, %v1634
      %v1636 = vpop.f32.mrf.mxu0
      %v1637 = vadd.f32 0.0, %v1636
      %1638 = vmatmul.bf16.gmra.mxu0 %v1600
      %v1639 = vpop.f32.mrf.mxu0
      %v1640 = vadd.f32 0.0, %v1639
      %v1641 = vpop.f32.mrf.mxu0
      %v1642 = vadd.f32 0.0, %v1641
      %1643 = vmatmul.bf16.gmra.mxu0 %v1603
      %v1644 = vpop.f32.mrf.mxu0
      %v1645 = vadd.f32 0.0, %v1644
      %v1646 = vpop.f32.mrf.mxu0
      %v1647 = vadd.f32 0.0, %v1646
      %1648 = vmatmul.bf16.gmra.mxu0 %v1606
      %v1649 = vpop.f32.mrf.mxu0
      %v1650 = vadd.f32 0.0, %v1649
      %v1651 = vpop.f32.mrf.mxu0
      %v1652 = vadd.f32 0.0, %v1651
      %1653 = vmatmul.bf16.gmra.mxu0 %v1609
      %v1654 = vpop.f32.mrf.mxu0
      %v1655 = vadd.f32 0.0, %v1654
      %v1656 = vpop.f32.mrf.mxu0
      %v1657 = vadd.f32 0.0, %v1656
      %1658 = vmatmul.bf16.gmra.mxu0 %v1612
      %v1659 = vpop.f32.mrf.mxu0
      %v1660 = vadd.f32 0.0, %v1659
      %v1661 = vpop.f32.mrf.mxu0
      %v1662 = vadd.f32 0.0, %v1661
      %1663 = vmatmul.bf16.gmra.mxu0 %v1615
      %v1664 = vpop.f32.mrf.mxu0
      %v1665 = vadd.f32 0.0, %v1664
      %v1666 = vpop.f32.mrf.mxu0
      %v1667 = vadd.f32 0.0, %v1666
      %1668 = vdwg.mxu0
      %v1669 = vadd.f32 %v1361, %v1630
      %v1670 = vadd.f32 %v1362, %v1632
      %v1671 = vadd.f32 %v1363, %v1635
      %v1672 = vadd.f32 %v1364, %v1637
      %v1673 = vadd.f32 %v1365, %v1640
      %v1674 = vadd.f32 %v1366, %v1642
      %v1675 = vadd.f32 %v1367, %v1645
      %v1676 = vadd.f32 %v1368, %v1647
      %v1677 = vadd.f32 %v1369, %v1650
      %v1678 = vadd.f32 %v1370, %v1652
      %v1679 = vadd.f32 %v1371, %v1655
      %v1680 = vadd.f32 %v1372, %v1657
      %v1681 = vadd.f32 %v1373, %v1660
      %v1682 = vadd.f32 %v1374, %v1662
      %v1683 = vadd.f32 %v1375, %v1665
      %v1684 = vadd.f32 %v1376, %v1667
      %1685 = vst.msk [vmem:[#allocation2] sm:$0xff] %vm303, %v1669
      %1686 = vst.msk [vmem:[#allocation2 + $0x8] sm:$0xff] %vm303, %v1670
      %1687 = vst.msk [vmem:[#allocation2 + $0x10] sm:$0xff] %vm303, %v1671
      %1688 = vst.msk [vmem:[#allocation2 + $0x18] sm:$0xff] %vm303, %v1672
      %1689 = vst.msk [vmem:[#allocation2 + $0x20] sm:$0xff] %vm303, %v1673
      %1690 = vst.msk [vmem:[#allocation2 + $0x28] sm:$0xff] %vm303, %v1674
      %1691 = vst.msk [vmem:[#allocation2 + $0x30] sm:$0xff] %vm303, %v1675
      %1692 = vst.msk [vmem:[#allocation2 + $0x38] sm:$0xff] %vm303, %v1676
      %1693 = vst.msk [vmem:[#allocation2 + $0x40] sm:$0xff] %vm303, %v1677
      %1694 = vst.msk [vmem:[#allocation2 + $0x48] sm:$0xff] %vm303, %v1678
      %1695 = vst.msk [vmem:[#allocation2 + $0x50] sm:$0xff] %vm303, %v1679
      %1696 = vst.msk [vmem:[#allocation2 + $0x58] sm:$0xff] %vm303, %v1680
      %1697 = vst.msk [vmem:[#allocation2 + $0x60] sm:$0xff] %vm303, %v1681
      %1698 = vst.msk [vmem:[#allocation2 + $0x68] sm:$0xff] %vm303, %v1682
      %1699 = vst.msk [vmem:[#allocation2 + $0x70] sm:$0xff] %vm303, %v1683
      %1700 = vst.msk [vmem:[#allocation2 + $0x78] sm:$0xff] %vm303, %v1684
      %s1701 = scalar_lea.vmem %s1, 10
      %v1702 = vld [vmem:[%s1701] sm:$0x3]
      %v1703 = vunpack.c.l.bf16 %v1702
      %v1704 = vmul.f32 %v1703, %v320
      %v1705 = vpack.c.bf16 %v1704, %v1704
      %v1706 = vld [vmem:[%s1151] sm:$0xe]
      %v1707 = vld [vmem:[%s1151 + $0x4] sm:$0xf]
      %v1708 = vld [vmem:[%s1151 + $0x8] sm:$0x1]
      %v1709 = vld [vmem:[%s1151 + $0xc] sm:$0xe]
      %v1710 = vld [vmem:[%s1151 + $0x10] sm:$0xf]
      %v1711 = vld [vmem:[%s1151 + $0x14] sm:$0x1]
      %v1712 = vld [vmem:[%s1151 + $0x18] sm:$0xe]
      %v1713 = vld [vmem:[%s1151 + $0x1c] sm:$0xf]
      %v1714 = vld [vmem:[%s1151 + $0x20] sm:$0x1]
      %v1715 = vld [vmem:[%s1151 + $0x24] sm:$0xe]
      %v1716 = vld [vmem:[%s1151 + $0x28] sm:$0xf]
      %v1717 = vld [vmem:[%s1151 + $0x2c] sm:$0x1]
      %v1718 = vld [vmem:[%s1151 + $0x30] sm:$0xe]
      %v1719 = vld [vmem:[%s1151 + $0x34] sm:$0xf]
      %v1720 = vld [vmem:[%s1151 + $0x38] sm:$0x1]
      %v1721 = vld [vmem:[%s1151 + $0x3c] sm:$0xe]
      %v1722 = vld [vmem:[%s1151 + $0x40] sm:$0xf]
      %v1723 = vld [vmem:[%s1151 + $0x44] sm:$0x1]
      %v1724 = vld [vmem:[%s1151 + $0x48] sm:$0xe]
      %v1725 = vld [vmem:[%s1151 + $0x4c] sm:$0xf]
      %v1726 = vld [vmem:[%s1151 + $0x50] sm:$0x1]
      %v1727 = vld [vmem:[%s1151 + $0x54] sm:$0xe]
      %v1728 = vld [vmem:[%s1151 + $0x58] sm:$0xf]
      %v1729 = vld [vmem:[%s1151 + $0x5c] sm:$0x1]
      %v1730 = vld [vmem:[#allocation2] sm:$0xff]
      %v1731 = vld [vmem:[#allocation2 + $0x8] sm:$0xff]
      %v1732 = vld [vmem:[#allocation2 + $0x10] sm:$0xff]
      %v1733 = vld [vmem:[#allocation2 + $0x18] sm:$0xff]
      %v1734 = vld [vmem:[#allocation2 + $0x20] sm:$0xff]
      %v1735 = vld [vmem:[#allocation2 + $0x28] sm:$0xff]
      %v1736 = vld [vmem:[#allocation2 + $0x30] sm:$0xff]
      %v1737 = vld [vmem:[#allocation2 + $0x38] sm:$0xff]
      %v1738 = vld [vmem:[#allocation2 + $0x40] sm:$0xff]
      %v1739 = vld [vmem:[#allocation2 + $0x48] sm:$0xff]
      %v1740 = vld [vmem:[#allocation2 + $0x50] sm:$0xff]
      %v1741 = vld [vmem:[#allocation2 + $0x58] sm:$0xff]
      %v1742 = vld [vmem:[#allocation2 + $0x60] sm:$0xff]
      %v1743 = vld [vmem:[#allocation2 + $0x68] sm:$0xff]
      %v1744 = vld [vmem:[#allocation2 + $0x70] sm:$0xff]
      %v1745 = vld [vmem:[#allocation2 + $0x78] sm:$0xff]
      %v1770 = vrot.slane %v1706, 5
      %v1771 = vrot.slane %v1770, 4
      %v1772 = vrot.slane %v1707, 5
      %v1773 = vsel %vm954, %v1771, %v1772
      %v1774 = vrot.slane %v1772, 4
      %v1775 = vrot.slane %v1708, 5
      %v1776 = vsel %vm954, %v1774, %v1775
      %v1777 = vrot.slane %v1709, 5
      %v1778 = vrot.slane %v1777, 4
      %v1779 = vrot.slane %v1710, 5
      %v1780 = vsel %vm954, %v1778, %v1779
      %v1781 = vrot.slane %v1779, 4
      %v1782 = vrot.slane %v1711, 5
      %v1783 = vsel %vm954, %v1781, %v1782
      %v1784 = vrot.slane %v1712, 5
      %v1785 = vrot.slane %v1784, 4
      %v1786 = vrot.slane %v1713, 5
      %v1787 = vsel %vm954, %v1785, %v1786
      %v1788 = vrot.slane %v1786, 4
      %v1789 = vrot.slane %v1714, 5
      %v1790 = vsel %vm954, %v1788, %v1789
      %v1791 = vrot.slane %v1715, 5
      %v1792 = vrot.slane %v1791, 4
      %v1793 = vrot.slane %v1716, 5
      %v1794 = vsel %vm954, %v1792, %v1793
      %v1795 = vrot.slane %v1793, 4
      %v1796 = vrot.slane %v1717, 5
      %v1797 = vsel %vm954, %v1795, %v1796
      %v1798 = vrot.slane %v1718, 5
      %v1799 = vrot.slane %v1798, 4
      %v1800 = vrot.slane %v1719, 5
      %v1801 = vsel %vm954, %v1799, %v1800
      %v1802 = vrot.slane %v1800, 4
      %v1803 = vrot.slane %v1720, 5
      %v1804 = vsel %vm954, %v1802, %v1803
      %v1805 = vrot.slane %v1721, 5
      %v1806 = vrot.slane %v1805, 4
      %v1807 = vrot.slane %v1722, 5
      %v1808 = vsel %vm954, %v1806, %v1807
      %v1809 = vrot.slane %v1807, 4
      %v1810 = vrot.slane %v1723, 5
      %v1811 = vsel %vm954, %v1809, %v1810
      %v1812 = vrot.slane %v1724, 5
      %v1813 = vrot.slane %v1812, 4
      %v1814 = vrot.slane %v1725, 5
      %v1815 = vsel %vm954, %v1813, %v1814
      %v1816 = vrot.slane %v1814, 4
      %v1817 = vrot.slane %v1726, 5
      %v1818 = vsel %vm954, %v1816, %v1817
      %v1819 = vrot.slane %v1727, 5
      %v1820 = vrot.slane %v1819, 4
      %v1821 = vrot.slane %v1728, 5
      %v1822 = vsel %vm954, %v1820, %v1821
      %v1823 = vrot.slane %v1821, 4
      %v1824 = vrot.slane %v1729, 5
      %v1825 = vsel %vm954, %v1823, %v1824
      %v1826 = vunpack.c.l.b16 %v1773
      %v1827 = vunpack.c.l.b16 %v1776
      %v1828 = vunpack.c.l.b16 %v1780
      %v1829 = vunpack.c.l.b16 %v1783
      %v1830 = vunpack.c.l.b16 %v1787
      %v1831 = vunpack.c.l.b16 %v1790
      %v1832 = vunpack.c.l.b16 %v1794
      %v1833 = vunpack.c.l.b16 %v1797
      %v1834 = vunpack.c.l.b16 %v1801
      %v1835 = vunpack.c.l.b16 %v1804
      %v1836 = vunpack.c.l.b16 %v1808
      %v1837 = vunpack.c.l.b16 %v1811
      %v1838 = vunpack.c.l.b16 %v1815
      %v1839 = vunpack.c.l.b16 %v1818
      %v1840 = vunpack.c.l.b16 %v1822
      %v1841 = vunpack.c.l.b16 %v1825
      %v1842 = vpack.c.b16 %v1827, %v1826
      %v1843 = vpack.c.b16 %v1829, %v1828
      %v1844 = vpack.c.b16 %v1831, %v1830
      %v1845 = vpack.c.b16 %v1833, %v1832
      %v1846 = vpack.c.b16 %v1835, %v1834
      %v1847 = vpack.c.b16 %v1837, %v1836
      %v1848 = vpack.c.b16 %v1839, %v1838
      %v1849 = vpack.c.b16 %v1841, %v1840
      %v1851 = vsel %vm401, %v1842, 0
      %v1854 = vsel %vm401, %v1843, 0
      %v1857 = vsel %vm401, %v1844, 0
      %v1860 = vsel %vm401, %v1845, 0
      %v1863 = vsel %vm401, %v1846, 0
      %v1866 = vsel %vm401, %v1847, 0
      %v1869 = vsel %vm401, %v1848, 0
      %v1872 = vsel %vm401, %v1849, 0
      %v1875 = vsel %vm426, %v1705, 0
      %1877 = vmatpush.bf16.msra.mxu0 0
      %1878 = vmatpush.bf16.msra.mxu0 0
      %1879 = vmatpush.bf16.msra.mxu0 0
      %1880 = vmatpush.bf16.msra.mxu0 0
      %1881 = vmatpush.bf16.msra.mxu0 0
      %1882 = vmatpush.bf16.msra.mxu0 0
      %1883 = vmatpush.bf16.msra.mxu0 0
      %1884 = vmatpush.bf16.msra.mxu0 %v1875
      %1885 = vmatmul.bf16.gmra.mxu0 %v1851
      %v1886 = vpop.f32.mrf.mxu0
      %v1887 = vadd.f32 0.0, %v1886
      %v1888 = vpop.f32.mrf.mxu0
      %v1889 = vadd.f32 0.0, %v1888
      %1890 = vmatmul.bf16.gmra.mxu0 %v1854
      %v1891 = vpop.f32.mrf.mxu0
      %v1892 = vadd.f32 0.0, %v1891
      %v1893 = vpop.f32.mrf.mxu0
      %v1894 = vadd.f32 0.0, %v1893
      %1895 = vmatmul.bf16.gmra.mxu0 %v1857
      %v1896 = vpop.f32.mrf.mxu0
      %v1897 = vadd.f32 0.0, %v1896
      %v1898 = vpop.f32.mrf.mxu0
      %v1899 = vadd.f32 0.0, %v1898
      %1900 = vmatmul.bf16.gmra.mxu0 %v1860
      %v1901 = vpop.f32.mrf.mxu0
      %v1902 = vadd.f32 0.0, %v1901
      %v1903 = vpop.f32.mrf.mxu0
      %v1904 = vadd.f32 0.0, %v1903
      %1905 = vmatmul.bf16.gmra.mxu0 %v1863
      %v1906 = vpop.f32.mrf.mxu0
      %v1907 = vadd.f32 0.0, %v1906
      %v1908 = vpop.f32.mrf.mxu0
      %v1909 = vadd.f32 0.0, %v1908
      %1910 = vmatmul.bf16.gmra.mxu0 %v1866
      %v1911 = vpop.f32.mrf.mxu0
      %v1912 = vadd.f32 0.0, %v1911
      %v1913 = vpop.f32.mrf.mxu0
      %v1914 = vadd.f32 0.0, %v1913
      %1915 = vmatmul.bf16.gmra.mxu0 %v1869
      %v1916 = vpop.f32.mrf.mxu0
      %v1917 = vadd.f32 0.0, %v1916
      %v1918 = vpop.f32.mrf.mxu0
      %v1919 = vadd.f32 0.0, %v1918
      %1920 = vmatmul.bf16.gmra.mxu0 %v1872
      %v1921 = vpop.f32.mrf.mxu0
      %v1922 = vadd.f32 0.0, %v1921
      %v1923 = vpop.f32.mrf.mxu0
      %v1924 = vadd.f32 0.0, %v1923
      %1925 = vdwg.mxu0
      %v1926 = vadd.f32 %v1730, %v1887
      %v1927 = vadd.f32 %v1731, %v1889
      %v1928 = vadd.f32 %v1732, %v1892
      %v1929 = vadd.f32 %v1733, %v1894
      %v1930 = vadd.f32 %v1734, %v1897
      %v1931 = vadd.f32 %v1735, %v1899
      %v1932 = vadd.f32 %v1736, %v1902
      %v1933 = vadd.f32 %v1737, %v1904
      %v1934 = vadd.f32 %v1738, %v1907
      %v1935 = vadd.f32 %v1739, %v1909
      %v1936 = vadd.f32 %v1740, %v1912
      %v1937 = vadd.f32 %v1741, %v1914
      %v1938 = vadd.f32 %v1742, %v1917
      %v1939 = vadd.f32 %v1743, %v1919
      %v1940 = vadd.f32 %v1744, %v1922
      %v1941 = vadd.f32 %v1745, %v1924
      %1942 = vst.msk [vmem:[#allocation2] sm:$0xff] %vm303, %v1926
      %1943 = vst.msk [vmem:[#allocation2 + $0x8] sm:$0xff] %vm303, %v1927
      %1944 = vst.msk [vmem:[#allocation2 + $0x10] sm:$0xff] %vm303, %v1928
      %1945 = vst.msk [vmem:[#allocation2 + $0x18] sm:$0xff] %vm303, %v1929
      %1946 = vst.msk [vmem:[#allocation2 + $0x20] sm:$0xff] %vm303, %v1930
      %1947 = vst.msk [vmem:[#allocation2 + $0x28] sm:$0xff] %vm303, %v1931
      %1948 = vst.msk [vmem:[#allocation2 + $0x30] sm:$0xff] %vm303, %v1932
      %1949 = vst.msk [vmem:[#allocation2 + $0x38] sm:$0xff] %vm303, %v1933
      %1950 = vst.msk [vmem:[#allocation2 + $0x40] sm:$0xff] %vm303, %v1934
      %1951 = vst.msk [vmem:[#allocation2 + $0x48] sm:$0xff] %vm303, %v1935
      %1952 = vst.msk [vmem:[#allocation2 + $0x50] sm:$0xff] %vm303, %v1936
      %1953 = vst.msk [vmem:[#allocation2 + $0x58] sm:$0xff] %vm303, %v1937
      %1954 = vst.msk [vmem:[#allocation2 + $0x60] sm:$0xff] %vm303, %v1938
      %1955 = vst.msk [vmem:[#allocation2 + $0x68] sm:$0xff] %vm303, %v1939
      %1956 = vst.msk [vmem:[#allocation2 + $0x70] sm:$0xff] %vm303, %v1940
      %1957 = vst.msk [vmem:[#allocation2 + $0x78] sm:$0xff] %vm303, %v1941
      %s1958 = sadd.s32 %s321, 2
      %s1959 = scalar_lea.vmem %s1, 12
      %v1960 = vld [vmem:[%s1959] sm:$0x3]
      %v1961 = vunpack.c.l.bf16 %v1960
      %v1962 = vmul.f32 %v1961, %v320
      %v1963 = vpack.c.bf16 %v1962, %v1962
      %s1964 = smul.u32 %s1958, 3
      %s1965 = smul.addr %s1964, 4
      %s1966 = scalar_lea.vmem %s273, %s1965
      %v1967 = vld [vmem:[%s1966] sm:$0xf]
      %v1968 = vld [vmem:[%s1966 + $0x4] sm:$0xf]
      %v1969 = vld [vmem:[%s1966 + $0xc] sm:$0xf]
      %v1970 = vld [vmem:[%s1966 + $0x10] sm:$0xf]
      %v1971 = vld [vmem:[%s1966 + $0x18] sm:$0xf]
      %v1972 = vld [vmem:[%s1966 + $0x1c] sm:$0xf]
      %v1973 = vld [vmem:[%s1966 + $0x24] sm:$0xf]
      %v1974 = vld [vmem:[%s1966 + $0x28] sm:$0xf]
      %v1975 = vld [vmem:[%s1966 + $0x30] sm:$0xf]
      %v1976 = vld [vmem:[%s1966 + $0x34] sm:$0xf]
      %v1977 = vld [vmem:[%s1966 + $0x3c] sm:$0xf]
      %v1978 = vld [vmem:[%s1966 + $0x40] sm:$0xf]
      %v1979 = vld [vmem:[%s1966 + $0x48] sm:$0xf]
      %v1980 = vld [vmem:[%s1966 + $0x4c] sm:$0xf]
      %v1981 = vld [vmem:[%s1966 + $0x54] sm:$0xf]
      %v1982 = vld [vmem:[%s1966 + $0x58] sm:$0xf]
      %v1983 = vld [vmem:[#allocation2] sm:$0xff]
      %v1984 = vld [vmem:[#allocation2 + $0x8] sm:$0xff]
      %v1985 = vld [vmem:[#allocation2 + $0x10] sm:$0xff]
      %v1986 = vld [vmem:[#allocation2 + $0x18] sm:$0xff]
      %v1987 = vld [vmem:[#allocation2 + $0x20] sm:$0xff]
      %v1988 = vld [vmem:[#allocation2 + $0x28] sm:$0xff]
      %v1989 = vld [vmem:[#allocation2 + $0x30] sm:$0xff]
      %v1990 = vld [vmem:[#allocation2 + $0x38] sm:$0xff]
      %v1991 = vld [vmem:[#allocation2 + $0x40] sm:$0xff]
      %v1992 = vld [vmem:[#allocation2 + $0x48] sm:$0xff]
      %v1993 = vld [vmem:[#allocation2 + $0x50] sm:$0xff]
      %v1994 = vld [vmem:[#allocation2 + $0x58] sm:$0xff]
      %v1995 = vld [vmem:[#allocation2 + $0x60] sm:$0xff]
      %v1996 = vld [vmem:[#allocation2 + $0x68] sm:$0xff]
      %v1997 = vld [vmem:[#allocation2 + $0x70] sm:$0xff]
      %v1998 = vld [vmem:[#allocation2 + $0x78] sm:$0xff]
      %v2015 = vunpack.c.l.b16 %v1967
      %v2016 = vunpack.c.l.b16 %v1968
      %v2017 = vunpack.c.l.b16 %v1969
      %v2018 = vunpack.c.l.b16 %v1970
      %v2019 = vunpack.c.l.b16 %v1971
      %v2020 = vunpack.c.l.b16 %v1972
      %v2021 = vunpack.c.l.b16 %v1973
      %v2022 = vunpack.c.l.b16 %v1974
      %v2023 = vunpack.c.l.b16 %v1975
      %v2024 = vunpack.c.l.b16 %v1976
      %v2025 = vunpack.c.l.b16 %v1977
      %v2026 = vunpack.c.l.b16 %v1978
      %v2027 = vunpack.c.l.b16 %v1979
      %v2028 = vunpack.c.l.b16 %v1980
      %v2029 = vunpack.c.l.b16 %v1981
      %v2030 = vunpack.c.l.b16 %v1982
      %v2031 = vpack.c.b16 %v2016, %v2015
      %v2032 = vpack.c.b16 %v2018, %v2017
      %v2033 = vpack.c.b16 %v2020, %v2019
      %v2034 = vpack.c.b16 %v2022, %v2021
      %v2035 = vpack.c.b16 %v2024, %v2023
      %v2036 = vpack.c.b16 %v2026, %v2025
      %v2037 = vpack.c.b16 %v2028, %v2027
      %v2038 = vpack.c.b16 %v2030, %v2029
      %v2040 = vsel %vm401, %v2031, 0
      %v2043 = vsel %vm401, %v2032, 0
      %v2046 = vsel %vm401, %v2033, 0
      %v2049 = vsel %vm401, %v2034, 0
      %v2052 = vsel %vm401, %v2035, 0
      %v2055 = vsel %vm401, %v2036, 0
      %v2058 = vsel %vm401, %v2037, 0
      %v2061 = vsel %vm401, %v2038, 0
      %v2064 = vsel %vm426, %v1963, 0
      %2066 = vmatpush.bf16.msra.mxu0 0
      %2067 = vmatpush.bf16.msra.mxu0 0
      %2068 = vmatpush.bf16.msra.mxu0 0
      %2069 = vmatpush.bf16.msra.mxu0 0
      %2070 = vmatpush.bf16.msra.mxu0 0
      %2071 = vmatpush.bf16.msra.mxu0 0
      %2072 = vmatpush.bf16.msra.mxu0 0
      %2073 = vmatpush.bf16.msra.mxu0 %v2064
      %2074 = vmatmul.bf16.gmra.mxu0 %v2040
      %v2075 = vpop.f32.mrf.mxu0
      %v2076 = vadd.f32 0.0, %v2075
      %v2077 = vpop.f32.mrf.mxu0
      %v2078 = vadd.f32 0.0, %v2077
      %2079 = vmatmul.bf16.gmra.mxu0 %v2043
      %v2080 = vpop.f32.mrf.mxu0
      %v2081 = vadd.f32 0.0, %v2080
      %v2082 = vpop.f32.mrf.mxu0
      %v2083 = vadd.f32 0.0, %v2082
      %2084 = vmatmul.bf16.gmra.mxu0 %v2046
      %v2085 = vpop.f32.mrf.mxu0
      %v2086 = vadd.f32 0.0, %v2085
      %v2087 = vpop.f32.mrf.mxu0
      %v2088 = vadd.f32 0.0, %v2087
      %2089 = vmatmul.bf16.gmra.mxu0 %v2049
      %v2090 = vpop.f32.mrf.mxu0
      %v2091 = vadd.f32 0.0, %v2090
      %v2092 = vpop.f32.mrf.mxu0
      %v2093 = vadd.f32 0.0, %v2092
      %2094 = vmatmul.bf16.gmra.mxu0 %v2052
      %v2095 = vpop.f32.mrf.mxu0
      %v2096 = vadd.f32 0.0, %v2095
      %v2097 = vpop.f32.mrf.mxu0
      %v2098 = vadd.f32 0.0, %v2097
      %2099 = vmatmul.bf16.gmra.mxu0 %v2055
      %v2100 = vpop.f32.mrf.mxu0
      %v2101 = vadd.f32 0.0, %v2100
      %v2102 = vpop.f32.mrf.mxu0
      %v2103 = vadd.f32 0.0, %v2102
      %2104 = vmatmul.bf16.gmra.mxu0 %v2058
      %v2105 = vpop.f32.mrf.mxu0
      %v2106 = vadd.f32 0.0, %v2105
      %v2107 = vpop.f32.mrf.mxu0
      %v2108 = vadd.f32 0.0, %v2107
      %2109 = vmatmul.bf16.gmra.mxu0 %v2061
      %v2110 = vpop.f32.mrf.mxu0
      %v2111 = vadd.f32 0.0, %v2110
      %v2112 = vpop.f32.mrf.mxu0
      %v2113 = vadd.f32 0.0, %v2112
      %2114 = vdwg.mxu0
      %v2115 = vadd.f32 %v1983, %v2076
      %v2116 = vadd.f32 %v1984, %v2078
      %v2117 = vadd.f32 %v1985, %v2081
      %v2118 = vadd.f32 %v1986, %v2083
      %v2119 = vadd.f32 %v1987, %v2086
      %v2120 = vadd.f32 %v1988, %v2088
      %v2121 = vadd.f32 %v1989, %v2091
      %v2122 = vadd.f32 %v1990, %v2093
      %v2123 = vadd.f32 %v1991, %v2096
      %v2124 = vadd.f32 %v1992, %v2098
      %v2125 = vadd.f32 %v1993, %v2101
      %v2126 = vadd.f32 %v1994, %v2103
      %v2127 = vadd.f32 %v1995, %v2106
      %v2128 = vadd.f32 %v1996, %v2108
      %v2129 = vadd.f32 %v1997, %v2111
      %v2130 = vadd.f32 %v1998, %v2113
      %2131 = vst.msk [vmem:[#allocation2] sm:$0xff] %vm303, %v2115
      %2132 = vst.msk [vmem:[#allocation2 + $0x8] sm:$0xff] %vm303, %v2116
      %2133 = vst.msk [vmem:[#allocation2 + $0x10] sm:$0xff] %vm303, %v2117
      %2134 = vst.msk [vmem:[#allocation2 + $0x18] sm:$0xff] %vm303, %v2118
      %2135 = vst.msk [vmem:[#allocation2 + $0x20] sm:$0xff] %vm303, %v2119
      %2136 = vst.msk [vmem:[#allocation2 + $0x28] sm:$0xff] %vm303, %v2120
      %2137 = vst.msk [vmem:[#allocation2 + $0x30] sm:$0xff] %vm303, %v2121
      %2138 = vst.msk [vmem:[#allocation2 + $0x38] sm:$0xff] %vm303, %v2122
      %2139 = vst.msk [vmem:[#allocation2 + $0x40] sm:$0xff] %vm303, %v2123
      %2140 = vst.msk [vmem:[#allocation2 + $0x48] sm:$0xff] %vm303, %v2124
      %2141 = vst.msk [vmem:[#allocation2 + $0x50] sm:$0xff] %vm303, %v2125
      %2142 = vst.msk [vmem:[#allocation2 + $0x58] sm:$0xff] %vm303, %v2126
      %2143 = vst.msk [vmem:[#allocation2 + $0x60] sm:$0xff] %vm303, %v2127
      %2144 = vst.msk [vmem:[#allocation2 + $0x68] sm:$0xff] %vm303, %v2128
      %2145 = vst.msk [vmem:[#allocation2 + $0x70] sm:$0xff] %vm303, %v2129
      %2146 = vst.msk [vmem:[#allocation2 + $0x78] sm:$0xff] %vm303, %v2130
      %s2147 = scalar_lea.vmem %s1, 14
      %v2148 = vld [vmem:[%s2147] sm:$0x3]
      %v2149 = vunpack.c.l.bf16 %v2148
      %v2150 = vmul.f32 %v2149, %v320
      %v2151 = vpack.c.bf16 %v2150, %v2150
      %v2152 = vld [vmem:[%s1966] sm:$0xf]
      %v2153 = vld [vmem:[%s1966 + $0x4] sm:$0xf]
      %v2154 = vld [vmem:[%s1966 + $0x8] sm:$0x1]
      %v2155 = vld [vmem:[%s1966 + $0xc] sm:$0xf]
      %v2156 = vld [vmem:[%s1966 + $0x10] sm:$0xf]
      %v2157 = vld [vmem:[%s1966 + $0x14] sm:$0x1]
      %v2158 = vld [vmem:[%s1966 + $0x18] sm:$0xf]
      %v2159 = vld [vmem:[%s1966 + $0x1c] sm:$0xf]
      %v2160 = vld [vmem:[%s1966 + $0x20] sm:$0x1]
      %v2161 = vld [vmem:[%s1966 + $0x24] sm:$0xf]
      %v2162 = vld [vmem:[%s1966 + $0x28] sm:$0xf]
      %v2163 = vld [vmem:[%s1966 + $0x2c] sm:$0x1]
      %v2164 = vld [vmem:[%s1966 + $0x30] sm:$0xf]
      %v2165 = vld [vmem:[%s1966 + $0x34] sm:$0xf]
      %v2166 = vld [vmem:[%s1966 + $0x38] sm:$0x1]
      %v2167 = vld [vmem:[%s1966 + $0x3c] sm:$0xf]
      %v2168 = vld [vmem:[%s1966 + $0x40] sm:$0xf]
      %v2169 = vld [vmem:[%s1966 + $0x44] sm:$0x1]
      %v2170 = vld [vmem:[%s1966 + $0x48] sm:$0xf]
      %v2171 = vld [vmem:[%s1966 + $0x4c] sm:$0xf]
      %v2172 = vld [vmem:[%s1966 + $0x50] sm:$0x1]
      %v2173 = vld [vmem:[%s1966 + $0x54] sm:$0xf]
      %v2174 = vld [vmem:[%s1966 + $0x58] sm:$0xf]
      %v2175 = vld [vmem:[%s1966 + $0x5c] sm:$0x1]
      %v2176 = vld [vmem:[#allocation2] sm:$0xff]
      %v2177 = vld [vmem:[#allocation2 + $0x8] sm:$0xff]
      %v2178 = vld [vmem:[#allocation2 + $0x10] sm:$0xff]
      %v2179 = vld [vmem:[#allocation2 + $0x18] sm:$0xff]
      %v2180 = vld [vmem:[#allocation2 + $0x20] sm:$0xff]
      %v2181 = vld [vmem:[#allocation2 + $0x28] sm:$0xff]
      %v2182 = vld [vmem:[#allocation2 + $0x30] sm:$0xff]
      %v2183 = vld [vmem:[#allocation2 + $0x38] sm:$0xff]
      %v2184 = vld [vmem:[#allocation2 + $0x40] sm:$0xff]
      %v2185 = vld [vmem:[#allocation2 + $0x48] sm:$0xff]
      %v2186 = vld [vmem:[#allocation2 + $0x50] sm:$0xff]
      %v2187 = vld [vmem:[#allocation2 + $0x58] sm:$0xff]
      %v2188 = vld [vmem:[#allocation2 + $0x60] sm:$0xff]
      %v2189 = vld [vmem:[#allocation2 + $0x68] sm:$0xff]
      %v2190 = vld [vmem:[#allocation2 + $0x70] sm:$0xff]
      %v2191 = vld [vmem:[#allocation2 + $0x78] sm:$0xff]
      %v2193 = vshrl.u32 %v2152, 16
      %v2195 = vrot.slane %v2193, 4
      %v2196 = vshll.u32 %v2152, 16
      %v2198 = vrot.slane %v2196, 5
      %v2199 = vor.u32 %v2195, %v2198
      %v2200 = vrot.slane %v2199, 4
      %v2202 = vshll.u32 %v2153, 16
      %v2204 = vrot.slane %v2202, 5
      %v2205 = vsel %vm558, %v2200, %v2204
      %v2206 = vshrl.u32 %v2153, 16
      %v2208 = vrot.slane %v2206, 4
      %v2209 = vor.u32 %v2208, %v2204
      %v2210 = vrot.slane %v2209, 4
      %v2212 = vshll.u32 %v2154, 16
      %v2214 = vrot.slane %v2212, 5
      %v2215 = vsel %vm558, %v2210, %v2214
      %v2217 = vshrl.u32 %v2155, 16
      %v2219 = vrot.slane %v2217, 4
      %v2220 = vshll.u32 %v2155, 16
      %v2222 = vrot.slane %v2220, 5
      %v2223 = vor.u32 %v2219, %v2222
      %v2224 = vrot.slane %v2223, 4
      %v2226 = vshll.u32 %v2156, 16
      %v2228 = vrot.slane %v2226, 5
      %v2229 = vsel %vm558, %v2224, %v2228
      %v2230 = vshrl.u32 %v2156, 16
      %v2232 = vrot.slane %v2230, 4
      %v2233 = vor.u32 %v2232, %v2228
      %v2234 = vrot.slane %v2233, 4
      %v2236 = vshll.u32 %v2157, 16
      %v2238 = vrot.slane %v2236, 5
      %v2239 = vsel %vm558, %v2234, %v2238
      %v2241 = vshrl.u32 %v2158, 16
      %v2243 = vrot.slane %v2241, 4
      %v2244 = vshll.u32 %v2158, 16
      %v2246 = vrot.slane %v2244, 5
      %v2247 = vor.u32 %v2243, %v2246
      %v2248 = vrot.slane %v2247, 4
      %v2250 = vshll.u32 %v2159, 16
      %v2252 = vrot.slane %v2250, 5
      %v2253 = vsel %vm558, %v2248, %v2252
      %v2254 = vshrl.u32 %v2159, 16
      %v2256 = vrot.slane %v2254, 4
      %v2257 = vor.u32 %v2256, %v2252
      %v2258 = vrot.slane %v2257, 4
      %v2260 = vshll.u32 %v2160, 16
      %v2262 = vrot.slane %v2260, 5
      %v2263 = vsel %vm558, %v2258, %v2262
      %v2265 = vshrl.u32 %v2161, 16
      %v2267 = vrot.slane %v2265, 4
      %v2268 = vshll.u32 %v2161, 16
      %v2270 = vrot.slane %v2268, 5
      %v2271 = vor.u32 %v2267, %v2270
      %v2272 = vrot.slane %v2271, 4
      %v2274 = vshll.u32 %v2162, 16
      %v2276 = vrot.slane %v2274, 5
      %v2277 = vsel %vm558, %v2272, %v2276
      %v2278 = vshrl.u32 %v2162, 16
      %v2280 = vrot.slane %v2278, 4
      %v2281 = vor.u32 %v2280, %v2276
      %v2282 = vrot.slane %v2281, 4
      %v2284 = vshll.u32 %v2163, 16
      %v2286 = vrot.slane %v2284, 5
      %v2287 = vsel %vm558, %v2282, %v2286
      %v2289 = vshrl.u32 %v2164, 16
      %v2291 = vrot.slane %v2289, 4
      %v2292 = vshll.u32 %v2164, 16
      %v2294 = vrot.slane %v2292, 5
      %v2295 = vor.u32 %v2291, %v2294
      %v2296 = vrot.slane %v2295, 4
      %v2298 = vshll.u32 %v2165, 16
      %v2300 = vrot.slane %v2298, 5
      %v2301 = vsel %vm558, %v2296, %v2300
      %v2302 = vshrl.u32 %v2165, 16
      %v2304 = vrot.slane %v2302, 4
      %v2305 = vor.u32 %v2304, %v2300
      %v2306 = vrot.slane %v2305, 4
      %v2308 = vshll.u32 %v2166, 16
      %v2310 = vrot.slane %v2308, 5
      %v2311 = vsel %vm558, %v2306, %v2310
      %v2313 = vshrl.u32 %v2167, 16
      %v2315 = vrot.slane %v2313, 4
      %v2316 = vshll.u32 %v2167, 16
      %v2318 = vrot.slane %v2316, 5
      %v2319 = vor.u32 %v2315, %v2318
      %v2320 = vrot.slane %v2319, 4
      %v2322 = vshll.u32 %v2168, 16
      %v2324 = vrot.slane %v2322, 5
      %v2325 = vsel %vm558, %v2320, %v2324
      %v2326 = vshrl.u32 %v2168, 16
      %v2328 = vrot.slane %v2326, 4
      %v2329 = vor.u32 %v2328, %v2324
      %v2330 = vrot.slane %v2329, 4
      %v2332 = vshll.u32 %v2169, 16
      %v2334 = vrot.slane %v2332, 5
      %v2335 = vsel %vm558, %v2330, %v2334
      %v2337 = vshrl.u32 %v2170, 16
      %v2339 = vrot.slane %v2337, 4
      %v2340 = vshll.u32 %v2170, 16
      %v2342 = vrot.slane %v2340, 5
      %v2343 = vor.u32 %v2339, %v2342
      %v2344 = vrot.slane %v2343, 4
      %v2346 = vshll.u32 %v2171, 16
      %v2348 = vrot.slane %v2346, 5
      %v2349 = vsel %vm558, %v2344, %v2348
      %v2350 = vshrl.u32 %v2171, 16
      %v2352 = vrot.slane %v2350, 4
      %v2353 = vor.u32 %v2352, %v2348
      %v2354 = vrot.slane %v2353, 4
      %v2356 = vshll.u32 %v2172, 16
      %v2358 = vrot.slane %v2356, 5
      %v2359 = vsel %vm558, %v2354, %v2358
      %v2361 = vshrl.u32 %v2173, 16
      %v2363 = vrot.slane %v2361, 4
      %v2364 = vshll.u32 %v2173, 16
      %v2366 = vrot.slane %v2364, 5
      %v2367 = vor.u32 %v2363, %v2366
      %v2368 = vrot.slane %v2367, 4
      %v2370 = vshll.u32 %v2174, 16
      %v2372 = vrot.slane %v2370, 5
      %v2373 = vsel %vm558, %v2368, %v2372
      %v2374 = vshrl.u32 %v2174, 16
      %v2376 = vrot.slane %v2374, 4
      %v2377 = vor.u32 %v2376, %v2372
      %v2378 = vrot.slane %v2377, 4
      %v2380 = vshll.u32 %v2175, 16
      %v2382 = vrot.slane %v2380, 5
      %v2383 = vsel %vm558, %v2378, %v2382
      %v2384 = vunpack.c.l.b16 %v2205
      %v2385 = vunpack.c.l.b16 %v2215
      %v2386 = vunpack.c.l.b16 %v2229
      %v2387 = vunpack.c.l.b16 %v2239
      %v2388 = vunpack.c.l.b16 %v2253
      %v2389 = vunpack.c.l.b16 %v2263
      %v2390 = vunpack.c.l.b16 %v2277
      %v2391 = vunpack.c.l.b16 %v2287
      %v2392 = vunpack.c.l.b16 %v2301
      %v2393 = vunpack.c.l.b16 %v2311
      %v2394 = vunpack.c.l.b16 %v2325
      %v2395 = vunpack.c.l.b16 %v2335
      %v2396 = vunpack.c.l.b16 %v2349
      %v2397 = vunpack.c.l.b16 %v2359
      %v2398 = vunpack.c.l.b16 %v2373
      %v2399 = vunpack.c.l.b16 %v2383
      %v2400 = vpack.c.b16 %v2385, %v2384
      %v2401 = vpack.c.b16 %v2387, %v2386
      %v2402 = vpack.c.b16 %v2389, %v2388
      %v2403 = vpack.c.b16 %v2391, %v2390
      %v2404 = vpack.c.b16 %v2393, %v2392
      %v2405 = vpack.c.b16 %v2395, %v2394
      %v2406 = vpack.c.b16 %v2397, %v2396
      %v2407 = vpack.c.b16 %v2399, %v2398
      %v2409 = vsel %vm401, %v2400, 0
      %v2412 = vsel %vm401, %v2401, 0
      %v2415 = vsel %vm401, %v2402, 0
      %v2418 = vsel %vm401, %v2403, 0
      %v2421 = vsel %vm401, %v2404, 0
      %v2424 = vsel %vm401, %v2405, 0
      %v2427 = vsel %vm401, %v2406, 0
      %v2430 = vsel %vm401, %v2407, 0
      %v2433 = vsel %vm426, %v2151, 0
      %2435 = vmatpush.bf16.msra.mxu0 0
      %2436 = vmatpush.bf16.msra.mxu0 0
      %2437 = vmatpush.bf16.msra.mxu0 0
      %2438 = vmatpush.bf16.msra.mxu0 0
      %2439 = vmatpush.bf16.msra.mxu0 0
      %2440 = vmatpush.bf16.msra.mxu0 0
      %2441 = vmatpush.bf16.msra.mxu0 0
      %2442 = vmatpush.bf16.msra.mxu0 %v2433
      %2443 = vmatmul.bf16.gmra.mxu0 %v2409
      %v2444 = vpop.f32.mrf.mxu0
      %v2445 = vadd.f32 0.0, %v2444
      %v2446 = vpop.f32.mrf.mxu0
      %v2447 = vadd.f32 0.0, %v2446
      %2448 = vmatmul.bf16.gmra.mxu0 %v2412
      %v2449 = vpop.f32.mrf.mxu0
      %v2450 = vadd.f32 0.0, %v2449
      %v2451 = vpop.f32.mrf.mxu0
      %v2452 = vadd.f32 0.0, %v2451
      %2453 = vmatmul.bf16.gmra.mxu0 %v2415
      %v2454 = vpop.f32.mrf.mxu0
      %v2455 = vadd.f32 0.0, %v2454
      %v2456 = vpop.f32.mrf.mxu0
      %v2457 = vadd.f32 0.0, %v2456
      %2458 = vmatmul.bf16.gmra.mxu0 %v2418
      %v2459 = vpop.f32.mrf.mxu0
      %v2460 = vadd.f32 0.0, %v2459
      %v2461 = vpop.f32.mrf.mxu0
      %v2462 = vadd.f32 0.0, %v2461
      %2463 = vmatmul.bf16.gmra.mxu0 %v2421
      %v2464 = vpop.f32.mrf.mxu0
      %v2465 = vadd.f32 0.0, %v2464
      %v2466 = vpop.f32.mrf.mxu0
      %v2467 = vadd.f32 0.0, %v2466
      %2468 = vmatmul.bf16.gmra.mxu0 %v2424
      %v2469 = vpop.f32.mrf.mxu0
      %v2470 = vadd.f32 0.0, %v2469
      %v2471 = vpop.f32.mrf.mxu0
      %v2472 = vadd.f32 0.0, %v2471
      %2473 = vmatmul.bf16.gmra.mxu0 %v2427
      %v2474 = vpop.f32.mrf.mxu0
      %v2475 = vadd.f32 0.0, %v2474
      %v2476 = vpop.f32.mrf.mxu0
      %v2477 = vadd.f32 0.0, %v2476
      %2478 = vmatmul.bf16.gmra.mxu0 %v2430
      %v2479 = vpop.f32.mrf.mxu0
      %v2480 = vadd.f32 0.0, %v2479
      %v2481 = vpop.f32.mrf.mxu0
      %v2482 = vadd.f32 0.0, %v2481
      %2483 = vdwg.mxu0
      %v2484 = vadd.f32 %v2176, %v2445
      %v2485 = vadd.f32 %v2177, %v2447
      %v2486 = vadd.f32 %v2178, %v2450
      %v2487 = vadd.f32 %v2179, %v2452
      %v2488 = vadd.f32 %v2180, %v2455
      %v2489 = vadd.f32 %v2181, %v2457
      %v2490 = vadd.f32 %v2182, %v2460
      %v2491 = vadd.f32 %v2183, %v2462
      %v2492 = vadd.f32 %v2184, %v2465
      %v2493 = vadd.f32 %v2185, %v2467
      %v2494 = vadd.f32 %v2186, %v2470
      %v2495 = vadd.f32 %v2187, %v2472
      %v2496 = vadd.f32 %v2188, %v2475
      %v2497 = vadd.f32 %v2189, %v2477
      %v2498 = vadd.f32 %v2190, %v2480
      %v2499 = vadd.f32 %v2191, %v2482
      %2500 = vst.msk [vmem:[#allocation2] sm:$0xff] %vm303, %v2484
      %2501 = vst.msk [vmem:[#allocation2 + $0x8] sm:$0xff] %vm303, %v2485
      %2502 = vst.msk [vmem:[#allocation2 + $0x10] sm:$0xff] %vm303, %v2486
      %2503 = vst.msk [vmem:[#allocation2 + $0x18] sm:$0xff] %vm303, %v2487
      %2504 = vst.msk [vmem:[#allocation2 + $0x20] sm:$0xff] %vm303, %v2488
      %2505 = vst.msk [vmem:[#allocation2 + $0x28] sm:$0xff] %vm303, %v2489
      %2506 = vst.msk [vmem:[#allocation2 + $0x30] sm:$0xff] %vm303, %v2490
      %2507 = vst.msk [vmem:[#allocation2 + $0x38] sm:$0xff] %vm303, %v2491
      %2508 = vst.msk [vmem:[#allocation2 + $0x40] sm:$0xff] %vm303, %v2492
      %2509 = vst.msk [vmem:[#allocation2 + $0x48] sm:$0xff] %vm303, %v2493
      %2510 = vst.msk [vmem:[#allocation2 + $0x50] sm:$0xff] %vm303, %v2494
      %2511 = vst.msk [vmem:[#allocation2 + $0x58] sm:$0xff] %vm303, %v2495
      %2512 = vst.msk [vmem:[#allocation2 + $0x60] sm:$0xff] %vm303, %v2496
      %2513 = vst.msk [vmem:[#allocation2 + $0x68] sm:$0xff] %vm303, %v2497
      %2514 = vst.msk [vmem:[#allocation2 + $0x70] sm:$0xff] %vm303, %v2498
      %2515 = vst.msk [vmem:[#allocation2 + $0x78] sm:$0xff] %vm303, %v2499
      %s2516 = scalar_lea.vmem %s1, 16
      %v2517 = vld [vmem:[%s2516] sm:$0x3]
      %v2518 = vunpack.c.l.bf16 %v2517
      %v2519 = vmul.f32 %v2518, %v320
      %v2520 = vpack.c.bf16 %v2519, %v2519
      %v2521 = vld [vmem:[%s1966] sm:$0xe]
      %v2522 = vld [vmem:[%s1966 + $0x4] sm:$0xf]
      %v2523 = vld [vmem:[%s1966 + $0x8] sm:$0x1]
      %v2524 = vld [vmem:[%s1966 + $0xc] sm:$0xe]
      %v2525 = vld [vmem:[%s1966 + $0x10] sm:$0xf]
      %v2526 = vld [vmem:[%s1966 + $0x14] sm:$0x1]
      %v2527 = vld [vmem:[%s1966 + $0x18] sm:$0xe]
      %v2528 = vld [vmem:[%s1966 + $0x1c] sm:$0xf]
      %v2529 = vld [vmem:[%s1966 + $0x20] sm:$0x1]
      %v2530 = vld [vmem:[%s1966 + $0x24] sm:$0xe]
      %v2531 = vld [vmem:[%s1966 + $0x28] sm:$0xf]
      %v2532 = vld [vmem:[%s1966 + $0x2c] sm:$0x1]
      %v2533 = vld [vmem:[%s1966 + $0x30] sm:$0xe]
      %v2534 = vld [vmem:[%s1966 + $0x34] sm:$0xf]
      %v2535 = vld [vmem:[%s1966 + $0x38] sm:$0x1]
      %v2536 = vld [vmem:[%s1966 + $0x3c] sm:$0xe]
      %v2537 = vld [vmem:[%s1966 + $0x40] sm:$0xf]
      %v2538 = vld [vmem:[%s1966 + $0x44] sm:$0x1]
      %v2539 = vld [vmem:[%s1966 + $0x48] sm:$0xe]
      %v2540 = vld [vmem:[%s1966 + $0x4c] sm:$0xf]
      %v2541 = vld [vmem:[%s1966 + $0x50] sm:$0x1]
      %v2542 = vld [vmem:[%s1966 + $0x54] sm:$0xe]
      %v2543 = vld [vmem:[%s1966 + $0x58] sm:$0xf]
      %v2544 = vld [vmem:[%s1966 + $0x5c] sm:$0x1]
      %v2545 = vld [vmem:[#allocation2] sm:$0xff]
      %v2546 = vld [vmem:[#allocation2 + $0x8] sm:$0xff]
      %v2547 = vld [vmem:[#allocation2 + $0x10] sm:$0xff]
      %v2548 = vld [vmem:[#allocation2 + $0x18] sm:$0xff]
      %v2549 = vld [vmem:[#allocation2 + $0x20] sm:$0xff]
      %v2550 = vld [vmem:[#allocation2 + $0x28] sm:$0xff]
      %v2551 = vld [vmem:[#allocation2 + $0x30] sm:$0xff]
      %v2552 = vld [vmem:[#allocation2 + $0x38] sm:$0xff]
      %v2553 = vld [vmem:[#allocation2 + $0x40] sm:$0xff]
      %v2554 = vld [vmem:[#allocation2 + $0x48] sm:$0xff]
      %v2555 = vld [vmem:[#allocation2 + $0x50] sm:$0xff]
      %v2556 = vld [vmem:[#allocation2 + $0x58] sm:$0xff]
      %v2557 = vld [vmem:[#allocation2 + $0x60] sm:$0xff]
      %v2558 = vld [vmem:[#allocation2 + $0x68] sm:$0xff]
      %v2559 = vld [vmem:[#allocation2 + $0x70] sm:$0xff]
      %v2560 = vld [vmem:[#allocation2 + $0x78] sm:$0xff]
      %v2585 = vrot.slane %v2521, 5
      %v2586 = vrot.slane %v2585, 4
      %v2587 = vrot.slane %v2522, 5
      %v2588 = vsel %vm954, %v2586, %v2587
      %v2589 = vrot.slane %v2587, 4
      %v2590 = vrot.slane %v2523, 5
      %v2591 = vsel %vm954, %v2589, %v2590
      %v2592 = vrot.slane %v2524, 5
      %v2593 = vrot.slane %v2592, 4
      %v2594 = vrot.slane %v2525, 5
      %v2595 = vsel %vm954, %v2593, %v2594
      %v2596 = vrot.slane %v2594, 4
      %v2597 = vrot.slane %v2526, 5
      %v2598 = vsel %vm954, %v2596, %v2597
      %v2599 = vrot.slane %v2527, 5
      %v2600 = vrot.slane %v2599, 4
      %v2601 = vrot.slane %v2528, 5
      %v2602 = vsel %vm954, %v2600, %v2601
      %v2603 = vrot.slane %v2601, 4
      %v2604 = vrot.slane %v2529, 5
      %v2605 = vsel %vm954, %v2603, %v2604
      %v2606 = vrot.slane %v2530, 5
      %v2607 = vrot.slane %v2606, 4
      %v2608 = vrot.slane %v2531, 5
      %v2609 = vsel %vm954, %v2607, %v2608
      %v2610 = vrot.slane %v2608, 4
      %v2611 = vrot.slane %v2532, 5
      %v2612 = vsel %vm954, %v2610, %v2611
      %v2613 = vrot.slane %v2533, 5
      %v2614 = vrot.slane %v2613, 4
      %v2615 = vrot.slane %v2534, 5
      %v2616 = vsel %vm954, %v2614, %v2615
      %v2617 = vrot.slane %v2615, 4
      %v2618 = vrot.slane %v2535, 5
      %v2619 = vsel %vm954, %v2617, %v2618
      %v2620 = vrot.slane %v2536, 5
      %v2621 = vrot.slane %v2620, 4
      %v2622 = vrot.slane %v2537, 5
      %v2623 = vsel %vm954, %v2621, %v2622
      %v2624 = vrot.slane %v2622, 4
      %v2625 = vrot.slane %v2538, 5
      %v2626 = vsel %vm954, %v2624, %v2625
      %v2627 = vrot.slane %v2539, 5
      %v2628 = vrot.slane %v2627, 4
      %v2629 = vrot.slane %v2540, 5
      %v2630 = vsel %vm954, %v2628, %v2629
      %v2631 = vrot.slane %v2629, 4
      %v2632 = vrot.slane %v2541, 5
      %v2633 = vsel %vm954, %v2631, %v2632
      %v2634 = vrot.slane %v2542, 5
      %v2635 = vrot.slane %v2634, 4
      %v2636 = vrot.slane %v2543, 5
      %v2637 = vsel %vm954, %v2635, %v2636
      %v2638 = vrot.slane %v2636, 4
      %v2639 = vrot.slane %v2544, 5
      %v2640 = vsel %vm954, %v2638, %v2639
      %v2641 = vunpack.c.l.b16 %v2588
      %v2642 = vunpack.c.l.b16 %v2591
      %v2643 = vunpack.c.l.b16 %v2595
      %v2644 = vunpack.c.l.b16 %v2598
      %v2645 = vunpack.c.l.b16 %v2602
      %v2646 = vunpack.c.l.b16 %v2605
      %v2647 = vunpack.c.l.b16 %v2609
      %v2648 = vunpack.c.l.b16 %v2612
      %v2649 = vunpack.c.l.b16 %v2616
      %v2650 = vunpack.c.l.b16 %v2619
      %v2651 = vunpack.c.l.b16 %v2623
      %v2652 = vunpack.c.l.b16 %v2626
      %v2653 = vunpack.c.l.b16 %v2630
      %v2654 = vunpack.c.l.b16 %v2633
      %v2655 = vunpack.c.l.b16 %v2637
      %v2656 = vunpack.c.l.b16 %v2640
      %v2657 = vpack.c.b16 %v2642, %v2641
      %v2658 = vpack.c.b16 %v2644, %v2643
      %v2659 = vpack.c.b16 %v2646, %v2645
      %v2660 = vpack.c.b16 %v2648, %v2647
      %v2661 = vpack.c.b16 %v2650, %v2649
      %v2662 = vpack.c.b16 %v2652, %v2651
      %v2663 = vpack.c.b16 %v2654, %v2653
      %v2664 = vpack.c.b16 %v2656, %v2655
      %v2666 = vsel %vm401, %v2657, 0
      %v2669 = vsel %vm401, %v2658, 0
      %v2672 = vsel %vm401, %v2659, 0
      %v2675 = vsel %vm401, %v2660, 0
      %v2678 = vsel %vm401, %v2661, 0
      %v2681 = vsel %vm401, %v2662, 0
      %v2684 = vsel %vm401, %v2663, 0
      %v2687 = vsel %vm401, %v2664, 0
      %v2690 = vsel %vm426, %v2520, 0
      %2692 = vmatpush.bf16.msra.mxu0 0
      %2693 = vmatpush.bf16.msra.mxu0 0
      %2694 = vmatpush.bf16.msra.mxu0 0
      %2695 = vmatpush.bf16.msra.mxu0 0
      %2696 = vmatpush.bf16.msra.mxu0 0
      %2697 = vmatpush.bf16.msra.mxu0 0
      %2698 = vmatpush.bf16.msra.mxu0 0
      %2699 = vmatpush.bf16.msra.mxu0 %v2690
      %2700 = vmatmul.bf16.gmra.mxu0 %v2666
      %v2701 = vpop.f32.mrf.mxu0
      %v2702 = vadd.f32 0.0, %v2701
      %v2703 = vpop.f32.mrf.mxu0
      %v2704 = vadd.f32 0.0, %v2703
      %2705 = vmatmul.bf16.gmra.mxu0 %v2669
      %v2706 = vpop.f32.mrf.mxu0
      %v2707 = vadd.f32 0.0, %v2706
      %v2708 = vpop.f32.mrf.mxu0
      %v2709 = vadd.f32 0.0, %v2708
      %2710 = vmatmul.bf16.gmra.mxu0 %v2672
      %v2711 = vpop.f32.mrf.mxu0
      %v2712 = vadd.f32 0.0, %v2711
      %v2713 = vpop.f32.mrf.mxu0
      %v2714 = vadd.f32 0.0, %v2713
      %2715 = vmatmul.bf16.gmra.mxu0 %v2675
      %v2716 = vpop.f32.mrf.mxu0
      %v2717 = vadd.f32 0.0, %v2716
      %v2718 = vpop.f32.mrf.mxu0
      %v2719 = vadd.f32 0.0, %v2718
      %2720 = vmatmul.bf16.gmra.mxu0 %v2678
      %v2721 = vpop.f32.mrf.mxu0
      %v2722 = vadd.f32 0.0, %v2721
      %v2723 = vpop.f32.mrf.mxu0
      %v2724 = vadd.f32 0.0, %v2723
      %2725 = vmatmul.bf16.gmra.mxu0 %v2681
      %v2726 = vpop.f32.mrf.mxu0
      %v2727 = vadd.f32 0.0, %v2726
      %v2728 = vpop.f32.mrf.mxu0
      %v2729 = vadd.f32 0.0, %v2728
      %2730 = vmatmul.bf16.gmra.mxu0 %v2684
      %v2731 = vpop.f32.mrf.mxu0
      %v2732 = vadd.f32 0.0, %v2731
      %v2733 = vpop.f32.mrf.mxu0
      %v2734 = vadd.f32 0.0, %v2733
      %2735 = vmatmul.bf16.gmra.mxu0 %v2687
      %v2736 = vpop.f32.mrf.mxu0
      %v2737 = vadd.f32 0.0, %v2736
      %v2738 = vpop.f32.mrf.mxu0
      %v2739 = vadd.f32 0.0, %v2738
      %2740 = vdwg.mxu0
      %v2741 = vadd.f32 %v2545, %v2702
      %v2742 = vadd.f32 %v2546, %v2704
      %v2743 = vadd.f32 %v2547, %v2707
      %v2744 = vadd.f32 %v2548, %v2709
      %v2745 = vadd.f32 %v2549, %v2712
      %v2746 = vadd.f32 %v2550, %v2714
      %v2747 = vadd.f32 %v2551, %v2717
      %v2748 = vadd.f32 %v2552, %v2719
      %v2749 = vadd.f32 %v2553, %v2722
      %v2750 = vadd.f32 %v2554, %v2724
      %v2751 = vadd.f32 %v2555, %v2727
      %v2752 = vadd.f32 %v2556, %v2729
      %v2753 = vadd.f32 %v2557, %v2732
      %v2754 = vadd.f32 %v2558, %v2734
      %v2755 = vadd.f32 %v2559, %v2737
      %v2756 = vadd.f32 %v2560, %v2739
      %2757 = vst.msk [vmem:[#allocation2] sm:$0xff] %vm303, %v2741
      %2758 = vst.msk [vmem:[#allocation2 + $0x8] sm:$0xff] %vm303, %v2742
      %2759 = vst.msk [vmem:[#allocation2 + $0x10] sm:$0xff] %vm303, %v2743
      %2760 = vst.msk [vmem:[#allocation2 + $0x18] sm:$0xff] %vm303, %v2744
      %2761 = vst.msk [vmem:[#allocation2 + $0x20] sm:$0xff] %vm303, %v2745
      %2762 = vst.msk [vmem:[#allocation2 + $0x28] sm:$0xff] %vm303, %v2746
      %2763 = vst.msk [vmem:[#allocation2 + $0x30] sm:$0xff] %vm303, %v2747
      %2764 = vst.msk [vmem:[#allocation2 + $0x38] sm:$0xff] %vm303, %v2748
      %2765 = vst.msk [vmem:[#allocation2 + $0x40] sm:$0xff] %vm303, %v2749
      %2766 = vst.msk [vmem:[#allocation2 + $0x48] sm:$0xff] %vm303, %v2750
      %2767 = vst.msk [vmem:[#allocation2 + $0x50] sm:$0xff] %vm303, %v2751
      %2768 = vst.msk [vmem:[#allocation2 + $0x58] sm:$0xff] %vm303, %v2752
      %2769 = vst.msk [vmem:[#allocation2 + $0x60] sm:$0xff] %vm303, %v2753
      %2770 = vst.msk [vmem:[#allocation2 + $0x68] sm:$0xff] %vm303, %v2754
      %2771 = vst.msk [vmem:[#allocation2 + $0x70] sm:$0xff] %vm303, %v2755
      %2772 = vst.msk [vmem:[#allocation2 + $0x78] sm:$0xff] %vm303, %v2756
      %v2773 = vld [vmem:[#allocation2] sm:$0xff]
      %v2774 = vld [vmem:[#allocation2 + $0x8] sm:$0xff]
      %v2775 = vld [vmem:[#allocation2 + $0x10] sm:$0xff]
      %v2776 = vld [vmem:[#allocation2 + $0x18] sm:$0xff]
      %v2777 = vld [vmem:[#allocation2 + $0x20] sm:$0xff]
      %v2778 = vld [vmem:[#allocation2 + $0x28] sm:$0xff]
      %v2779 = vld [vmem:[#allocation2 + $0x30] sm:$0xff]
      %v2780 = vld [vmem:[#allocation2 + $0x38] sm:$0xff]
      %v2781 = vld [vmem:[#allocation2 + $0x40] sm:$0xff]
      %v2782 = vld [vmem:[#allocation2 + $0x48] sm:$0xff]
      %v2783 = vld [vmem:[#allocation2 + $0x50] sm:$0xff]
      %v2784 = vld [vmem:[#allocation2 + $0x58] sm:$0xff]
      %v2785 = vld [vmem:[#allocation2 + $0x60] sm:$0xff]
      %v2786 = vld [vmem:[#allocation2 + $0x68] sm:$0xff]
      %v2787 = vld [vmem:[#allocation2 + $0x70] sm:$0xff]
      %v2788 = vld [vmem:[#allocation2 + $0x78] sm:$0xff]
      %v2789 = vpack.c.bf16 %v2773, %v2773
      %v2790 = vpack.c.bf16 %v2774, %v2774
      %v2791 = vpack.c.bf16 %v2775, %v2775
      %v2792 = vpack.c.bf16 %v2776, %v2776
      %v2793 = vpack.c.bf16 %v2777, %v2777
      %v2794 = vpack.c.bf16 %v2778, %v2778
      %v2795 = vpack.c.bf16 %v2779, %v2779
      %v2796 = vpack.c.bf16 %v2780, %v2780
      %v2797 = vpack.c.bf16 %v2781, %v2781
      %v2798 = vpack.c.bf16 %v2782, %v2782
      %v2799 = vpack.c.bf16 %v2783, %v2783
      %v2800 = vpack.c.bf16 %v2784, %v2784
      %v2801 = vpack.c.bf16 %v2785, %v2785
      %v2802 = vpack.c.bf16 %v2786, %v2786
      %v2803 = vpack.c.bf16 %v2787, %v2787
      %v2804 = vpack.c.bf16 %v2788, %v2788
      %vm2805 = vcmask 191488
      %2806 = vst.msk [vmem:[%s286] sm:$0xf] %vm2805, %v2789
      %2807 = vst.msk [vmem:[%s286 + $0x4] sm:$0xf] %vm2805, %v2790
      %2808 = vst.msk [vmem:[%s286 + $0x8] sm:$0xf] %vm2805, %v2791
      %2809 = vst.msk [vmem:[%s286 + $0xc] sm:$0xf] %vm2805, %v2792
      %2810 = vst.msk [vmem:[%s286 + $0x10] sm:$0xf] %vm2805, %v2793
      %2811 = vst.msk [vmem:[%s286 + $0x14] sm:$0xf] %vm2805, %v2794
      %2812 = vst.msk [vmem:[%s286 + $0x18] sm:$0xf] %vm2805, %v2795
      %2813 = vst.msk [vmem:[%s286 + $0x1c] sm:$0xf] %vm2805, %v2796
      %2814 = vst.msk [vmem:[%s286 + $0x20] sm:$0xf] %vm2805, %v2797
      %2815 = vst.msk [vmem:[%s286 + $0x24] sm:$0xf] %vm2805, %v2798
      %2816 = vst.msk [vmem:[%s286 + $0x28] sm:$0xf] %vm2805, %v2799
      %2817 = vst.msk [vmem:[%s286 + $0x2c] sm:$0xf] %vm2805, %v2800
      %2818 = vst.msk [vmem:[%s286 + $0x30] sm:$0xf] %vm2805, %v2801
      %2819 = vst.msk [vmem:[%s286 + $0x34] sm:$0xf] %vm2805, %v2802
      %2820 = vst.msk [vmem:[%s286 + $0x38] sm:$0xf] %vm2805, %v2803
      %2821 = vst.msk [vmem:[%s286 + $0x3c] sm:$0xf] %vm2805, %v2804
      %v2822 = vsel %vm303, %v2773, 0.0
      %v2823 = vsel %vm303, %v2774, 0.0
      %v2824 = vadd.f32 %v2822, %v2823
      %v2825 = vsel %vm303, %v2775, 0.0
      %v2826 = vadd.f32 %v2824, %v2825
      %v2827 = vsel %vm303, %v2776, 0.0
      %v2828 = vadd.f32 %v2826, %v2827
      %v2829 = vsel %vm303, %v2777, 0.0
      %v2830 = vadd.f32 %v2828, %v2829
      %v2831 = vsel %vm303, %v2778, 0.0
      %v2832 = vadd.f32 %v2830, %v2831
      %v2833 = vsel %vm303, %v2779, 0.0
      %v2834 = vadd.f32 %v2832, %v2833
      %v2835 = vsel %vm303, %v2780, 0.0
      %v2836 = vadd.f32 %v2834, %v2835
      %v2837 = vsel %vm303, %v2781, 0.0
      %v2838 = vadd.f32 %v2836, %v2837
      %v2839 = vsel %vm303, %v2782, 0.0
      %v2840 = vadd.f32 %v2838, %v2839
      %v2841 = vsel %vm303, %v2783, 0.0
      %v2842 = vadd.f32 %v2840, %v2841
      %v2843 = vsel %vm303, %v2784, 0.0
      %v2844 = vadd.f32 %v2842, %v2843
      %v2845 = vsel %vm303, %v2785, 0.0
      %v2846 = vadd.f32 %v2844, %v2845
      %v2847 = vsel %vm303, %v2786, 0.0
      %v2848 = vadd.f32 %v2846, %v2847
      %v2849 = vsel %vm303, %v2787, 0.0
      %v2850 = vadd.f32 %v2848, %v2849
      %v2851 = vsel %vm303, %v2788, 0.0
      %v2852 = vadd.f32 %v2850, %v2851
      %v2853 = vrot.slane %v2852, 4
      %v2854 = vadd.f32 %v2852, %v2853
      %v2855 = vrot.slane %v2854, 2
      %v2856 = vadd.f32 %v2854, %v2855
      %v2857 = vrot.slane %v2856, 1
      %v2858 = vadd.f32 %v2856, %v2857
      %vm2859 = vcmask 188416
      %2860 = vst.msk [vmem:[%s294] sm:$0x1] %vm2859, %v2858
      %v2861 = vmul.f32 %v2773, %v2773
      %v2862 = vmul.f32 %v2774, %v2774
      %v2863 = vmul.f32 %v2775, %v2775
      %v2864 = vmul.f32 %v2776, %v2776
      %v2865 = vmul.f32 %v2777, %v2777
      %v2866 = vmul.f32 %v2778, %v2778
      %v2867 = vmul.f32 %v2779, %v2779
      %v2868 = vmul.f32 %v2780, %v2780
      %v2869 = vmul.f32 %v2781, %v2781
      %v2870 = vmul.f32 %v2782, %v2782
      %v2871 = vmul.f32 %v2783, %v2783
      %v2872 = vmul.f32 %v2784, %v2784
      %v2873 = vmul.f32 %v2785, %v2785
      %v2874 = vmul.f32 %v2786, %v2786
      %v2875 = vmul.f32 %v2787, %v2787
      %v2876 = vmul.f32 %v2788, %v2788
      %v2877 = vsel %vm303, %v2861, 0.0
      %v2878 = vsel %vm303, %v2862, 0.0
      %v2879 = vadd.f32 %v2877, %v2878
      %v2880 = vsel %vm303, %v2863, 0.0
      %v2881 = vadd.f32 %v2879, %v2880
      %v2882 = vsel %vm303, %v2864, 0.0
      %v2883 = vadd.f32 %v2881, %v2882
      %v2884 = vsel %vm303, %v2865, 0.0
      %v2885 = vadd.f32 %v2883, %v2884
      %v2886 = vsel %vm303, %v2866, 0.0
      %v2887 = vadd.f32 %v2885, %v2886
      %v2888 = vsel %vm303, %v2867, 0.0
      %v2889 = vadd.f32 %v2887, %v2888
      %v2890 = vsel %vm303, %v2868, 0.0
      %v2891 = vadd.f32 %v2889, %v2890
      %v2892 = vsel %vm303, %v2869, 0.0
      %v2893 = vadd.f32 %v2891, %v2892
      %v2894 = vsel %vm303, %v2870, 0.0
      %v2895 = vadd.f32 %v2893, %v2894
      %v2896 = vsel %vm303, %v2871, 0.0
      %v2897 = vadd.f32 %v2895, %v2896
      %v2898 = vsel %vm303, %v2872, 0.0
      %v2899 = vadd.f32 %v2897, %v2898
      %v2900 = vsel %vm303, %v2873, 0.0
      %v2901 = vadd.f32 %v2899, %v2900
      %v2902 = vsel %vm303, %v2874, 0.0
      %v2903 = vadd.f32 %v2901, %v2902
      %v2904 = vsel %vm303, %v2875, 0.0
      %v2905 = vadd.f32 %v2903, %v2904
      %v2906 = vsel %vm303, %v2876, 0.0
      %v2907 = vadd.f32 %v2905, %v2906
      %v2908 = vrot.slane %v2907, 4
      %v2909 = vadd.f32 %v2907, %v2908
      %v2910 = vrot.slane %v2909, 2
      %v2911 = vadd.f32 %v2909, %v2910
      %v2912 = vrot.slane %v2911, 1
      %v2913 = vadd.f32 %v2911, %v2912
      %2914 = vst.msk [vmem:[%s301] sm:$0x1] %vm2859, %v2913
      %s2915 = smul.u32 16, %s22
      %p2916 = scmp.lt.s32.totalorder %s21, 1
      %s2917 = scalar_select %p2916, %s21, 1
      %p2918 = scmp.lt.s32.totalorder %s2915, 31
      %s2919 = scalar_select %p2918, %s2915, 31
      %s2920 = smul.addr %s2917, 32
      %s2921 = sadd.s32 %s2919, %s2920
      %s2922 = smul.addr %s2921, 4
      %s2923 = scalar_lea.vmem %s3, %s2922
      %p2924 = scmp.lt.s32.totalorder %s21, 1
      %s2925 = scalar_select %p2924, %s21, 1
      %p2926 = scmp.lt.s32.totalorder %s22, 1
      %s2927 = scalar_select %p2926, %s22, 1
      %s2928 = smul.addr %s2925, 2
      %s2929 = sadd.s32 %s2927, %s2928
      %s2930 = scalar_lea.vmem %s4, %s2929
      %p2931 = scmp.lt.s32.totalorder %s21, 1
      %s2932 = scalar_select %p2931, %s21, 1
      %p2933 = scmp.lt.s32.totalorder %s22, 1
      %s2934 = scalar_select %p2933, %s22, 1
      %s2935 = smul.addr %s2932, 2
      %s2936 = sadd.s32 %s2934, %s2935
      %s2937 = scalar_lea.vmem %s5, %s2936
      // Predicated region
      $region33: #{dyres_conv_forward.1} parent=31 // pred_check
        %p2938 = pneg %p122
      $region34: #{dyres_conv_forward.1} parent=31 // pred_check_branch
        %2940 = sbr.rel (%p2938) target = $region36
      $region35: #{dyres_conv_forward.1} parent=31 // pred_region
        %s2941 = smul.u32 16, %s22
      $region36: #{dyres_conv_forward.1} parent=31 // pred_fallthru
        _
      // Predicated region
      $region37: #{dyres_conv_forward.1} parent=31 // pred_check
        %p2942 = pneg %p150
      $region38: #{dyres_conv_forward.1} parent=31 // pred_check_branch
        %2944 = sbr.rel (%p2942) target = $region40
      $region39: #{dyres_conv_forward.1} parent=31 // pred_region
        _
      $region40: #{dyres_conv_forward.1} parent=31 // pred_fallthru
        _
      // Predicated region
      $region41: #{dyres_conv_forward.1} parent=31 // pred_check
        %p2945 = pneg %p178
      $region42: #{dyres_conv_forward.1} parent=31 // pred_check_branch
        %2947 = sbr.rel (%p2945) target = $region44
      $region43: #{dyres_conv_forward.1} parent=31 // pred_region
        _
      $region44: #{dyres_conv_forward.1} parent=31 // pred_fallthru
        _
    $region32: #{dyres_conv_forward.1} parent=5 // pred_fallthru
      _
    %p2948 = scmp.le.s32.totalorder 2, %s12
    // Predicated region
    $region45: #{dyres_conv_forward.1} parent=5 // pred_check
      %p2949 = pneg %p2948
    $region46: #{dyres_conv_forward.1} parent=5 // pred_check_branch
      %2951 = sbr.rel (%p2949) target = $region48
    $region47: #{dyres_conv_forward.1} parent=5 // pred_region
      %s2952 = ssub.s32 %s12, 2
      // Predicated region
      $region49: #{dyres_conv_forward.1} parent=47 // pred_check
        %p2953 = pneg %p128
      $region50: #{dyres_conv_forward.1} parent=47 // pred_check_branch
        %2955 = sbr.rel (%p2953) target = $region52
      $region51: #{dyres_conv_forward.1} parent=47 // pred_region
        %s2956 = smul.u32 16, %s24
        %p2957 = scmp.lt.s32.totalorder %s23, 1
        %s2958 = scalar_select %p2957, %s23, 1
        %p2959 = scmp.lt.s32.totalorder %s2956, 31
        %s2960 = scalar_select %p2959, %s2956, 31
        %s2961 = smul.addr %s2958, 32
        %s2962 = sadd.s32 %s2960, %s2961
        %s2963 = smul.addr %s2962, 4
        %s2964 = scalar_lea.vmem %s3, %s2963
      $region52: #{dyres_conv_forward.1} parent=47 // pred_fallthru
        _
      // Predicated region
      $region53: #{dyres_conv_forward.1} parent=47 // pred_check
        %p2965 = pneg %p156
      $region54: #{dyres_conv_forward.1} parent=47 // pred_check_branch
        %2967 = sbr.rel (%p2965) target = $region56
      $region55: #{dyres_conv_forward.1} parent=47 // pred_region
        %p2968 = scmp.lt.s32.totalorder %s23, 1
        %s2969 = scalar_select %p2968, %s23, 1
        %p2970 = scmp.lt.s32.totalorder %s24, 1
        %s2971 = scalar_select %p2970, %s24, 1
        %s2972 = smul.addr %s2969, 2
        %s2973 = sadd.s32 %s2971, %s2972
        %s2974 = scalar_lea.vmem %s4, %s2973
      $region56: #{dyres_conv_forward.1} parent=47 // pred_fallthru
        _
      // Predicated region
      $region57: #{dyres_conv_forward.1} parent=47 // pred_check
        %p2975 = pneg %p184
      $region58: #{dyres_conv_forward.1} parent=47 // pred_check_branch
        %2977 = sbr.rel (%p2975) target = $region60
      $region59: #{dyres_conv_forward.1} parent=47 // pred_region
        %p2978 = scmp.lt.s32.totalorder %s23, 1
        %s2979 = scalar_select %p2978, %s23, 1
        %p2980 = scmp.lt.s32.totalorder %s24, 1
        %s2981 = scalar_select %p2980, %s24, 1
        %s2982 = smul.addr %s2979, 2
        %s2983 = sadd.s32 %s2981, %s2982
        %s2984 = scalar_lea.vmem %s5, %s2983
      $region60: #{dyres_conv_forward.1} parent=47 // pred_fallthru
        _
    $region48: #{dyres_conv_forward.1} parent=5 // pred_fallthru
      _
  $region6: #{dyres_conv_forward.1} parent=0 // loop_footer
    %s16 = sadd.s32 1, %s12
  $region7: #{dyres_conv_forward.1} parent=0 // loop_footer_branch
    %11 = sbr.rel target = $region3
  $region8: #{dyres_conv_forward.1} parent=0 // loop_exit
    _

</llo_original>
